<compile_context>
chip_gen: v7x
topology: tpu7x:2x2x1
jax: 0.10.0
libtpu: 0.0.40
codegen_flags: <defaults>
</compile_context>

<pallas_src>
import jax
import jax.numpy as jnp
import numpy as np
from jax.experimental import pallas as pl
from jax.experimental.pallas import tpu as pltpu

LANE = 128      # TPU lane width
SUBLANE = 8     # f32 sublane count


def _round_up(x, m):
    return (x + m - 1) // m * m


# --------------------------------------------------------------------------
# Per-generation sizing helpers
# --------------------------------------------------------------------------
def _tpu_generation_info():
    """Returns (physical VMEM bytes per core, #TensorCores to split the grid)."""
    vmem_phys = 128 << 20
    num_cores = 1
    try:
        vmem_phys = int(pltpu.get_tpu_info().vmem_capacity_bytes)
    except Exception:
        pass
    try:
        kind = jax.devices()[0].device_kind.lower()
    except Exception:
        kind = ""
    # v7x: 2 TensorCores per chip, 64 MiB VMEM per TC.
    if "v7" in kind or "7x" in kind or vmem_phys <= (64 << 20):
        num_cores = 2
    return vmem_phys, num_cores


def _hidden_pad(hidden):
    """Pad the hidden dim to the MXU output-tile width of the generation."""
    if hidden <= 128:
        return 128
    try:
        kind = jax.devices()[0].device_kind.lower()
    except Exception:
        kind = ""
    mult = 128 if "v5" in kind else 256      # v5e MXU is 128 wide; v6e/v7x 256
    return _round_up(hidden, mult)


def _step_bytes(gb, n, Fp, Hp):
    """Approximate per-grid-step VMEM working set."""
    x_blk = gb * n * Fp * 2            # bf16 node features
    a_blk = gb * n * n * 4             # f32 adjacency blocks
    o_blk = gb * LANE * 4              # f32 output tile
    inter = 7 * gb * n * Hp * 4        # f32 intermediates (xw, aggregate, relu, ...)
    return 2 * (x_blk + a_blk + o_blk) + inter


def _weight_bytes(Fp, Hp):
    # conservatively assume the weights may still be double-buffered
    return 2 * ((Fp * Hp + Hp * Hp) * 2 + 3 * Hp * 4)


def _choose_gb(G, n, Fp, Hp, vmem_cap_bytes, num_cores):
    """Graphs per grid step: multiple of 8, ~2K node rows, fits the VMEM budget,
    and (on 2-TC chips) small enough to leave >= num_cores grid steps."""
    g_pad = _round_up(G, SUBLANE)
    gb = _round_up(max(SUBLANE, pl.cdiv(2048, n)), SUBLANE)
    budget = max(4 << 20, vmem_cap_bytes - _weight_bytes(Fp, Hp) - (8 << 20))
    while gb > SUBLANE and _step_bytes(gb, n, Fp, Hp) > budget:
        gb -= SUBLANE
    gb = min(gb, g_pad)
    if num_cores > 1 and g_pad > SUBLANE:
        gb = min(gb, _round_up(pl.cdiv(G, num_cores), SUBLANE))
    gb = max(SUBLANE, gb)
    return gb, _round_up(G, gb)


# --------------------------------------------------------------------------
# Kernel
# --------------------------------------------------------------------------
def gnn_critic_kernel(x_ref, a_ref, w1_ref, b1_ref, w2_ref, b2_ref,
                      w3_ref, b3_ref, out_ref):
    """One grid step processes GB graphs.  Block shapes:
         x_ref  : (GB*n, Fp)  bf16   node features (graphs contiguous)
         a_ref  : (GB, n, n)  f32    normalized per-graph adjacency blocks
         w1_ref : (Fp, Hp)    bf16   (resident)
         b1_ref : (1, Hp)     f32    (resident)
         w2_ref : (Hp, Hp)    bf16   (resident)
         b2_ref : (1, Hp)     f32    (resident)
         w3_ref : (1, Hp)     f32    value-head weight row, pre-scaled by 1/n
         b3_ref : (1,)        f32    value-head bias (SMEM scalar)
         out_ref: (GB, 128)   f32    per-graph value broadcast along lanes
    """
    GB, n, _ = a_ref.shape
    Hp = w1_ref.shape[1]

    a = a_ref[...]                                          # (GB, n, n) f32
    x2d = x_ref[...]                                        # (GB*n, Fp) bf16

    def aggregate(xw):
        """Per-graph A @ xw, xw: (GB, n, Hp) f32, all-f32 result."""
        if n <= 16:
            # VPU broadcast-accumulate over the n neighbor columns: exactly
            # GB*n^2*Hp FMAs, no tiny MXU pushes, no bf16 rounding of A/xw.
            acc = a[:, :, 0:1] * xw[:, 0:1, :]
            for j in range(1, n):
                acc = acc + a[:, :, j:j + 1] * xw[:, j:j + 1, :]
            return acc
        # TODO(synk): for larger n build a block-diagonal A in VMEM and use one
        # dense MXU matmul per step instead of this batched einsum.
        return jnp.einsum('gnm,gmh->gnh', a.astype(jnp.bfloat16),
                          xw.astype(jnp.bfloat16),
                          preferred_element_type=jnp.float32)

    # ---- GCN layer 1: H1 = ReLU(A @ (X @ W1) + b1) ----------------------
    xw1 = jnp.dot(x2d, w1_ref[...],
                  preferred_element_type=jnp.float32)       # (GB*n, Hp) f32
    h1 = jnp.maximum(aggregate(xw1.reshape(GB, n, Hp)) + b1_ref[...], 0.0)

    # ---- GCN layer 2: H2 = ReLU(A @ (H1 @ W2) + b2) ---------------------
    hw2 = jnp.dot(h1.reshape(GB * n, Hp).astype(jnp.bfloat16), w2_ref[...],
                  preferred_element_type=jnp.float32)       # (GB*n, Hp) f32
    h2 = jnp.maximum(aggregate(hw2.reshape(GB, n, Hp)) + b2_ref[...], 0.0)

    # ---- Per-graph pool + value head (1/n folded into w3) ---------------
    pooled = jnp.sum(h2, axis=1)                            # (GB, Hp) f32
    v = jnp.sum(pooled * w3_ref[...], axis=-1, keepdims=True) + b3_ref[0]

    # Lane-dense unmasked store: broadcast the per-graph scalar across lanes.
    out_ref[...] = jnp.broadcast_to(v, out_ref.shape).astype(out_ref.dtype)


# --------------------------------------------------------------------------
# Wrapper
# --------------------------------------------------------------------------
def pad_params(params, feat, hidden, nodes_per_graph):
    """Pad / cast the weights ONCE (hoisted out of the per-call path).
    Folds the 1/n of the graph mean-pool into the value-head weight."""
    w1, b1, w2, b2, w3, b3 = params
    Fp = _round_up(feat, LANE) if feat >= 64 else _round_up(feat, SUBLANE)
    Hp = _hidden_pad(hidden)
    w1p = jnp.zeros((Fp, Hp), jnp.bfloat16).at[:feat, :hidden].set(
        w1.astype(jnp.bfloat16))
    w2p = jnp.zeros((Hp, Hp), jnp.bfloat16).at[:hidden, :hidden].set(
        w2.astype(jnp.bfloat16))
    b1p = jnp.zeros((1, Hp), jnp.float32).at[:, :hidden].set(b1.reshape(1, hidden))
    b2p = jnp.zeros((1, Hp), jnp.float32).at[:, :hidden].set(b2.reshape(1, hidden))
    w3p = jnp.zeros((1, Hp), jnp.float32).at[:, :hidden].set(
        w3.reshape(1, hidden) / float(nodes_per_graph))
    b3p = jnp.asarray(b3, jnp.float32).reshape(1)
    return (w1p, b1p, w2p, b2p, w3p, b3p), (Fp, Hp)


def _pallas_forward(args, GB, Gp, n, Fp, Hp, num_blocks, vmem_limit, cost,
                    single_buffer_weights):
    if single_buffer_weights:
        def resident(shape):
            return pl.BlockSpec(shape, lambda i: (0,) * len(shape),
                                pipeline_mode=pl.Buffered(1))
    else:
        def resident(shape):
            return pl.BlockSpec(shape, lambda i: (0,) * len(shape))

    in_specs = [
        pl.BlockSpec((GB * n, Fp), lambda i: (i, 0)),       # x   (per block)
        pl.BlockSpec((GB, n, n), lambda i: (i, 0, 0)),      # A   (per block)
        resident((Fp, Hp)),                                 # w1
        resident((1, Hp)),                                  # b1
        resident((Hp, Hp)),                                 # w2
        resident((1, Hp)),                                  # b2
        resident((1, Hp)),                                  # w3 (pre-scaled 1/n)
        pl.BlockSpec(memory_space=pltpu.MemorySpace.SMEM),  # b3 scalar
    ]
    out_specs = pl.BlockSpec((GB, LANE), lambda i: (i, 0))
    out_shape = jax.ShapeDtypeStruct((Gp, LANE), jnp.float32)

    return pl.pallas_call(
        gnn_critic_kernel,
        out_shape=out_shape,
        grid=(num_blocks,),
        in_specs=in_specs,
        out_specs=out_specs,
        compiler_params=pltpu.CompilerParams(
            dimension_semantics=("parallel",),
            vmem_limit_bytes=vmem_limit),
        cost_estimate=cost,
    )(*args)


def gnn_critic_forward(x, a_blocks, padded_params, dims):
    """x: [G, n, F] node features; a_blocks: [G, n, n] symmetric-normalized
    per-graph adjacency blocks; padded_params/dims from pad_params().
    Returns values of shape [G]  (== torch.squeeze(v_net(batch), -1))."""
    Fp, Hp = dims
    G, n, F = x.shape
    # TODO(synk): ragged PyG batches need a masked mean-pool; equal-size
    # contiguous graphs assumed here.
    assert n % SUBLANE == 0, "nodes_per_graph must be a multiple of 8"

    vmem_phys, num_cores = _tpu_generation_info()
    vmem_cap = (36 << 20) if vmem_phys <= (64 << 20) else (48 << 20)
    GB, Gp = _choose_gb(G, n, Fp, Hp, vmem_cap, num_cores)
    num_blocks = Gp // GB

    # Per-call input pad/cast (graph data changes every call).
    # TODO(synk): lay out x/A in this padded form upstream (or fuse the pad)
    # so this does not cost an extra HBM round trip per call.
    xp = jnp.zeros((Gp * n, Fp), jnp.bfloat16)
    xp = xp.at[:G * n, :F].set(x.reshape(G * n, F).astype(jnp.bfloat16))
    ap = jnp.zeros((Gp, n, n), jnp.float32).at[:G].set(a_blocks.astype(jnp.float32))

    step_b = _step_bytes(GB, n, Fp, Hp)
    vmem_limit = int(min(vmem_cap,
                         max(32 << 20, 2 * step_b + _weight_bytes(Fp, Hp) + (4 << 20))))

    flops = int(2 * Gp * n * Hp * (Fp + Hp + 2 * n) + 2 * Gp * Hp)
    bytes_accessed = int(xp.size * 2 + ap.size * 4
                         + (Fp * Hp + Hp * Hp) * 2 + 3 * Hp * 4 + 4
                         + Gp * LANE * 4)
    cost = pl.CostEstimate(flops=flops, transcendentals=0,
                           bytes_accessed=bytes_accessed)

    args = (xp, ap) + tuple(padded_params)
    try:
        out = _pallas_forward(args, GB, Gp, n, Fp, Hp, num_blocks, vmem_limit,
                              cost, single_buffer_weights=True)
    except Exception:
        # Fallback if this JAX build rejects pipeline_mode=pl.Buffered(1).
        out = _pallas_forward(args, GB, Gp, n, Fp, Hp, num_blocks, vmem_limit,
                              cost, single_buffer_weights=False)

    # torch.squeeze(values, -1): take lane 0 of each graph row, drop padding.
    return out[:G, 0]


# --------------------------------------------------------------------------
# Test fixtures + pure-JAX reference
# --------------------------------------------------------------------------
def build_batch_graph(num_graphs, nodes_per_graph):
    """Per-graph ring + self-loops with GCN symmetric normalization, stacked as
    [G, n, n] (diagonal blocks of the batched block-diagonal adjacency)."""
    n = nodes_per_graph
    A = np.zeros((n, n), dtype=np.float32)
    for i in range(n):
        j = (i + 1) % n
        A[i, j] = 1.0
        A[j, i] = 1.0
    A = A + np.eye(n, dtype=np.float32)
    d = 1.0 / np.sqrt(A.sum(axis=1))
    A_hat = (A * d[:, None]) * d[None, :]                   # D^-1/2 (A+I) D^-1/2
    return jnp.asarray(np.broadcast_to(A_hat, (num_graphs, n, n)).copy())


def init_params(key, feat, hidden):
    k1, k2, k3 = jax.random.split(key, 3)
    w1 = jax.random.normal(k1, (feat, hidden), jnp.float32) * (1.0 / np.sqrt(feat))
    b1 = jnp.zeros((1, hidden), jnp.float32)
    w2 = jax.random.normal(k2, (hidden, hidden), jnp.float32) * (1.0 / np.sqrt(hidden))
    b2 = jnp.zeros((1, hidden), jnp.float32)
    w3 = jax.random.normal(k3, (hidden, 1), jnp.float32) * (1.0 / np.sqrt(hidden))
    b3 = jnp.zeros((1, 1), jnp.float32)
    return (w1, b1, w2, b2, w3, b3)


def ref_forward(x, a_blocks, params):
    """Pure-JAX reference of the same math: bf16 operands only on the X@W1 and
    H1@W2 matmuls (f32 accumulate), f32 adjacency aggregation, mean pool."""
    w1, b1, w2, b2, w3, b3 = params
    bf = lambda t: t.astype(jnp.bfloat16).astype(jnp.float32)
    hi = jax.lax.Precision.HIGHEST
    xw1 = jnp.einsum('gnf,fh->gnh', bf(x), bf(w1), precision=hi)
    h1 = jnp.maximum(jnp.einsum('gnm,gmh->gnh', a_blocks, xw1, precision=hi) + b1, 0.0)
    hw2 = jnp.einsum('gnh,hk->gnk', bf(h1), bf(w2), precision=hi)
    h2 = jnp.maximum(jnp.einsum('gnm,gmh->gnh', a_blocks, hw2, precision=hi) + b2, 0.0)
    pooled = jnp.mean(h2, axis=1)
    return jnp.sum(pooled * w3.reshape(1, -1), axis=-1) + b3.reshape(())


if __name__ == "__main__":
    # Small shapes: batch of 2 graphs, 8 nodes each, 4 node features, hidden=32.
    num_graphs, nodes_per_graph, feat, hidden = 2, 8, 4, 32

    key = jax.random.PRNGKey(0)
    kx, kp = jax.random.split(key)
    x = jax.random.normal(kx, (num_graphs, nodes_per_graph, feat), jnp.float32)
    a_blocks = build_batch_graph(num_graphs, nodes_per_graph)
    params = init_params(kp, feat, hidden)

    # Weight padding / casting hoisted out of the per-call path.
    padded_params, dims = pad_params(params, feat, hidden, nodes_per_graph)

    values = gnn_critic_forward(x, a_blocks, padded_params, dims)
    values = jax.block_until_ready(values)

    ref = ref_forward(x, a_blocks, params)
    assert values.shape == (num_graphs,)
    np.testing.assert_allclose(np.asarray(values), np.asarray(ref),
                               rtol=2e-3, atol=2e-3)

    print("KERNEL_OK")
</pallas_src>

<mosaic_0001>
module attributes {stable_mosaic.version = 11 : i64} {
  func.func @gnn_critic_kernel(%arg0: i32, %arg1: memref<64x8xbf16, #tpu.memory_space<vmem>>, %arg2: memref<8x8x8xf32, #tpu.memory_space<vmem>>, %arg3: memref<8x128xbf16, #tpu.memory_space<vmem>>, %arg4: memref<1x128xf32, #tpu.memory_space<vmem>>, %arg5: memref<128x128xbf16, #tpu.memory_space<vmem>>, %arg6: memref<1x128xf32, #tpu.memory_space<vmem>>, %arg7: memref<1x128xf32, #tpu.memory_space<vmem>>, %arg8: memref<1xf32, #tpu.memory_space<smem>>, %arg9: memref<8x128xf32, #tpu.memory_space<vmem>>) attributes {dimension_semantics = [#tpu.dimension_semantics<parallel>], iteration_bounds = array<i64: 1>, scalar_prefetch = 0 : i64, scratch_operands = 0 : i64, tpu.core_type = #tpu.core_type<tc>, window_params = [{transform_indices = @transform_0, window_bounds = array<i64: 64, 8>}, {transform_indices = @transform_1, window_bounds = array<i64: 8, 8, 8>}, {pipeline_mode = #tpu.pipeline_mode<synchronous>, transform_indices = @transform_2, window_bounds = array<i64: 8, 128>}, {pipeline_mode = #tpu.pipeline_mode<synchronous>, transform_indices = @transform_3, window_bounds = array<i64: 1, 128>}, {pipeline_mode = #tpu.pipeline_mode<synchronous>, transform_indices = @transform_4, window_bounds = array<i64: 128, 128>}, {pipeline_mode = #tpu.pipeline_mode<synchronous>, transform_indices = @transform_5, window_bounds = array<i64: 1, 128>}, {pipeline_mode = #tpu.pipeline_mode<synchronous>, transform_indices = @transform_6, window_bounds = array<i64: 1, 128>}, {transform_indices = @transform_7, window_bounds = array<i64: 1>}, {transform_indices = @transform_8, window_bounds = array<i64: 8, 128>}]} {
    %c0 = arith.constant 0 : index
    %c0_0 = arith.constant 0 : index
    %c0_1 = arith.constant 0 : index
    %0 = vector.load %arg2[%c0, %c0_0, %c0_1] : memref<8x8x8xf32, #tpu.memory_space<vmem>>, vector<8x8x8xf32>
    %c0_2 = arith.constant 0 : index
    %c0_3 = arith.constant 0 : index
    %1 = vector.load %arg1[%c0_2, %c0_3] : memref<64x8xbf16, #tpu.memory_space<vmem>>, vector<64x8xbf16>
    %c0_4 = arith.constant 0 : index
    %c0_5 = arith.constant 0 : index
    %2 = vector.load %arg3[%c0_4, %c0_5] : memref<8x128xbf16, #tpu.memory_space<vmem>>, vector<8x128xbf16>
    %cst = arith.constant dense<0.000000e+00> : vector<64x128xf32>
    %3 = tpu.matmul %1, %2, %cst {dimension_numbers = #tpu.dot_dimension_numbers<[1], [0], [0], [1], [0, 0, 1, 1], [], []>} : vector<64x8xbf16>, vector<8x128xbf16>, vector<64x128xf32> -> vector<64x128xf32>
    %4 = vector.shape_cast %3 : vector<64x128xf32> to vector<8x8x128xf32>
    %5 = vector.extract_strided_slice %0 {offsets = [0, 0, 0], sizes = [8, 8, 1], strides = [1, 1, 1]} : vector<8x8x8xf32> to vector<8x8x1xf32>
    %6 = vector.extract_strided_slice %4 {offsets = [0, 0, 0], sizes = [8, 1, 128], strides = [1, 1, 1]} : vector<8x8x128xf32> to vector<8x1x128xf32>
    %7 = vector.broadcast %5 : vector<8x8x1xf32> to vector<8x8x128xf32>
    %8 = vector.broadcast %6 : vector<8x1x128xf32> to vector<8x8x128xf32>
    %9 = arith.mulf %7, %8 : vector<8x8x128xf32>
    %10 = vector.extract_strided_slice %0 {offsets = [0, 0, 1], sizes = [8, 8, 1], strides = [1, 1, 1]} : vector<8x8x8xf32> to vector<8x8x1xf32>
    %11 = vector.extract_strided_slice %4 {offsets = [0, 1, 0], sizes = [8, 1, 128], strides = [1, 1, 1]} : vector<8x8x128xf32> to vector<8x1x128xf32>
    %12 = vector.broadcast %10 : vector<8x8x1xf32> to vector<8x8x128xf32>
    %13 = vector.broadcast %11 : vector<8x1x128xf32> to vector<8x8x128xf32>
    %14 = arith.mulf %12, %13 : vector<8x8x128xf32>
    %15 = arith.addf %9, %14 : vector<8x8x128xf32>
    %16 = vector.extract_strided_slice %0 {offsets = [0, 0, 2], sizes = [8, 8, 1], strides = [1, 1, 1]} : vector<8x8x8xf32> to vector<8x8x1xf32>
    %17 = vector.extract_strided_slice %4 {offsets = [0, 2, 0], sizes = [8, 1, 128], strides = [1, 1, 1]} : vector<8x8x128xf32> to vector<8x1x128xf32>
    %18 = vector.broadcast %16 : vector<8x8x1xf32> to vector<8x8x128xf32>
    %19 = vector.broadcast %17 : vector<8x1x128xf32> to vector<8x8x128xf32>
    %20 = arith.mulf %18, %19 : vector<8x8x128xf32>
    %21 = arith.addf %15, %20 : vector<8x8x128xf32>
    %22 = vector.extract_strided_slice %0 {offsets = [0, 0, 3], sizes = [8, 8, 1], strides = [1, 1, 1]} : vector<8x8x8xf32> to vector<8x8x1xf32>
    %23 = vector.extract_strided_slice %4 {offsets = [0, 3, 0], sizes = [8, 1, 128], strides = [1, 1, 1]} : vector<8x8x128xf32> to vector<8x1x128xf32>
    %24 = vector.broadcast %22 : vector<8x8x1xf32> to vector<8x8x128xf32>
    %25 = vector.broadcast %23 : vector<8x1x128xf32> to vector<8x8x128xf32>
    %26 = arith.mulf %24, %25 : vector<8x8x128xf32>
    %27 = arith.addf %21, %26 : vector<8x8x128xf32>
    %28 = vector.extract_strided_slice %0 {offsets = [0, 0, 4], sizes = [8, 8, 1], strides = [1, 1, 1]} : vector<8x8x8xf32> to vector<8x8x1xf32>
    %29 = vector.extract_strided_slice %4 {offsets = [0, 4, 0], sizes = [8, 1, 128], strides = [1, 1, 1]} : vector<8x8x128xf32> to vector<8x1x128xf32>
    %30 = vector.broadcast %28 : vector<8x8x1xf32> to vector<8x8x128xf32>
    %31 = vector.broadcast %29 : vector<8x1x128xf32> to vector<8x8x128xf32>
    %32 = arith.mulf %30, %31 : vector<8x8x128xf32>
    %33 = arith.addf %27, %32 : vector<8x8x128xf32>
    %34 = vector.extract_strided_slice %0 {offsets = [0, 0, 5], sizes = [8, 8, 1], strides = [1, 1, 1]} : vector<8x8x8xf32> to vector<8x8x1xf32>
    %35 = vector.extract_strided_slice %4 {offsets = [0, 5, 0], sizes = [8, 1, 128], strides = [1, 1, 1]} : vector<8x8x128xf32> to vector<8x1x128xf32>
    %36 = vector.broadcast %34 : vector<8x8x1xf32> to vector<8x8x128xf32>
    %37 = vector.broadcast %35 : vector<8x1x128xf32> to vector<8x8x128xf32>
    %38 = arith.mulf %36, %37 : vector<8x8x128xf32>
    %39 = arith.addf %33, %38 : vector<8x8x128xf32>
    %40 = vector.extract_strided_slice %0 {offsets = [0, 0, 6], sizes = [8, 8, 1], strides = [1, 1, 1]} : vector<8x8x8xf32> to vector<8x8x1xf32>
    %41 = vector.extract_strided_slice %4 {offsets = [0, 6, 0], sizes = [8, 1, 128], strides = [1, 1, 1]} : vector<8x8x128xf32> to vector<8x1x128xf32>
    %42 = vector.broadcast %40 : vector<8x8x1xf32> to vector<8x8x128xf32>
    %43 = vector.broadcast %41 : vector<8x1x128xf32> to vector<8x8x128xf32>
    %44 = arith.mulf %42, %43 : vector<8x8x128xf32>
    %45 = arith.addf %39, %44 : vector<8x8x128xf32>
    %46 = vector.extract_strided_slice %0 {offsets = [0, 0, 7], sizes = [8, 8, 1], strides = [1, 1, 1]} : vector<8x8x8xf32> to vector<8x8x1xf32>
    %47 = vector.extract_strided_slice %4 {offsets = [0, 7, 0], sizes = [8, 1, 128], strides = [1, 1, 1]} : vector<8x8x128xf32> to vector<8x1x128xf32>
    %48 = vector.broadcast %46 : vector<8x8x1xf32> to vector<8x8x128xf32>
    %49 = vector.broadcast %47 : vector<8x1x128xf32> to vector<8x8x128xf32>
    %50 = arith.mulf %48, %49 : vector<8x8x128xf32>
    %51 = arith.addf %45, %50 : vector<8x8x128xf32>
    %c0_6 = arith.constant 0 : index
    %c0_7 = arith.constant 0 : index
    %52 = vector.load %arg4[%c0_6, %c0_7] : memref<1x128xf32, #tpu.memory_space<vmem>>, vector<1x128xf32>
    %53 = vector.shape_cast %52 : vector<1x128xf32> to vector<1x1x128xf32>
    %54 = vector.broadcast %53 : vector<1x1x128xf32> to vector<8x8x128xf32>
    %55 = arith.addf %51, %54 : vector<8x8x128xf32>
    %cst_8 = arith.constant 0.000000e+00 : f32
    %56 = vector.broadcast %cst_8 : f32 to vector<8x8x128xf32>
    %57 = arith.maximumf %55, %56 : vector<8x8x128xf32>
    %58 = vector.shape_cast %57 : vector<8x8x128xf32> to vector<64x128xf32>
    %59 = arith.truncf %58 : vector<64x128xf32> to vector<64x128xbf16>
    %c0_9 = arith.constant 0 : index
    %c0_10 = arith.constant 0 : index
    %60 = vector.load %arg5[%c0_9, %c0_10] : memref<128x128xbf16, #tpu.memory_space<vmem>>, vector<128x128xbf16>
    %cst_11 = arith.constant dense<0.000000e+00> : vector<64x128xf32>
    %61 = tpu.matmul %59, %60, %cst_11 {dimension_numbers = #tpu.dot_dimension_numbers<[1], [0], [0], [1], [0, 0, 1, 1], [], []>} : vector<64x128xbf16>, vector<128x128xbf16>, vector<64x128xf32> -> vector<64x128xf32>
    %62 = vector.shape_cast %61 : vector<64x128xf32> to vector<8x8x128xf32>
    %63 = vector.extract_strided_slice %0 {offsets = [0, 0, 0], sizes = [8, 8, 1], strides = [1, 1, 1]} : vector<8x8x8xf32> to vector<8x8x1xf32>
    %64 = vector.extract_strided_slice %62 {offsets = [0, 0, 0], sizes = [8, 1, 128], strides = [1, 1, 1]} : vector<8x8x128xf32> to vector<8x1x128xf32>
    %65 = vector.broadcast %63 : vector<8x8x1xf32> to vector<8x8x128xf32>
    %66 = vector.broadcast %64 : vector<8x1x128xf32> to vector<8x8x128xf32>
    %67 = arith.mulf %65, %66 : vector<8x8x128xf32>
    %68 = vector.extract_strided_slice %0 {offsets = [0, 0, 1], sizes = [8, 8, 1], strides = [1, 1, 1]} : vector<8x8x8xf32> to vector<8x8x1xf32>
    %69 = vector.extract_strided_slice %62 {offsets = [0, 1, 0], sizes = [8, 1, 128], strides = [1, 1, 1]} : vector<8x8x128xf32> to vector<8x1x128xf32>
    %70 = vector.broadcast %68 : vector<8x8x1xf32> to vector<8x8x128xf32>
    %71 = vector.broadcast %69 : vector<8x1x128xf32> to vector<8x8x128xf32>
    %72 = arith.mulf %70, %71 : vector<8x8x128xf32>
    %73 = arith.addf %67, %72 : vector<8x8x128xf32>
    %74 = vector.extract_strided_slice %0 {offsets = [0, 0, 2], sizes = [8, 8, 1], strides = [1, 1, 1]} : vector<8x8x8xf32> to vector<8x8x1xf32>
    %75 = vector.extract_strided_slice %62 {offsets = [0, 2, 0], sizes = [8, 1, 128], strides = [1, 1, 1]} : vector<8x8x128xf32> to vector<8x1x128xf32>
    %76 = vector.broadcast %74 : vector<8x8x1xf32> to vector<8x8x128xf32>
    %77 = vector.broadcast %75 : vector<8x1x128xf32> to vector<8x8x128xf32>
    %78 = arith.mulf %76, %77 : vector<8x8x128xf32>
    %79 = arith.addf %73, %78 : vector<8x8x128xf32>
    %80 = vector.extract_strided_slice %0 {offsets = [0, 0, 3], sizes = [8, 8, 1], strides = [1, 1, 1]} : vector<8x8x8xf32> to vector<8x8x1xf32>
    %81 = vector.extract_strided_slice %62 {offsets = [0, 3, 0], sizes = [8, 1, 128], strides = [1, 1, 1]} : vector<8x8x128xf32> to vector<8x1x128xf32>
    %82 = vector.broadcast %80 : vector<8x8x1xf32> to vector<8x8x128xf32>
    %83 = vector.broadcast %81 : vector<8x1x128xf32> to vector<8x8x128xf32>
    %84 = arith.mulf %82, %83 : vector<8x8x128xf32>
    %85 = arith.addf %79, %84 : vector<8x8x128xf32>
    %86 = vector.extract_strided_slice %0 {offsets = [0, 0, 4], sizes = [8, 8, 1], strides = [1, 1, 1]} : vector<8x8x8xf32> to vector<8x8x1xf32>
    %87 = vector.extract_strided_slice %62 {offsets = [0, 4, 0], sizes = [8, 1, 128], strides = [1, 1, 1]} : vector<8x8x128xf32> to vector<8x1x128xf32>
    %88 = vector.broadcast %86 : vector<8x8x1xf32> to vector<8x8x128xf32>
    %89 = vector.broadcast %87 : vector<8x1x128xf32> to vector<8x8x128xf32>
    %90 = arith.mulf %88, %89 : vector<8x8x128xf32>
    %91 = arith.addf %85, %90 : vector<8x8x128xf32>
    %92 = vector.extract_strided_slice %0 {offsets = [0, 0, 5], sizes = [8, 8, 1], strides = [1, 1, 1]} : vector<8x8x8xf32> to vector<8x8x1xf32>
    %93 = vector.extract_strided_slice %62 {offsets = [0, 5, 0], sizes = [8, 1, 128], strides = [1, 1, 1]} : vector<8x8x128xf32> to vector<8x1x128xf32>
    %94 = vector.broadcast %92 : vector<8x8x1xf32> to vector<8x8x128xf32>
    %95 = vector.broadcast %93 : vector<8x1x128xf32> to vector<8x8x128xf32>
    %96 = arith.mulf %94, %95 : vector<8x8x128xf32>
    %97 = arith.addf %91, %96 : vector<8x8x128xf32>
    %98 = vector.extract_strided_slice %0 {offsets = [0, 0, 6], sizes = [8, 8, 1], strides = [1, 1, 1]} : vector<8x8x8xf32> to vector<8x8x1xf32>
    %99 = vector.extract_strided_slice %62 {offsets = [0, 6, 0], sizes = [8, 1, 128], strides = [1, 1, 1]} : vector<8x8x128xf32> to vector<8x1x128xf32>
    %100 = vector.broadcast %98 : vector<8x8x1xf32> to vector<8x8x128xf32>
    %101 = vector.broadcast %99 : vector<8x1x128xf32> to vector<8x8x128xf32>
    %102 = arith.mulf %100, %101 : vector<8x8x128xf32>
    %103 = arith.addf %97, %102 : vector<8x8x128xf32>
    %104 = vector.extract_strided_slice %0 {offsets = [0, 0, 7], sizes = [8, 8, 1], strides = [1, 1, 1]} : vector<8x8x8xf32> to vector<8x8x1xf32>
    %105 = vector.extract_strided_slice %62 {offsets = [0, 7, 0], sizes = [8, 1, 128], strides = [1, 1, 1]} : vector<8x8x128xf32> to vector<8x1x128xf32>
    %106 = vector.broadcast %104 : vector<8x8x1xf32> to vector<8x8x128xf32>
    %107 = vector.broadcast %105 : vector<8x1x128xf32> to vector<8x8x128xf32>
    %108 = arith.mulf %106, %107 : vector<8x8x128xf32>
    %109 = arith.addf %103, %108 : vector<8x8x128xf32>
    %c0_12 = arith.constant 0 : index
    %c0_13 = arith.constant 0 : index
    %110 = vector.load %arg6[%c0_12, %c0_13] : memref<1x128xf32, #tpu.memory_space<vmem>>, vector<1x128xf32>
    %111 = vector.shape_cast %110 : vector<1x128xf32> to vector<1x1x128xf32>
    %112 = vector.broadcast %111 : vector<1x1x128xf32> to vector<8x8x128xf32>
    %113 = arith.addf %109, %112 : vector<8x8x128xf32>
    %cst_14 = arith.constant 0.000000e+00 : f32
    %114 = vector.broadcast %cst_14 : f32 to vector<8x8x128xf32>
    %115 = arith.maximumf %113, %114 : vector<8x8x128xf32>
    %cst_15 = arith.constant dense<0.000000e+00> : vector<8x128xf32>
    %116 = vector.multi_reduction <add>, %115, %cst_15 [1] : vector<8x8x128xf32> to vector<8x128xf32>
    %c0_16 = arith.constant 0 : index
    %c0_17 = arith.constant 0 : index
    %117 = vector.load %arg7[%c0_16, %c0_17] : memref<1x128xf32, #tpu.memory_space<vmem>>, vector<1x128xf32>
    %118 = vector.broadcast %117 : vector<1x128xf32> to vector<8x128xf32>
    %119 = arith.mulf %116, %118 : vector<8x128xf32>
    %cst_18 = arith.constant dense<0.000000e+00> : vector<8xf32>
    %120 = vector.multi_reduction <add>, %119, %cst_18 [1] : vector<8x128xf32> to vector<8xf32>
    %121 = vector.shape_cast %120 : vector<8xf32> to vector<8x1xf32>
    %c0_19 = arith.constant 0 : index
    %122 = memref.load %arg8[%c0_19] : memref<1xf32, #tpu.memory_space<smem>>
    %123 = vector.broadcast %122 : f32 to vector<8x1xf32>
    %124 = arith.addf %121, %123 : vector<8x1xf32>
    %125 = vector.shape_cast %124 : vector<8x1xf32> to vector<8x1xf32>
    %126 = vector.broadcast %125 : vector<8x1xf32> to vector<8x128xf32>
    %c0_20 = arith.constant 0 : index
    %c0_21 = arith.constant 0 : index
    %127 = vector.load %arg9[%c0_20, %c0_21] : memref<8x128xf32, #tpu.memory_space<vmem>>, vector<8x128xf32>
    tpu.vector_store %arg9[%c0_20, %c0_21], %126 {strides = array<i32>} : memref<8x128xf32, #tpu.memory_space<vmem>>, vector<8x128xf32>,
    return
  }
  func.func @transform_0(%arg0: i32) -> (i32, i32) {
    %c0_i32 = arith.constant 0 : i32
    %c0_i32_0 = arith.constant 0 : i32
    return %arg0, %c0_i32 : i32, i32
  }
  func.func @transform_1(%arg0: i32) -> (i32, i32, i32) {
    %c0_i32 = arith.constant 0 : i32
    %c0_i32_0 = arith.constant 0 : i32
    %c0_i32_1 = arith.constant 0 : i32
    return %arg0, %c0_i32, %c0_i32_0 : i32, i32, i32
  }
  func.func @transform_2(%arg0: i32) -> (i32, i32) {
    %c0_i32 = arith.constant 0 : i32
    %c0_i32_0 = arith.constant 0 : i32
    %c0_i32_1 = arith.constant 0 : i32
    return %c0_i32, %c0_i32_0 : i32, i32
  }
  func.func @transform_3(%arg0: i32) -> (i32, i32) {
    %c0_i32 = arith.constant 0 : i32
    %c0_i32_0 = arith.constant 0 : i32
    %c0_i32_1 = arith.constant 0 : i32
    return %c0_i32, %c0_i32_0 : i32, i32
  }
  func.func @transform_4(%arg0: i32) -> (i32, i32) {
    %c0_i32 = arith.constant 0 : i32
    %c0_i32_0 = arith.constant 0 : i32
    %c0_i32_1 = arith.constant 0 : i32
    return %c0_i32, %c0_i32_0 : i32, i32
  }
  func.func @transform_5(%arg0: i32) -> (i32, i32) {
    %c0_i32 = arith.constant 0 : i32
    %c0_i32_0 = arith.constant 0 : i32
    %c0_i32_1 = arith.constant 0 : i32
    return %c0_i32, %c0_i32_0 : i32, i32
  }
  func.func @transform_6(%arg0: i32) -> (i32, i32) {
    %c0_i32 = arith.constant 0 : i32
    %c0_i32_0 = arith.constant 0 : i32
    %c0_i32_1 = arith.constant 0 : i32
    return %c0_i32, %c0_i32_0 : i32, i32
  }
  func.func @transform_7(%arg0: i32) -> i32 {
    %c0_i32 = arith.constant 0 : i32
    %c0_i32_0 = arith.constant 0 : i32
    return %c0_i32 : i32
  }
  func.func @transform_8(%arg0: i32) -> (i32, i32) {
    %c0_i32 = arith.constant 0 : i32
    %c0_i32_0 = arith.constant 0 : i32
    return %arg0, %c0_i32 : i32, i32
  }
}

module attributes {stable_mosaic.version = 11 : i64} {
  func.func @gnn_critic_kernel(%arg0: i32, %arg1: memref<64x8xbf16, #tpu.memory_space<vmem>>, %arg2: memref<8x8x8xf32, #tpu.memory_space<vmem>>, %arg3: memref<8x128xbf16, #tpu.memory_space<vmem>>, %arg4: memref<1x128xf32, #tpu.memory_space<vmem>>, %arg5: memref<128x128xbf16, #tpu.memory_space<vmem>>, %arg6: memref<1x128xf32, #tpu.memory_space<vmem>>, %arg7: memref<1x128xf32, #tpu.memory_space<vmem>>, %arg8: memref<1xf32, #tpu.memory_space<smem>>, %arg9: memref<8x128xf32, #tpu.memory_space<vmem>>) attributes {dimension_semantics = [#tpu.dimension_semantics<parallel>], iteration_bounds = array<i64: 1>, scalar_prefetch = 0 : i64, scratch_operands = 0 : i64, tpu.core_type = #tpu.core_type<tc>, window_params = [{transform_indices = @transform_0, window_bounds = array<i64: 64, 8>}, {transform_indices = @transform_1, window_bounds = array<i64: 8, 8, 8>}, {pipeline_mode = #tpu.pipeline_mode<synchronous>, transform_indices = @transform_2, window_bounds = array<i64: 8, 128>}, {pipeline_mode = #tpu.pipeline_mode<synchronous>, transform_indices = @transform_3, window_bounds = array<i64: 1, 128>}, {pipeline_mode = #tpu.pipeline_mode<synchronous>, transform_indices = @transform_4, window_bounds = array<i64: 128, 128>}, {pipeline_mode = #tpu.pipeline_mode<synchronous>, transform_indices = @transform_5, window_bounds = array<i64: 1, 128>}, {pipeline_mode = #tpu.pipeline_mode<synchronous>, transform_indices = @transform_6, window_bounds = array<i64: 1, 128>}, {transform_indices = @transform_7, window_bounds = array<i64: 1>}, {transform_indices = @transform_8, window_bounds = array<i64: 8, 128>}]} {
    %c0 = arith.constant 0 : index
    %c0_0 = arith.constant 0 : index
    %c0_1 = arith.constant 0 : index
    %0 = vector.load %arg2[%c0, %c0_0, %c0_1] : memref<8x8x8xf32, #tpu.memory_space<vmem>>, vector<8x8x8xf32>
    %c0_2 = arith.constant 0 : index
    %c0_3 = arith.constant 0 : index
    %1 = vector.load %arg1[%c0_2, %c0_3] : memref<64x8xbf16, #tpu.memory_space<vmem>>, vector<64x8xbf16>
    %c0_4 = arith.constant 0 : index
    %c0_5 = arith.constant 0 : index
    %2 = vector.load %arg3[%c0_4, %c0_5] : memref<8x128xbf16, #tpu.memory_space<vmem>>, vector<8x128xbf16>
    %cst = arith.constant dense<0.000000e+00> : vector<64x128xf32>
    %3 = tpu.matmul %1, %2, %cst {dimension_numbers = #tpu.dot_dimension_numbers<[1], [0], [0], [1], [0, 0, 1, 1], [], []>} : vector<64x8xbf16>, vector<8x128xbf16>, vector<64x128xf32> -> vector<64x128xf32>
    %4 = vector.shape_cast %3 : vector<64x128xf32> to vector<8x8x128xf32>
    %5 = vector.extract_strided_slice %0 {offsets = [0, 0, 0], sizes = [8, 8, 1], strides = [1, 1, 1]} : vector<8x8x8xf32> to vector<8x8x1xf32>
    %6 = vector.extract_strided_slice %4 {offsets = [0, 0, 0], sizes = [8, 1, 128], strides = [1, 1, 1]} : vector<8x8x128xf32> to vector<8x1x128xf32>
    %7 = vector.broadcast %5 : vector<8x8x1xf32> to vector<8x8x128xf32>
    %8 = vector.broadcast %6 : vector<8x1x128xf32> to vector<8x8x128xf32>
    %9 = arith.mulf %7, %8 : vector<8x8x128xf32>
    %10 = vector.extract_strided_slice %0 {offsets = [0, 0, 1], sizes = [8, 8, 1], strides = [1, 1, 1]} : vector<8x8x8xf32> to vector<8x8x1xf32>
    %11 = vector.extract_strided_slice %4 {offsets = [0, 1, 0], sizes = [8, 1, 128], strides = [1, 1, 1]} : vector<8x8x128xf32> to vector<8x1x128xf32>
    %12 = vector.broadcast %10 : vector<8x8x1xf32> to vector<8x8x128xf32>
    %13 = vector.broadcast %11 : vector<8x1x128xf32> to vector<8x8x128xf32>
    %14 = arith.mulf %12, %13 : vector<8x8x128xf32>
    %15 = arith.addf %9, %14 : vector<8x8x128xf32>
    %16 = vector.extract_strided_slice %0 {offsets = [0, 0, 2], sizes = [8, 8, 1], strides = [1, 1, 1]} : vector<8x8x8xf32> to vector<8x8x1xf32>
    %17 = vector.extract_strided_slice %4 {offsets = [0, 2, 0], sizes = [8, 1, 128], strides = [1, 1, 1]} : vector<8x8x128xf32> to vector<8x1x128xf32>
    %18 = vector.broadcast %16 : vector<8x8x1xf32> to vector<8x8x128xf32>
    %19 = vector.broadcast %17 : vector<8x1x128xf32> to vector<8x8x128xf32>
    %20 = arith.mulf %18, %19 : vector<8x8x128xf32>
    %21 = arith.addf %15, %20 : vector<8x8x128xf32>
    %22 = vector.extract_strided_slice %0 {offsets = [0, 0, 3], sizes = [8, 8, 1], strides = [1, 1, 1]} : vector<8x8x8xf32> to vector<8x8x1xf32>
    %23 = vector.extract_strided_slice %4 {offsets = [0, 3, 0], sizes = [8, 1, 128], strides = [1, 1, 1]} : vector<8x8x128xf32> to vector<8x1x128xf32>
    %24 = vector.broadcast %22 : vector<8x8x1xf32> to vector<8x8x128xf32>
    %25 = vector.broadcast %23 : vector<8x1x128xf32> to vector<8x8x128xf32>
    %26 = arith.mulf %24, %25 : vector<8x8x128xf32>
    %27 = arith.addf %21, %26 : vector<8x8x128xf32>
    %28 = vector.extract_strided_slice %0 {offsets = [0, 0, 4], sizes = [8, 8, 1], strides = [1, 1, 1]} : vector<8x8x8xf32> to vector<8x8x1xf32>
    %29 = vector.extract_strided_slice %4 {offsets = [0, 4, 0], sizes = [8, 1, 128], strides = [1, 1, 1]} : vector<8x8x128xf32> to vector<8x1x128xf32>
    %30 = vector.broadcast %28 : vector<8x8x1xf32> to vector<8x8x128xf32>
    %31 = vector.broadcast %29 : vector<8x1x128xf32> to vector<8x8x128xf32>
    %32 = arith.mulf %30, %31 : vector<8x8x128xf32>
    %33 = arith.addf %27, %32 : vector<8x8x128xf32>
    %34 = vector.extract_strided_slice %0 {offsets = [0, 0, 5], sizes = [8, 8, 1], strides = [1, 1, 1]} : vector<8x8x8xf32> to vector<8x8x1xf32>
    %35 = vector.extract_strided_slice %4 {offsets = [0, 5, 0], sizes = [8, 1, 128], strides = [1, 1, 1]} : vector<8x8x128xf32> to vector<8x1x128xf32>
    %36 = vector.broadcast %34 : vector<8x8x1xf32> to vector<8x8x128xf32>
    %37 = vector.broadcast %35 : vector<8x1x128xf32> to vector<8x8x128xf32>
    %38 = arith.mulf %36, %37 : vector<8x8x128xf32>
    %39 = arith.addf %33, %38 : vector<8x8x128xf32>
    %40 = vector.extract_strided_slice %0 {offsets = [0, 0, 6], sizes = [8, 8, 1], strides = [1, 1, 1]} : vector<8x8x8xf32> to vector<8x8x1xf32>
    %41 = vector.extract_strided_slice %4 {offsets = [0, 6, 0], sizes = [8, 1, 128], strides = [1, 1, 1]} : vector<8x8x128xf32> to vector<8x1x128xf32>
    %42 = vector.broadcast %40 : vector<8x8x1xf32> to vector<8x8x128xf32>
    %43 = vector.broadcast %41 : vector<8x1x128xf32> to vector<8x8x128xf32>
    %44 = arith.mulf %42, %43 : vector<8x8x128xf32>
    %45 = arith.addf %39, %44 : vector<8x8x128xf32>
    %46 = vector.extract_strided_slice %0 {offsets = [0, 0, 7], sizes = [8, 8, 1], strides = [1, 1, 1]} : vector<8x8x8xf32> to vector<8x8x1xf32>
    %47 = vector.extract_strided_slice %4 {offsets = [0, 7, 0], sizes = [8, 1, 128], strides = [1, 1, 1]} : vector<8x8x128xf32> to vector<8x1x128xf32>
    %48 = vector.broadcast %46 : vector<8x8x1xf32> to vector<8x8x128xf32>
    %49 = vector.broadcast %47 : vector<8x1x128xf32> to vector<8x8x128xf32>
    %50 = arith.mulf %48, %49 : vector<8x8x128xf32>
    %51 = arith.addf %45, %50 : vector<8x8x128xf32>
    %c0_6 = arith.constant 0 : index
    %c0_7 = arith.constant 0 : index
    %52 = vector.load %arg4[%c0_6, %c0_7] : memref<1x128xf32, #tpu.memory_space<vmem>>, vector<1x128xf32>
    %53 = vector.shape_cast %52 : vector<1x128xf32> to vector<1x1x128xf32>
    %54 = vector.broadcast %53 : vector<1x1x128xf32> to vector<8x8x128xf32>
    %55 = arith.addf %51, %54 : vector<8x8x128xf32>
    %cst_8 = arith.constant 0.000000e+00 : f32
    %56 = vector.broadcast %cst_8 : f32 to vector<8x8x128xf32>
    %57 = arith.maximumf %55, %56 : vector<8x8x128xf32>
    %58 = vector.shape_cast %57 : vector<8x8x128xf32> to vector<64x128xf32>
    %59 = arith.truncf %58 : vector<64x128xf32> to vector<64x128xbf16>
    %c0_9 = arith.constant 0 : index
    %c0_10 = arith.constant 0 : index
    %60 = vector.load %arg5[%c0_9, %c0_10] : memref<128x128xbf16, #tpu.memory_space<vmem>>, vector<128x128xbf16>
    %cst_11 = arith.constant dense<0.000000e+00> : vector<64x128xf32>
    %61 = tpu.matmul %59, %60, %cst_11 {dimension_numbers = #tpu.dot_dimension_numbers<[1], [0], [0], [1], [0, 0, 1, 1], [], []>} : vector<64x128xbf16>, vector<128x128xbf16>, vector<64x128xf32> -> vector<64x128xf32>
    %62 = vector.shape_cast %61 : vector<64x128xf32> to vector<8x8x128xf32>
    %63 = vector.extract_strided_slice %0 {offsets = [0, 0, 0], sizes = [8, 8, 1], strides = [1, 1, 1]} : vector<8x8x8xf32> to vector<8x8x1xf32>
    %64 = vector.extract_strided_slice %62 {offsets = [0, 0, 0], sizes = [8, 1, 128], strides = [1, 1, 1]} : vector<8x8x128xf32> to vector<8x1x128xf32>
    %65 = vector.broadcast %63 : vector<8x8x1xf32> to vector<8x8x128xf32>
    %66 = vector.broadcast %64 : vector<8x1x128xf32> to vector<8x8x128xf32>
    %67 = arith.mulf %65, %66 : vector<8x8x128xf32>
    %68 = vector.extract_strided_slice %0 {offsets = [0, 0, 1], sizes = [8, 8, 1], strides = [1, 1, 1]} : vector<8x8x8xf32> to vector<8x8x1xf32>
    %69 = vector.extract_strided_slice %62 {offsets = [0, 1, 0], sizes = [8, 1, 128], strides = [1, 1, 1]} : vector<8x8x128xf32> to vector<8x1x128xf32>
    %70 = vector.broadcast %68 : vector<8x8x1xf32> to vector<8x8x128xf32>
    %71 = vector.broadcast %69 : vector<8x1x128xf32> to vector<8x8x128xf32>
    %72 = arith.mulf %70, %71 : vector<8x8x128xf32>
    %73 = arith.addf %67, %72 : vector<8x8x128xf32>
    %74 = vector.extract_strided_slice %0 {offsets = [0, 0, 2], sizes = [8, 8, 1], strides = [1, 1, 1]} : vector<8x8x8xf32> to vector<8x8x1xf32>
    %75 = vector.extract_strided_slice %62 {offsets = [0, 2, 0], sizes = [8, 1, 128], strides = [1, 1, 1]} : vector<8x8x128xf32> to vector<8x1x128xf32>
    %76 = vector.broadcast %74 : vector<8x8x1xf32> to vector<8x8x128xf32>
    %77 = vector.broadcast %75 : vector<8x1x128xf32> to vector<8x8x128xf32>
    %78 = arith.mulf %76, %77 : vector<8x8x128xf32>
    %79 = arith.addf %73, %78 : vector<8x8x128xf32>
    %80 = vector.extract_strided_slice %0 {offsets = [0, 0, 3], sizes = [8, 8, 1], strides = [1, 1, 1]} : vector<8x8x8xf32> to vector<8x8x1xf32>
    %81 = vector.extract_strided_slice %62 {offsets = [0, 3, 0], sizes = [8, 1, 128], strides = [1, 1, 1]} : vector<8x8x128xf32> to vector<8x1x128xf32>
    %82 = vector.broadcast %80 : vector<8x8x1xf32> to vector<8x8x128xf32>
    %83 = vector.broadcast %81 : vector<8x1x128xf32> to vector<8x8x128xf32>
    %84 = arith.mulf %82, %83 : vector<8x8x128xf32>
    %85 = arith.addf %79, %84 : vector<8x8x128xf32>
    %86 = vector.extract_strided_slice %0 {offsets = [0, 0, 4], sizes = [8, 8, 1], strides = [1, 1, 1]} : vector<8x8x8xf32> to vector<8x8x1xf32>
    %87 = vector.extract_strided_slice %62 {offsets = [0, 4, 0], sizes = [8, 1, 128], strides = [1, 1, 1]} : vector<8x8x128xf32> to vector<8x1x128xf32>
    %88 = vector.broadcast %86 : vector<8x8x1xf32> to vector<8x8x128xf32>
    %89 = vector.broadcast %87 : vector<8x1x128xf32> to vector<8x8x128xf32>
    %90 = arith.mulf %88, %89 : vector<8x8x128xf32>
    %91 = arith.addf %85, %90 : vector<8x8x128xf32>
    %92 = vector.extract_strided_slice %0 {offsets = [0, 0, 5], sizes = [8, 8, 1], strides = [1, 1, 1]} : vector<8x8x8xf32> to vector<8x8x1xf32>
    %93 = vector.extract_strided_slice %62 {offsets = [0, 5, 0], sizes = [8, 1, 128], strides = [1, 1, 1]} : vector<8x8x128xf32> to vector<8x1x128xf32>
    %94 = vector.broadcast %92 : vector<8x8x1xf32> to vector<8x8x128xf32>
    %95 = vector.broadcast %93 : vector<8x1x128xf32> to vector<8x8x128xf32>
    %96 = arith.mulf %94, %95 : vector<8x8x128xf32>
    %97 = arith.addf %91, %96 : vector<8x8x128xf32>
    %98 = vector.extract_strided_slice %0 {offsets = [0, 0, 6], sizes = [8, 8, 1], strides = [1, 1, 1]} : vector<8x8x8xf32> to vector<8x8x1xf32>
    %99 = vector.extract_strided_slice %62 {offsets = [0, 6, 0], sizes = [8, 1, 128], strides = [1, 1, 1]} : vector<8x8x128xf32> to vector<8x1x128xf32>
    %100 = vector.broadcast %98 : vector<8x8x1xf32> to vector<8x8x128xf32>
    %101 = vector.broadcast %99 : vector<8x1x128xf32> to vector<8x8x128xf32>
    %102 = arith.mulf %100, %101 : vector<8x8x128xf32>
    %103 = arith.addf %97, %102 : vector<8x8x128xf32>
    %104 = vector.extract_strided_slice %0 {offsets = [0, 0, 7], sizes = [8, 8, 1], strides = [1, 1, 1]} : vector<8x8x8xf32> to vector<8x8x1xf32>
    %105 = vector.extract_strided_slice %62 {offsets = [0, 7, 0], sizes = [8, 1, 128], strides = [1, 1, 1]} : vector<8x8x128xf32> to vector<8x1x128xf32>
    %106 = vector.broadcast %104 : vector<8x8x1xf32> to vector<8x8x128xf32>
    %107 = vector.broadcast %105 : vector<8x1x128xf32> to vector<8x8x128xf32>
    %108 = arith.mulf %106, %107 : vector<8x8x128xf32>
    %109 = arith.addf %103, %108 : vector<8x8x128xf32>
    %c0_12 = arith.constant 0 : index
    %c0_13 = arith.constant 0 : index
    %110 = vector.load %arg6[%c0_12, %c0_13] : memref<1x128xf32, #tpu.memory_space<vmem>>, vector<1x128xf32>
    %111 = vector.shape_cast %110 : vector<1x128xf32> to vector<1x1x128xf32>
    %112 = vector.broadcast %111 : vector<1x1x128xf32> to vector<8x8x128xf32>
    %113 = arith.addf %109, %112 : vector<8x8x128xf32>
    %cst_14 = arith.constant 0.000000e+00 : f32
    %114 = vector.broadcast %cst_14 : f32 to vector<8x8x128xf32>
    %115 = arith.maximumf %113, %114 : vector<8x8x128xf32>
    %cst_15 = arith.constant dense<0.000000e+00> : vector<8x128xf32>
    %116 = vector.multi_reduction <add>, %115, %cst_15 [1] : vector<8x8x128xf32> to vector<8x128xf32>
    %c0_16 = arith.constant 0 : index
    %c0_17 = arith.constant 0 : index
    %117 = vector.load %arg7[%c0_16, %c0_17] : memref<1x128xf32, #tpu.memory_space<vmem>>, vector<1x128xf32>
    %118 = vector.broadcast %117 : vector<1x128xf32> to vector<8x128xf32>
    %119 = arith.mulf %116, %118 : vector<8x128xf32>
    %cst_18 = arith.constant dense<0.000000e+00> : vector<8xf32>
    %120 = vector.multi_reduction <add>, %119, %cst_18 [1] : vector<8x128xf32> to vector<8xf32>
    %121 = vector.shape_cast %120 : vector<8xf32> to vector<8x1xf32>
    %c0_19 = arith.constant 0 : index
    %122 = memref.load %arg8[%c0_19] : memref<1xf32, #tpu.memory_space<smem>>
    %123 = vector.broadcast %122 : f32 to vector<8x1xf32>
    %124 = arith.addf %121, %123 : vector<8x1xf32>
    %125 = vector.shape_cast %124 : vector<8x1xf32> to vector<8x1xf32>
    %126 = vector.broadcast %125 : vector<8x1xf32> to vector<8x128xf32>
    %c0_20 = arith.constant 0 : index
    %c0_21 = arith.constant 0 : index
    %127 = vector.load %arg9[%c0_20, %c0_21] : memref<8x128xf32, #tpu.memory_space<vmem>>, vector<8x128xf32>
    tpu.vector_store %arg9[%c0_20, %c0_21], %126 {strides = array<i32>} : memref<8x128xf32, #tpu.memory_space<vmem>>, vector<8x128xf32>,
    return
  }
  func.func @transform_0(%arg0: i32) -> (i32, i32) {
    %c0_i32 = arith.constant 0 : i32
    %c0_i32_0 = arith.constant 0 : i32
    return %arg0, %c0_i32 : i32, i32
  }
  func.func @transform_1(%arg0: i32) -> (i32, i32, i32) {
    %c0_i32 = arith.constant 0 : i32
    %c0_i32_0 = arith.constant 0 : i32
    %c0_i32_1 = arith.constant 0 : i32
    return %arg0, %c0_i32, %c0_i32_0 : i32, i32, i32
  }
  func.func @transform_2(%arg0: i32) -> (i32, i32) {
    %c0_i32 = arith.constant 0 : i32
    %c0_i32_0 = arith.constant 0 : i32
    %c0_i32_1 = arith.constant 0 : i32
    return %c0_i32, %c0_i32_0 : i32, i32
  }
  func.func @transform_3(%arg0: i32) -> (i32, i32) {
    %c0_i32 = arith.constant 0 : i32
    %c0_i32_0 = arith.constant 0 : i32
    %c0_i32_1 = arith.constant 0 : i32
    return %c0_i32, %c0_i32_0 : i32, i32
  }
  func.func @transform_4(%arg0: i32) -> (i32, i32) {
    %c0_i32 = arith.constant 0 : i32
    %c0_i32_0 = arith.constant 0 : i32
    %c0_i32_1 = arith.constant 0 : i32
    return %c0_i32, %c0_i32_0 : i32, i32
  }
  func.func @transform_5(%arg0: i32) -> (i32, i32) {
    %c0_i32 = arith.constant 0 : i32
    %c0_i32_0 = arith.constant 0 : i32
    %c0_i32_1 = arith.constant 0 : i32
    return %c0_i32, %c0_i32_0 : i32, i32
  }
  func.func @transform_6(%arg0: i32) -> (i32, i32) {
    %c0_i32 = arith.constant 0 : i32
    %c0_i32_0 = arith.constant 0 : i32
    %c0_i32_1 = arith.constant 0 : i32
    return %c0_i32, %c0_i32_0 : i32, i32
  }
  func.func @transform_7(%arg0: i32) -> i32 {
    %c0_i32 = arith.constant 0 : i32
    %c0_i32_0 = arith.constant 0 : i32
    return %c0_i32 : i32
  }
  func.func @transform_8(%arg0: i32) -> (i32, i32) {
    %c0_i32 = arith.constant 0 : i32
    %c0_i32_0 = arith.constant 0 : i32
    return %arg0, %c0_i32 : i32, i32
  }
}

</mosaic_0001>

<llo_original>
// kernel: tpu_custom_call.1
$region0: #{tpu_custom_call.1}
  #allocation0 [shape = 'u32[]', space=smem, size = 0x4, offset = 0x4, fixed_abs, tag = 'smem constant byte address 0x4 - core index']
  #allocation1 [shape = 'u32[144,128]{1,0:T(1,128)}', space=vmem, size = 0x12000, scoped, tag = 'internal scratch']
  #allocation2 [shape = 'f32[1]{0:T(128)S(6)}', space=smem, size = 0x200, scoped, tag = 'scoped memory for tpu_custom_call.1']
  %s0 = inlined_call_operand.vmem [shape: bf16[64,8], index: 0, kind: input, shape index: {}]
  %s1 = inlined_call_operand.hbm [shape: f32[8,8,8], index: 1, kind: input, shape index: {}]
  %s2 = inlined_call_operand.vmem [shape: bf16[8,128], index: 2, kind: input, shape index: {}]
  %s3 = inlined_call_operand.vmem [shape: f32[1,128], index: 3, kind: input, shape index: {}]
  %s4 = inlined_call_operand.hbm [shape: bf16[128,128], index: 4, kind: input, shape index: {}]
  %s5 = inlined_call_operand.vmem [shape: f32[1,128], index: 5, kind: input, shape index: {}]
  %s6 = inlined_call_operand.vmem [shape: f32[1,128], index: 6, kind: input, shape index: {}]
  %s7 = inlined_call_operand.<no memory space> [shape: f32[1], index: 7, kind: input, shape index: {}]
  %s8 = inlined_call_operand.hbm [shape: f32[8,128], index: 8, kind: output, shape index: {}]
  %s9 = sld [smem:[#allocation0]]
  $region50: #{tpu_custom_call.1} parent=0
    _
  %s11 = ssub.s32 1, %s9
  %s12 = scalar_select 0, %s11, %s9
  %13 = sst [smem:[#allocation2]] %s7
  $region1: #{tpu_custom_call.1} parent=0
    #allocation3 [shape = 'u8[32768]{0}', space=vmem, size = 0x8000, scoped, tag = 'input window, operand 1, single buffered']
    #allocation4 [shape = 's32[1]{0}', space=sflag, size = 0x4, scoped, tag = 'scoped memory for tpu_custom_call.1']
    #allocation5 [shape = 's32[1]{0}', space=sflag, size = 0x4, scoped, tag = 'scoped memory for tpu_custom_call.1']
    #allocation6 [shape = 'u8[32768]{0}', space=vmem, size = 0x8000, scoped, tag = 'input window, operand 4, single buffered']
    #allocation7 [shape = 's32[1]{0}', space=sflag, size = 0x4, scoped, tag = 'scoped memory for tpu_custom_call.1']
    #allocation8 [shape = 'u8[4096]{0}', space=vmem, size = 0x1000, scoped, tag = 'output window, operand 0, single buffered']
    %14 = vsyncpa [#allocation4], 0
    %15 = vsyncpa [#allocation7], 0
    %16 = vsyncpa [#allocation5], 0
    // Predicated region
    $region2: #{tpu_custom_call.1} parent=1 // pred_check
      _
    $region3: #{tpu_custom_call.1} parent=1 // pred_check_branch
      %18 = sbr.rel (0) target = $region5
    $region4: #{tpu_custom_call.1} parent=1 // pred_region
      _
    $region5: #{tpu_custom_call.1} parent=1 // pred_fallthru
      _
    // Predicated region
    $region6: #{tpu_custom_call.1} parent=1 // pred_check
      _
    $region7: #{tpu_custom_call.1} parent=1 // pred_check_branch
      %20 = sbr.rel (0) target = $region9
    $region8: #{tpu_custom_call.1} parent=1 // pred_region
      %s22 = ssub.s32 1024, 1024
      %23 = vsyncadd [#allocation4], %s22
      %s24 = sshll.u32 [#allocation3], 4
      %s25 = int_to_ptr.vmem [resolvable:$true] %s24
      %30 = dma.hbm_to_vmem [thread:$0]  %s1, 1024, %s25, [#allocation4], 128, 128, 8
    $region9: #{tpu_custom_call.1} parent=1 // pred_fallthru
      _
    // Predicated region
    $region10: #{tpu_custom_call.1} parent=1 // pred_check
      _
    $region11: #{tpu_custom_call.1} parent=1 // pred_check_branch
      %32 = sbr.rel (0) target = $region13
    $region12: #{tpu_custom_call.1} parent=1 // pred_region
      _
    $region13: #{tpu_custom_call.1} parent=1 // pred_fallthru
      _
    // Predicated region
    $region14: #{tpu_custom_call.1} parent=1 // pred_check
      _
    $region15: #{tpu_custom_call.1} parent=1 // pred_check_branch
      %34 = sbr.rel (0) target = $region17
    $region16: #{tpu_custom_call.1} parent=1 // pred_region
      _
    $region17: #{tpu_custom_call.1} parent=1 // pred_fallthru
      _
    // Predicated region
    $region18: #{tpu_custom_call.1} parent=1 // pred_check
      _
    $region19: #{tpu_custom_call.1} parent=1 // pred_check_branch
      %36 = sbr.rel (0) target = $region21
    $region20: #{tpu_custom_call.1} parent=1 // pred_region
      %s38 = ssub.s32 1024, 1024
      %39 = vsyncadd [#allocation7], %s38
      %s40 = sshll.u32 [#allocation6], 4
      %s41 = int_to_ptr.vmem [resolvable:$true] %s40
      %46 = dma.hbm_to_vmem [thread:$0]  %s4, 1024, %s41, [#allocation7], 64, 64, 4
    $region21: #{tpu_custom_call.1} parent=1 // pred_fallthru
      _
    // Predicated region
    $region22: #{tpu_custom_call.1} parent=1 // pred_check
      _
    $region23: #{tpu_custom_call.1} parent=1 // pred_check_branch
      %48 = sbr.rel (0) target = $region25
    $region24: #{tpu_custom_call.1} parent=1 // pred_region
      _
    $region25: #{tpu_custom_call.1} parent=1 // pred_fallthru
      _
    // Predicated region
    $region26: #{tpu_custom_call.1} parent=1 // pred_check
      _
    $region27: #{tpu_custom_call.1} parent=1 // pred_check_branch
      %50 = sbr.rel (0) target = $region29
    $region28: #{tpu_custom_call.1} parent=1 // pred_region
      _
    $region29: #{tpu_custom_call.1} parent=1 // pred_fallthru
      _
    // Predicated region
    $region30: #{tpu_custom_call.1} parent=1 // pred_check
      _
    $region31: #{tpu_custom_call.1} parent=1 // pred_check_branch
      %52 = sbr.rel (0) target = $region33
    $region32: #{tpu_custom_call.1} parent=1 // pred_region
      _
    $region33: #{tpu_custom_call.1} parent=1 // pred_fallthru
      _
    // Predicated region
    $region34: #{tpu_custom_call.1} parent=1 // pred_check
      _
    $region35: #{tpu_custom_call.1} parent=1 // pred_check_branch
      %54 = sbr.rel (0) target = $region37
    $region36: #{tpu_custom_call.1} parent=1 // pred_region
      %55 = dma.done [#allocation4], 1024
    $region37: #{tpu_custom_call.1} parent=1 // pred_fallthru
      _
    // Predicated region
    $region38: #{tpu_custom_call.1} parent=1 // pred_check
      _
    $region39: #{tpu_custom_call.1} parent=1 // pred_check_branch
      %57 = sbr.rel (0) target = $region41
    $region40: #{tpu_custom_call.1} parent=1 // pred_region
      %58 = dma.done [#allocation7], 1024
    $region41: #{tpu_custom_call.1} parent=1 // pred_fallthru
      _
    %v60 = vld [vmem:[#allocation3] sm:$0xff]
    %v61 = vld [vmem:[#allocation3 + $0x8] sm:$0xff]
    %v62 = vld [vmem:[#allocation3 + $0x10] sm:$0xff]
    %v63 = vld [vmem:[#allocation3 + $0x18] sm:$0xff]
    %v64 = vld [vmem:[#allocation3 + $0x20] sm:$0xff]
    %v65 = vld [vmem:[#allocation3 + $0x28] sm:$0xff]
    %v66 = vld [vmem:[#allocation3 + $0x30] sm:$0xff]
    %v67 = vld [vmem:[#allocation3 + $0x38] sm:$0xff]
    %v68 = vld [vmem:[%s0] sm:$0xf]
    %v69 = vld [vmem:[%s0 + $0x4] sm:$0xf]
    %v70 = vld [vmem:[%s0 + $0x8] sm:$0xf]
    %v71 = vld [vmem:[%s0 + $0xc] sm:$0xf]
    %v72 = vld [vmem:[%s0 + $0x10] sm:$0xf]
    %v73 = vld [vmem:[%s0 + $0x14] sm:$0xf]
    %v74 = vld [vmem:[%s0 + $0x18] sm:$0xf]
    %v75 = vld [vmem:[%s0 + $0x1c] sm:$0xf]
    %v76 = vld [vmem:[%s2] sm:$0xf]
    %v85 = vunpack.c.l.b16 %v68
    %v86 = vunpack.c.l.b16 %v69
    %v87 = vunpack.c.l.b16 %v70
    %v88 = vunpack.c.l.b16 %v71
    %v89 = vunpack.c.l.b16 %v72
    %v90 = vunpack.c.l.b16 %v73
    %v91 = vunpack.c.l.b16 %v74
    %v92 = vunpack.c.l.b16 %v75
    %v93 = vpack.c.b16 %v86, %v85
    %v94 = vpack.c.b16 %v88, %v87
    %v95 = vpack.c.b16 %v90, %v89
    %v96 = vpack.c.b16 %v92, %v91
    %vm97 = vcmask 64512
    %v99 = vsel %vm97, %v93, 0
    %v102 = vsel %vm97, %v94, 0
    %v105 = vsel %vm97, %v95, 0
    %v108 = vsel %vm97, %v96, 0
    %vm110 = vcmask 1043456
    %v112 = vsel %vm110, %v76, 0
    %114 = vmatprep.subr.bf16.mxu0 0
    %115 = vmatpush1.bf16.msra.mxu0 %v112
    %116 = vmatprep.subr.bf16.mxu0 0
    %117 = vmatpush1.bf16.msra.mxu0 0
    %118 = vmatprep.subr.bf16.mxu0 0
    %119 = vmatpush1.bf16.msra.mxu0 0
    %120 = vmatprep.subr.bf16.mxu0 0
    %121 = vmatpush1.bf16.msra.mxu0 0
    %122 = vmatprep.subr.bf16.mxu0 0
    %123 = vmatpush1.bf16.msra.mxu0 0
    %124 = vmatprep.subr.bf16.mxu0 0
    %125 = vmatpush1.bf16.msra.mxu0 0
    %126 = vmatprep.subr.bf16.mxu0 0
    %127 = vmatpush1.bf16.msra.mxu0 0
    %128 = vmatprep.subr.bf16.mxu0 0
    %129 = vmatpush1.bf16.msra.mxu0 0
    %130 = vmatprep.subr.bf16.mxu0 0
    %131 = vmatpush1.bf16.msra.mxu0 0
    %132 = vmatprep.subr.bf16.mxu0 0
    %133 = vmatpush1.bf16.msra.mxu0 0
    %134 = vmatprep.subr.bf16.mxu0 0
    %135 = vmatpush1.bf16.msra.mxu0 0
    %136 = vmatprep.subr.bf16.mxu0 0
    %137 = vmatpush1.bf16.msra.mxu0 0
    %138 = vmatprep.subr.bf16.mxu0 0
    %139 = vmatpush1.bf16.msra.mxu0 0
    %140 = vmatprep.subr.bf16.mxu0 0
    %141 = vmatpush1.bf16.msra.mxu0 0
    %142 = vmatprep.subr.bf16.mxu0 0
    %143 = vmatpush1.bf16.msra.mxu0 0
    %144 = vmatprep.subr.bf16.mxu0 0
    %145 = vmatpush1.bf16.msra.mxu0 0
    %146 = vmatprep.mubr.bf16.mxu0 0
    %147 = vmatmul.mubr.bf16.gmra.mrb[0].mxu0 %v99
    %v148 = vpop.f32.mrb[0].mxu0
    %v149 = vadd.f32 0.0, %v148
    %v150 = vpop.f32.mrb[0].mxu0
    %v151 = vpop.f32.mrb[0].mxu0
    %v152 = vadd.f32 0.0, %v151
    %v153 = vpop.f32.mrb[0].mxu0
    %154 = vmatprep.mubr.bf16.mxu0 0
    %155 = vmatmul.mubr.bf16.gmra.mrb[0].mxu0 %v102
    %v156 = vpop.f32.mrb[0].mxu0
    %v157 = vadd.f32 0.0, %v156
    %v158 = vpop.f32.mrb[0].mxu0
    %v159 = vpop.f32.mrb[0].mxu0
    %v160 = vadd.f32 0.0, %v159
    %v161 = vpop.f32.mrb[0].mxu0
    %162 = vmatprep.mubr.bf16.mxu0 0
    %163 = vmatmul.mubr.bf16.gmra.mrb[0].mxu0 %v105
    %v164 = vpop.f32.mrb[0].mxu0
    %v165 = vadd.f32 0.0, %v164
    %v166 = vpop.f32.mrb[0].mxu0
    %v167 = vpop.f32.mrb[0].mxu0
    %v168 = vadd.f32 0.0, %v167
    %v169 = vpop.f32.mrb[0].mxu0
    %170 = vmatprep.mubr.bf16.mxu0 0
    %171 = vmatmul.mubr.bf16.gmra.mrb[0].mxu0 %v108
    %v172 = vpop.f32.mrb[0].mxu0
    %v173 = vadd.f32 0.0, %v172
    %v174 = vpop.f32.mrb[0].mxu0
    %v175 = vpop.f32.mrb[0].mxu0
    %v176 = vadd.f32 0.0, %v175
    %v177 = vpop.f32.mrb[0].mxu0
    %178 = vdwg.mxu0
    %180 = vset.pattern.permute.xlu0 0
    %181 = vperm.xlu0 %180, %v60
    %v182 = vpop.permute.xlu0 %181
    %185 = vset.pattern.permute.xlu0 0
    %186 = vperm.xlu0 %185, %v61
    %v187 = vpop.permute.xlu0 %186
    %190 = vset.pattern.permute.xlu0 0
    %191 = vperm.xlu0 %190, %v62
    %v192 = vpop.permute.xlu0 %191
    %195 = vset.pattern.permute.xlu0 0
    %196 = vperm.xlu0 %195, %v63
    %v197 = vpop.permute.xlu0 %196
    %200 = vset.pattern.permute.xlu0 0
    %201 = vperm.xlu0 %200, %v64
    %v202 = vpop.permute.xlu0 %201
    %205 = vset.pattern.permute.xlu0 0
    %206 = vperm.xlu0 %205, %v65
    %v207 = vpop.permute.xlu0 %206
    %210 = vset.pattern.permute.xlu0 0
    %211 = vperm.xlu0 %210, %v66
    %v212 = vpop.permute.xlu0 %211
    %215 = vset.pattern.permute.xlu0 0
    %216 = vperm.xlu0 %215, %v67
    %v217 = vpop.permute.xlu0 %216
    %v219 = vlaneseq
    %v220 = vshrl.u32 %v219, 7
    %v221 = vsub.s32 0, %v220
    %v222 = vrot.slane %v149, %v221
    %v223 = vlaneseq
    %v224 = vshrl.u32 %v223, 7
    %v225 = vsub.s32 0, %v224
    %v226 = vrot.slane %v152, %v225
    %v227 = vlaneseq
    %v228 = vshrl.u32 %v227, 7
    %v229 = vsub.s32 0, %v228
    %v230 = vrot.slane %v157, %v229
    %v231 = vlaneseq
    %v232 = vshrl.u32 %v231, 7
    %v233 = vsub.s32 0, %v232
    %v234 = vrot.slane %v160, %v233
    %v235 = vlaneseq
    %v236 = vshrl.u32 %v235, 7
    %v237 = vsub.s32 0, %v236
    %v238 = vrot.slane %v165, %v237
    %v239 = vlaneseq
    %v240 = vshrl.u32 %v239, 7
    %v241 = vsub.s32 0, %v240
    %v242 = vrot.slane %v168, %v241
    %v243 = vlaneseq
    %v244 = vshrl.u32 %v243, 7
    %v245 = vsub.s32 0, %v244
    %v246 = vrot.slane %v173, %v245
    %v247 = vlaneseq
    %v248 = vshrl.u32 %v247, 7
    %v249 = vsub.s32 0, %v248
    %v250 = vrot.slane %v176, %v249
    %v251 = vmul.f32 %v182, %v222
    %v252 = vmul.f32 %v187, %v226
    %v253 = vmul.f32 %v192, %v230
    %v254 = vmul.f32 %v197, %v234
    %v255 = vmul.f32 %v202, %v238
    %v256 = vmul.f32 %v207, %v242
    %v257 = vmul.f32 %v212, %v246
    %v258 = vmul.f32 %v217, %v250
    %259 = vset.pattern.permute.xlu0 1
    %260 = vperm.xlu0 %259, %v60
    %v261 = vpop.permute.xlu0 %260
    %263 = vset.pattern.permute.xlu0 1
    %264 = vperm.xlu0 %263, %v61
    %v265 = vpop.permute.xlu0 %264
    %267 = vset.pattern.permute.xlu0 1
    %268 = vperm.xlu0 %267, %v62
    %v269 = vpop.permute.xlu0 %268
    %271 = vset.pattern.permute.xlu0 1
    %272 = vperm.xlu0 %271, %v63
    %v273 = vpop.permute.xlu0 %272
    %275 = vset.pattern.permute.xlu0 1
    %276 = vperm.xlu0 %275, %v64
    %v277 = vpop.permute.xlu0 %276
    %279 = vset.pattern.permute.xlu0 1
    %280 = vperm.xlu0 %279, %v65
    %v281 = vpop.permute.xlu0 %280
    %283 = vset.pattern.permute.xlu0 1
    %284 = vperm.xlu0 %283, %v66
    %v285 = vpop.permute.xlu0 %284
    %287 = vset.pattern.permute.xlu0 1
    %288 = vperm.xlu0 %287, %v67
    %v289 = vpop.permute.xlu0 %288
    %v291 = vlaneseq
    %v292 = vshrl.u32 %v291, 7
    %v293 = vsub.s32 1, %v292
    %v294 = vrot.slane %v149, %v293
    %v295 = vlaneseq
    %v296 = vshrl.u32 %v295, 7
    %v297 = vsub.s32 1, %v296
    %v298 = vrot.slane %v152, %v297
    %v299 = vlaneseq
    %v300 = vshrl.u32 %v299, 7
    %v301 = vsub.s32 1, %v300
    %v302 = vrot.slane %v157, %v301
    %v303 = vlaneseq
    %v304 = vshrl.u32 %v303, 7
    %v305 = vsub.s32 1, %v304
    %v306 = vrot.slane %v160, %v305
    %v307 = vlaneseq
    %v308 = vshrl.u32 %v307, 7
    %v309 = vsub.s32 1, %v308
    %v310 = vrot.slane %v165, %v309
    %v311 = vlaneseq
    %v312 = vshrl.u32 %v311, 7
    %v313 = vsub.s32 1, %v312
    %v314 = vrot.slane %v168, %v313
    %v315 = vlaneseq
    %v316 = vshrl.u32 %v315, 7
    %v317 = vsub.s32 1, %v316
    %v318 = vrot.slane %v173, %v317
    %v319 = vlaneseq
    %v320 = vshrl.u32 %v319, 7
    %v321 = vsub.s32 1, %v320
    %v322 = vrot.slane %v176, %v321
    %v323 = vmul.f32 %v261, %v294
    %v324 = vmul.f32 %v265, %v298
    %v325 = vmul.f32 %v269, %v302
    %v326 = vmul.f32 %v273, %v306
    %v327 = vmul.f32 %v277, %v310
    %v328 = vmul.f32 %v281, %v314
    %v329 = vmul.f32 %v285, %v318
    %v330 = vmul.f32 %v289, %v322
    %v331 = vadd.f32 %v251, %v323
    %v332 = vadd.f32 %v252, %v324
    %v333 = vadd.f32 %v253, %v325
    %v334 = vadd.f32 %v254, %v326
    %v335 = vadd.f32 %v255, %v327
    %v336 = vadd.f32 %v256, %v328
    %v337 = vadd.f32 %v257, %v329
    %v338 = vadd.f32 %v258, %v330
    %339 = vset.pattern.permute.xlu0 2
    %340 = vperm.xlu0 %339, %v60
    %v341 = vpop.permute.xlu0 %340
    %343 = vset.pattern.permute.xlu0 2
    %344 = vperm.xlu0 %343, %v61
    %v345 = vpop.permute.xlu0 %344
    %347 = vset.pattern.permute.xlu0 2
    %348 = vperm.xlu0 %347, %v62
    %v349 = vpop.permute.xlu0 %348
    %351 = vset.pattern.permute.xlu0 2
    %352 = vperm.xlu0 %351, %v63
    %v353 = vpop.permute.xlu0 %352
    %355 = vset.pattern.permute.xlu0 2
    %356 = vperm.xlu0 %355, %v64
    %v357 = vpop.permute.xlu0 %356
    %359 = vset.pattern.permute.xlu0 2
    %360 = vperm.xlu0 %359, %v65
    %v361 = vpop.permute.xlu0 %360
    %363 = vset.pattern.permute.xlu0 2
    %364 = vperm.xlu0 %363, %v66
    %v365 = vpop.permute.xlu0 %364
    %367 = vset.pattern.permute.xlu0 2
    %368 = vperm.xlu0 %367, %v67
    %v369 = vpop.permute.xlu0 %368
    %v371 = vlaneseq
    %v372 = vshrl.u32 %v371, 7
    %v373 = vsub.s32 2, %v372
    %v374 = vrot.slane %v149, %v373
    %v375 = vlaneseq
    %v376 = vshrl.u32 %v375, 7
    %v377 = vsub.s32 2, %v376
    %v378 = vrot.slane %v152, %v377
    %v379 = vlaneseq
    %v380 = vshrl.u32 %v379, 7
    %v381 = vsub.s32 2, %v380
    %v382 = vrot.slane %v157, %v381
    %v383 = vlaneseq
    %v384 = vshrl.u32 %v383, 7
    %v385 = vsub.s32 2, %v384
    %v386 = vrot.slane %v160, %v385
    %v387 = vlaneseq
    %v388 = vshrl.u32 %v387, 7
    %v389 = vsub.s32 2, %v388
    %v390 = vrot.slane %v165, %v389
    %v391 = vlaneseq
    %v392 = vshrl.u32 %v391, 7
    %v393 = vsub.s32 2, %v392
    %v394 = vrot.slane %v168, %v393
    %v395 = vlaneseq
    %v396 = vshrl.u32 %v395, 7
    %v397 = vsub.s32 2, %v396
    %v398 = vrot.slane %v173, %v397
    %v399 = vlaneseq
    %v400 = vshrl.u32 %v399, 7
    %v401 = vsub.s32 2, %v400
    %v402 = vrot.slane %v176, %v401
    %v403 = vmul.f32 %v341, %v374
    %v404 = vmul.f32 %v345, %v378
    %v405 = vmul.f32 %v349, %v382
    %v406 = vmul.f32 %v353, %v386
    %v407 = vmul.f32 %v357, %v390
    %v408 = vmul.f32 %v361, %v394
    %v409 = vmul.f32 %v365, %v398
    %v410 = vmul.f32 %v369, %v402
    %v411 = vadd.f32 %v331, %v403
    %v412 = vadd.f32 %v332, %v404
    %v413 = vadd.f32 %v333, %v405
    %v414 = vadd.f32 %v334, %v406
    %v415 = vadd.f32 %v335, %v407
    %v416 = vadd.f32 %v336, %v408
    %v417 = vadd.f32 %v337, %v409
    %v418 = vadd.f32 %v338, %v410
    %419 = vset.pattern.permute.xlu0 3
    %420 = vperm.xlu0 %419, %v60
    %v421 = vpop.permute.xlu0 %420
    %423 = vset.pattern.permute.xlu0 3
    %424 = vperm.xlu0 %423, %v61
    %v425 = vpop.permute.xlu0 %424
    %427 = vset.pattern.permute.xlu0 3
    %428 = vperm.xlu0 %427, %v62
    %v429 = vpop.permute.xlu0 %428
    %431 = vset.pattern.permute.xlu0 3
    %432 = vperm.xlu0 %431, %v63
    %v433 = vpop.permute.xlu0 %432
    %435 = vset.pattern.permute.xlu0 3
    %436 = vperm.xlu0 %435, %v64
    %v437 = vpop.permute.xlu0 %436
    %439 = vset.pattern.permute.xlu0 3
    %440 = vperm.xlu0 %439, %v65
    %v441 = vpop.permute.xlu0 %440
    %443 = vset.pattern.permute.xlu0 3
    %444 = vperm.xlu0 %443, %v66
    %v445 = vpop.permute.xlu0 %444
    %447 = vset.pattern.permute.xlu0 3
    %448 = vperm.xlu0 %447, %v67
    %v449 = vpop.permute.xlu0 %448
    %v451 = vlaneseq
    %v452 = vshrl.u32 %v451, 7
    %v453 = vsub.s32 3, %v452
    %v454 = vrot.slane %v149, %v453
    %v455 = vlaneseq
    %v456 = vshrl.u32 %v455, 7
    %v457 = vsub.s32 3, %v456
    %v458 = vrot.slane %v152, %v457
    %v459 = vlaneseq
    %v460 = vshrl.u32 %v459, 7
    %v461 = vsub.s32 3, %v460
    %v462 = vrot.slane %v157, %v461
    %v463 = vlaneseq
    %v464 = vshrl.u32 %v463, 7
    %v465 = vsub.s32 3, %v464
    %v466 = vrot.slane %v160, %v465
    %v467 = vlaneseq
    %v468 = vshrl.u32 %v467, 7
    %v469 = vsub.s32 3, %v468
    %v470 = vrot.slane %v165, %v469
    %v471 = vlaneseq
    %v472 = vshrl.u32 %v471, 7
    %v473 = vsub.s32 3, %v472
    %v474 = vrot.slane %v168, %v473
    %v475 = vlaneseq
    %v476 = vshrl.u32 %v475, 7
    %v477 = vsub.s32 3, %v476
    %v478 = vrot.slane %v173, %v477
    %v479 = vlaneseq
    %v480 = vshrl.u32 %v479, 7
    %v481 = vsub.s32 3, %v480
    %v482 = vrot.slane %v176, %v481
    %v483 = vmul.f32 %v421, %v454
    %v484 = vmul.f32 %v425, %v458
    %v485 = vmul.f32 %v429, %v462
    %v486 = vmul.f32 %v433, %v466
    %v487 = vmul.f32 %v437, %v470
    %v488 = vmul.f32 %v441, %v474
    %v489 = vmul.f32 %v445, %v478
    %v490 = vmul.f32 %v449, %v482
    %v491 = vadd.f32 %v411, %v483
    %v492 = vadd.f32 %v412, %v484
    %v493 = vadd.f32 %v413, %v485
    %v494 = vadd.f32 %v414, %v486
    %v495 = vadd.f32 %v415, %v487
    %v496 = vadd.f32 %v416, %v488
    %v497 = vadd.f32 %v417, %v489
    %v498 = vadd.f32 %v418, %v490
    %499 = vset.pattern.permute.xlu0 4
    %500 = vperm.xlu0 %499, %v60
    %v501 = vpop.permute.xlu0 %500
    %503 = vset.pattern.permute.xlu0 4
    %504 = vperm.xlu0 %503, %v61
    %v505 = vpop.permute.xlu0 %504
    %507 = vset.pattern.permute.xlu0 4
    %508 = vperm.xlu0 %507, %v62
    %v509 = vpop.permute.xlu0 %508
    %511 = vset.pattern.permute.xlu0 4
    %512 = vperm.xlu0 %511, %v63
    %v513 = vpop.permute.xlu0 %512
    %515 = vset.pattern.permute.xlu0 4
    %516 = vperm.xlu0 %515, %v64
    %v517 = vpop.permute.xlu0 %516
    %519 = vset.pattern.permute.xlu0 4
    %520 = vperm.xlu0 %519, %v65
    %v521 = vpop.permute.xlu0 %520
    %523 = vset.pattern.permute.xlu0 4
    %524 = vperm.xlu0 %523, %v66
    %v525 = vpop.permute.xlu0 %524
    %527 = vset.pattern.permute.xlu0 4
    %528 = vperm.xlu0 %527, %v67
    %v529 = vpop.permute.xlu0 %528
    %v531 = vlaneseq
    %v532 = vshrl.u32 %v531, 7
    %v533 = vsub.s32 4, %v532
    %v534 = vrot.slane %v149, %v533
    %v535 = vlaneseq
    %v536 = vshrl.u32 %v535, 7
    %v537 = vsub.s32 4, %v536
    %v538 = vrot.slane %v152, %v537
    %v539 = vlaneseq
    %v540 = vshrl.u32 %v539, 7
    %v541 = vsub.s32 4, %v540
    %v542 = vrot.slane %v157, %v541
    %v543 = vlaneseq
    %v544 = vshrl.u32 %v543, 7
    %v545 = vsub.s32 4, %v544
    %v546 = vrot.slane %v160, %v545
    %v547 = vlaneseq
    %v548 = vshrl.u32 %v547, 7
    %v549 = vsub.s32 4, %v548
    %v550 = vrot.slane %v165, %v549
    %v551 = vlaneseq
    %v552 = vshrl.u32 %v551, 7
    %v553 = vsub.s32 4, %v552
    %v554 = vrot.slane %v168, %v553
    %v555 = vlaneseq
    %v556 = vshrl.u32 %v555, 7
    %v557 = vsub.s32 4, %v556
    %v558 = vrot.slane %v173, %v557
    %v559 = vlaneseq
    %v560 = vshrl.u32 %v559, 7
    %v561 = vsub.s32 4, %v560
    %v562 = vrot.slane %v176, %v561
    %v563 = vmul.f32 %v501, %v534
    %v564 = vmul.f32 %v505, %v538
    %v565 = vmul.f32 %v509, %v542
    %v566 = vmul.f32 %v513, %v546
    %v567 = vmul.f32 %v517, %v550
    %v568 = vmul.f32 %v521, %v554
    %v569 = vmul.f32 %v525, %v558
    %v570 = vmul.f32 %v529, %v562
    %v571 = vadd.f32 %v491, %v563
    %v572 = vadd.f32 %v492, %v564
    %v573 = vadd.f32 %v493, %v565
    %v574 = vadd.f32 %v494, %v566
    %v575 = vadd.f32 %v495, %v567
    %v576 = vadd.f32 %v496, %v568
    %v577 = vadd.f32 %v497, %v569
    %v578 = vadd.f32 %v498, %v570
    %579 = vset.pattern.permute.xlu0 5
    %580 = vperm.xlu0 %579, %v60
    %v581 = vpop.permute.xlu0 %580
    %583 = vset.pattern.permute.xlu0 5
    %584 = vperm.xlu0 %583, %v61
    %v585 = vpop.permute.xlu0 %584
    %587 = vset.pattern.permute.xlu0 5
    %588 = vperm.xlu0 %587, %v62
    %v589 = vpop.permute.xlu0 %588
    %591 = vset.pattern.permute.xlu0 5
    %592 = vperm.xlu0 %591, %v63
    %v593 = vpop.permute.xlu0 %592
    %595 = vset.pattern.permute.xlu0 5
    %596 = vperm.xlu0 %595, %v64
    %v597 = vpop.permute.xlu0 %596
    %599 = vset.pattern.permute.xlu0 5
    %600 = vperm.xlu0 %599, %v65
    %v601 = vpop.permute.xlu0 %600
    %603 = vset.pattern.permute.xlu0 5
    %604 = vperm.xlu0 %603, %v66
    %v605 = vpop.permute.xlu0 %604
    %607 = vset.pattern.permute.xlu0 5
    %608 = vperm.xlu0 %607, %v67
    %v609 = vpop.permute.xlu0 %608
    %v611 = vlaneseq
    %v612 = vshrl.u32 %v611, 7
    %v613 = vsub.s32 5, %v612
    %v614 = vrot.slane %v149, %v613
    %v615 = vlaneseq
    %v616 = vshrl.u32 %v615, 7
    %v617 = vsub.s32 5, %v616
    %v618 = vrot.slane %v152, %v617
    %v619 = vlaneseq
    %v620 = vshrl.u32 %v619, 7
    %v621 = vsub.s32 5, %v620
    %v622 = vrot.slane %v157, %v621
    %v623 = vlaneseq
    %v624 = vshrl.u32 %v623, 7
    %v625 = vsub.s32 5, %v624
    %v626 = vrot.slane %v160, %v625
    %v627 = vlaneseq
    %v628 = vshrl.u32 %v627, 7
    %v629 = vsub.s32 5, %v628
    %v630 = vrot.slane %v165, %v629
    %v631 = vlaneseq
    %v632 = vshrl.u32 %v631, 7
    %v633 = vsub.s32 5, %v632
    %v634 = vrot.slane %v168, %v633
    %v635 = vlaneseq
    %v636 = vshrl.u32 %v635, 7
    %v637 = vsub.s32 5, %v636
    %v638 = vrot.slane %v173, %v637
    %v639 = vlaneseq
    %v640 = vshrl.u32 %v639, 7
    %v641 = vsub.s32 5, %v640
    %v642 = vrot.slane %v176, %v641
    %v643 = vmul.f32 %v581, %v614
    %v644 = vmul.f32 %v585, %v618
    %v645 = vmul.f32 %v589, %v622
    %v646 = vmul.f32 %v593, %v626
    %v647 = vmul.f32 %v597, %v630
    %v648 = vmul.f32 %v601, %v634
    %v649 = vmul.f32 %v605, %v638
    %v650 = vmul.f32 %v609, %v642
    %v651 = vadd.f32 %v571, %v643
    %v652 = vadd.f32 %v572, %v644
    %v653 = vadd.f32 %v573, %v645
    %v654 = vadd.f32 %v574, %v646
    %v655 = vadd.f32 %v575, %v647
    %v656 = vadd.f32 %v576, %v648
    %v657 = vadd.f32 %v577, %v649
    %v658 = vadd.f32 %v578, %v650
    %659 = vset.pattern.permute.xlu0 6
    %660 = vperm.xlu0 %659, %v60
    %v661 = vpop.permute.xlu0 %660
    %663 = vset.pattern.permute.xlu0 6
    %664 = vperm.xlu0 %663, %v61
    %v665 = vpop.permute.xlu0 %664
    %667 = vset.pattern.permute.xlu0 6
    %668 = vperm.xlu0 %667, %v62
    %v669 = vpop.permute.xlu0 %668
    %671 = vset.pattern.permute.xlu0 6
    %672 = vperm.xlu0 %671, %v63
    %v673 = vpop.permute.xlu0 %672
    %675 = vset.pattern.permute.xlu0 6
    %676 = vperm.xlu0 %675, %v64
    %v677 = vpop.permute.xlu0 %676
    %679 = vset.pattern.permute.xlu0 6
    %680 = vperm.xlu0 %679, %v65
    %v681 = vpop.permute.xlu0 %680
    %683 = vset.pattern.permute.xlu0 6
    %684 = vperm.xlu0 %683, %v66
    %v685 = vpop.permute.xlu0 %684
    %687 = vset.pattern.permute.xlu0 6
    %688 = vperm.xlu0 %687, %v67
    %v689 = vpop.permute.xlu0 %688
    %v691 = vlaneseq
    %v692 = vshrl.u32 %v691, 7
    %v693 = vsub.s32 6, %v692
    %v694 = vrot.slane %v149, %v693
    %v695 = vlaneseq
    %v696 = vshrl.u32 %v695, 7
    %v697 = vsub.s32 6, %v696
    %v698 = vrot.slane %v152, %v697
    %v699 = vlaneseq
    %v700 = vshrl.u32 %v699, 7
    %v701 = vsub.s32 6, %v700
    %v702 = vrot.slane %v157, %v701
    %v703 = vlaneseq
    %v704 = vshrl.u32 %v703, 7
    %v705 = vsub.s32 6, %v704
    %v706 = vrot.slane %v160, %v705
    %v707 = vlaneseq
    %v708 = vshrl.u32 %v707, 7
    %v709 = vsub.s32 6, %v708
    %v710 = vrot.slane %v165, %v709
    %v711 = vlaneseq
    %v712 = vshrl.u32 %v711, 7
    %v713 = vsub.s32 6, %v712
    %v714 = vrot.slane %v168, %v713
    %v715 = vlaneseq
    %v716 = vshrl.u32 %v715, 7
    %v717 = vsub.s32 6, %v716
    %v718 = vrot.slane %v173, %v717
    %v719 = vlaneseq
    %v720 = vshrl.u32 %v719, 7
    %v721 = vsub.s32 6, %v720
    %v722 = vrot.slane %v176, %v721
    %v723 = vmul.f32 %v661, %v694
    %v724 = vmul.f32 %v665, %v698
    %v725 = vmul.f32 %v669, %v702
    %v726 = vmul.f32 %v673, %v706
    %v727 = vmul.f32 %v677, %v710
    %v728 = vmul.f32 %v681, %v714
    %v729 = vmul.f32 %v685, %v718
    %v730 = vmul.f32 %v689, %v722
    %v731 = vadd.f32 %v651, %v723
    %v732 = vadd.f32 %v652, %v724
    %v733 = vadd.f32 %v653, %v725
    %v734 = vadd.f32 %v654, %v726
    %v735 = vadd.f32 %v655, %v727
    %v736 = vadd.f32 %v656, %v728
    %v737 = vadd.f32 %v657, %v729
    %v738 = vadd.f32 %v658, %v730
    %739 = vset.pattern.permute.xlu0 7
    %740 = vperm.xlu0 %739, %v60
    %v741 = vpop.permute.xlu0 %740
    %743 = vset.pattern.permute.xlu0 7
    %744 = vperm.xlu0 %743, %v61
    %v745 = vpop.permute.xlu0 %744
    %747 = vset.pattern.permute.xlu0 7
    %748 = vperm.xlu0 %747, %v62
    %v749 = vpop.permute.xlu0 %748
    %751 = vset.pattern.permute.xlu0 7
    %752 = vperm.xlu0 %751, %v63
    %v753 = vpop.permute.xlu0 %752
    %755 = vset.pattern.permute.xlu0 7
    %756 = vperm.xlu0 %755, %v64
    %v757 = vpop.permute.xlu0 %756
    %759 = vset.pattern.permute.xlu0 7
    %760 = vperm.xlu0 %759, %v65
    %v761 = vpop.permute.xlu0 %760
    %763 = vset.pattern.permute.xlu0 7
    %764 = vperm.xlu0 %763, %v66
    %v765 = vpop.permute.xlu0 %764
    %767 = vset.pattern.permute.xlu0 7
    %768 = vperm.xlu0 %767, %v67
    %v769 = vpop.permute.xlu0 %768
    %v771 = vlaneseq
    %v772 = vshrl.u32 %v771, 7
    %v773 = vsub.s32 7, %v772
    %v774 = vrot.slane %v149, %v773
    %v775 = vlaneseq
    %v776 = vshrl.u32 %v775, 7
    %v777 = vsub.s32 7, %v776
    %v778 = vrot.slane %v152, %v777
    %v779 = vlaneseq
    %v780 = vshrl.u32 %v779, 7
    %v781 = vsub.s32 7, %v780
    %v782 = vrot.slane %v157, %v781
    %v783 = vlaneseq
    %v784 = vshrl.u32 %v783, 7
    %v785 = vsub.s32 7, %v784
    %v786 = vrot.slane %v160, %v785
    %v787 = vlaneseq
    %v788 = vshrl.u32 %v787, 7
    %v789 = vsub.s32 7, %v788
    %v790 = vrot.slane %v165, %v789
    %v791 = vlaneseq
    %v792 = vshrl.u32 %v791, 7
    %v793 = vsub.s32 7, %v792
    %v794 = vrot.slane %v168, %v793
    %v795 = vlaneseq
    %v796 = vshrl.u32 %v795, 7
    %v797 = vsub.s32 7, %v796
    %v798 = vrot.slane %v173, %v797
    %v799 = vlaneseq
    %v800 = vshrl.u32 %v799, 7
    %v801 = vsub.s32 7, %v800
    %v802 = vrot.slane %v176, %v801
    %v803 = vmul.f32 %v741, %v774
    %v804 = vmul.f32 %v745, %v778
    %v805 = vmul.f32 %v749, %v782
    %v806 = vmul.f32 %v753, %v786
    %v807 = vmul.f32 %v757, %v790
    %v808 = vmul.f32 %v761, %v794
    %v809 = vmul.f32 %v765, %v798
    %v810 = vmul.f32 %v769, %v802
    %v811 = vadd.f32 %v731, %v803
    %v812 = vadd.f32 %v732, %v804
    %v813 = vadd.f32 %v733, %v805
    %v814 = vadd.f32 %v734, %v806
    %v815 = vadd.f32 %v735, %v807
    %v816 = vadd.f32 %v736, %v808
    %v817 = vadd.f32 %v737, %v809
    %v818 = vadd.f32 %v738, %v810
    %v819 = vld [vmem:[%s3] sm:$0x1]
    %v821 = vlaneseq
    %v822 = vshrl.u32 %v821, 7
    %v823 = vsub.s32 0, %v822
    %v824 = vrot.slane %v819, %v823
    %v826 = vadd.f32 %v811, %v824
    %v827 = vadd.f32 %v812, %v824
    %v828 = vadd.f32 %v813, %v824
    %v829 = vadd.f32 %v814, %v824
    %v830 = vadd.f32 %v815, %v824
    %v831 = vadd.f32 %v816, %v824
    %v832 = vadd.f32 %v817, %v824
    %v833 = vadd.f32 %v818, %v824
    %v834 = vmax.f32 %v826, 0.0
    %v835 = vmax.f32 %v827, 0.0
    %v836 = vmax.f32 %v828, 0.0
    %v837 = vmax.f32 %v829, 0.0
    %v838 = vmax.f32 %v830, 0.0
    %v839 = vmax.f32 %v831, 0.0
    %v840 = vmax.f32 %v832, 0.0
    %v841 = vmax.f32 %v833, 0.0
    %v842 = vpack.c.bf16 %v835, %v834
    %v843 = vpack.c.bf16 %v837, %v836
    %v844 = vpack.c.bf16 %v839, %v838
    %v845 = vpack.c.bf16 %v841, %v840
    %v846 = vld [vmem:[#allocation6] sm:$0xf]
    %v847 = vld [vmem:[#allocation6 + $0x4] sm:$0xf]
    %v848 = vld [vmem:[#allocation6 + $0x8] sm:$0xf]
    %v849 = vld [vmem:[#allocation6 + $0xc] sm:$0xf]
    %v850 = vld [vmem:[#allocation6 + $0x10] sm:$0xf]
    %v851 = vld [vmem:[#allocation6 + $0x14] sm:$0xf]
    %v852 = vld [vmem:[#allocation6 + $0x18] sm:$0xf]
    %v853 = vld [vmem:[#allocation6 + $0x1c] sm:$0xf]
    %v854 = vld [vmem:[#allocation6 + $0x20] sm:$0xf]
    %v855 = vld [vmem:[#allocation6 + $0x24] sm:$0xf]
    %v856 = vld [vmem:[#allocation6 + $0x28] sm:$0xf]
    %v857 = vld [vmem:[#allocation6 + $0x2c] sm:$0xf]
    %v858 = vld [vmem:[#allocation6 + $0x30] sm:$0xf]
    %v859 = vld [vmem:[#allocation6 + $0x34] sm:$0xf]
    %v860 = vld [vmem:[#allocation6 + $0x38] sm:$0xf]
    %v861 = vld [vmem:[#allocation6 + $0x3c] sm:$0xf]
    %v878 = vunpack.c.l.b16 %v846
    %v879 = vunpack.c.l.b16 %v847
    %v880 = vunpack.c.l.b16 %v848
    %v881 = vunpack.c.l.b16 %v849
    %v882 = vunpack.c.l.b16 %v850
    %v883 = vunpack.c.l.b16 %v851
    %v884 = vunpack.c.l.b16 %v852
    %v885 = vunpack.c.l.b16 %v853
    %v886 = vunpack.c.l.b16 %v854
    %v887 = vunpack.c.l.b16 %v855
    %v888 = vunpack.c.l.b16 %v856
    %v889 = vunpack.c.l.b16 %v857
    %v890 = vunpack.c.l.b16 %v858
    %v891 = vunpack.c.l.b16 %v859
    %v892 = vunpack.c.l.b16 %v860
    %v893 = vunpack.c.l.b16 %v861
    %v894 = vpack.c.b16 %v879, %v878
    %v895 = vpack.c.b16 %v881, %v880
    %v896 = vpack.c.b16 %v883, %v882
    %v897 = vpack.c.b16 %v885, %v884
    %v898 = vpack.c.b16 %v887, %v886
    %v899 = vpack.c.b16 %v889, %v888
    %v900 = vpack.c.b16 %v891, %v890
    %v901 = vpack.c.b16 %v893, %v892
    %910 = vmatprep.subr.bf16.mxu0 0
    %911 = vmatpush1.bf16.msra.mxu0 %v894
    %912 = vmatprep.subr.bf16.mxu0 0
    %913 = vmatpush1.bf16.msra.mxu0 %v895
    %914 = vmatprep.subr.bf16.mxu0 0
    %915 = vmatpush1.bf16.msra.mxu0 %v896
    %916 = vmatprep.subr.bf16.mxu0 0
    %917 = vmatpush1.bf16.msra.mxu0 %v897
    %918 = vmatprep.subr.bf16.mxu0 0
    %919 = vmatpush1.bf16.msra.mxu0 %v898
    %920 = vmatprep.subr.bf16.mxu0 0
    %921 = vmatpush1.bf16.msra.mxu0 %v899
    %922 = vmatprep.subr.bf16.mxu0 0
    %923 = vmatpush1.bf16.msra.mxu0 %v900
    %924 = vmatprep.subr.bf16.mxu0 0
    %925 = vmatpush1.bf16.msra.mxu0 %v901
    %926 = vmatprep.subr.bf16.mxu0 0
    %927 = vmatpush1.bf16.msra.mxu0 0
    %928 = vmatprep.subr.bf16.mxu0 0
    %929 = vmatpush1.bf16.msra.mxu0 0
    %930 = vmatprep.subr.bf16.mxu0 0
    %931 = vmatpush1.bf16.msra.mxu0 0
    %932 = vmatprep.subr.bf16.mxu0 0
    %933 = vmatpush1.bf16.msra.mxu0 0
    %934 = vmatprep.subr.bf16.mxu0 0
    %935 = vmatpush1.bf16.msra.mxu0 0
    %936 = vmatprep.subr.bf16.mxu0 0
    %937 = vmatpush1.bf16.msra.mxu0 0
    %938 = vmatprep.subr.bf16.mxu0 0
    %939 = vmatpush1.bf16.msra.mxu0 0
    %940 = vmatprep.subr.bf16.mxu0 0
    %941 = vmatpush1.bf16.msra.mxu0 0
    %942 = vmatprep.mubr.bf16.mxu0 0
    %943 = vmatmul.mubr.bf16.gmra.mrb[0].mxu0 %v842
    %v944 = vpop.f32.mrb[0].mxu0
    %v945 = vadd.f32 0.0, %v944
    %v946 = vpop.f32.mrb[0].mxu0
    %v947 = vpop.f32.mrb[0].mxu0
    %v948 = vadd.f32 0.0, %v947
    %v949 = vpop.f32.mrb[0].mxu0
    %950 = vmatprep.mubr.bf16.mxu0 0
    %951 = vmatmul.mubr.bf16.gmra.mrb[0].mxu0 %v843
    %v952 = vpop.f32.mrb[0].mxu0
    %v953 = vadd.f32 0.0, %v952
    %v954 = vpop.f32.mrb[0].mxu0
    %v955 = vpop.f32.mrb[0].mxu0
    %v956 = vadd.f32 0.0, %v955
    %v957 = vpop.f32.mrb[0].mxu0
    %958 = vmatprep.mubr.bf16.mxu0 0
    %959 = vmatmul.mubr.bf16.gmra.mrb[0].mxu0 %v844
    %v960 = vpop.f32.mrb[0].mxu0
    %v961 = vadd.f32 0.0, %v960
    %v962 = vpop.f32.mrb[0].mxu0
    %v963 = vpop.f32.mrb[0].mxu0
    %v964 = vadd.f32 0.0, %v963
    %v965 = vpop.f32.mrb[0].mxu0
    %966 = vmatprep.mubr.bf16.mxu0 0
    %967 = vmatmul.mubr.bf16.gmra.mrb[0].mxu0 %v845
    %v968 = vpop.f32.mrb[0].mxu0
    %v969 = vadd.f32 0.0, %v968
    %v970 = vpop.f32.mrb[0].mxu0
    %v971 = vpop.f32.mrb[0].mxu0
    %v972 = vadd.f32 0.0, %v971
    %v973 = vpop.f32.mrb[0].mxu0
    %974 = vdwg.mxu0
    %v975 = vlaneseq
    %v976 = vshrl.u32 %v975, 7
    %v977 = vsub.s32 0, %v976
    %v978 = vrot.slane %v945, %v977
    %v979 = vlaneseq
    %v980 = vshrl.u32 %v979, 7
    %v981 = vsub.s32 0, %v980
    %v982 = vrot.slane %v948, %v981
    %v983 = vlaneseq
    %v984 = vshrl.u32 %v983, 7
    %v985 = vsub.s32 0, %v984
    %v986 = vrot.slane %v953, %v985
    %v987 = vlaneseq
    %v988 = vshrl.u32 %v987, 7
    %v989 = vsub.s32 0, %v988
    %v990 = vrot.slane %v956, %v989
    %v991 = vlaneseq
    %v992 = vshrl.u32 %v991, 7
    %v993 = vsub.s32 0, %v992
    %v994 = vrot.slane %v961, %v993
    %v995 = vlaneseq
    %v996 = vshrl.u32 %v995, 7
    %v997 = vsub.s32 0, %v996
    %v998 = vrot.slane %v964, %v997
    %v999 = vlaneseq
    %v1000 = vshrl.u32 %v999, 7
    %v1001 = vsub.s32 0, %v1000
    %v1002 = vrot.slane %v969, %v1001
    %v1003 = vlaneseq
    %v1004 = vshrl.u32 %v1003, 7
    %v1005 = vsub.s32 0, %v1004
    %v1006 = vrot.slane %v972, %v1005
    %v1007 = vmul.f32 %v182, %v978
    %v1008 = vmul.f32 %v187, %v982
    %v1009 = vmul.f32 %v192, %v986
    %v1010 = vmul.f32 %v197, %v990
    %v1011 = vmul.f32 %v202, %v994
    %v1012 = vmul.f32 %v207, %v998
    %v1013 = vmul.f32 %v212, %v1002
    %v1014 = vmul.f32 %v217, %v1006
    %v1015 = vlaneseq
    %v1016 = vshrl.u32 %v1015, 7
    %v1017 = vsub.s32 1, %v1016
    %v1018 = vrot.slane %v945, %v1017
    %v1019 = vlaneseq
    %v1020 = vshrl.u32 %v1019, 7
    %v1021 = vsub.s32 1, %v1020
    %v1022 = vrot.slane %v948, %v1021
    %v1023 = vlaneseq
    %v1024 = vshrl.u32 %v1023, 7
    %v1025 = vsub.s32 1, %v1024
    %v1026 = vrot.slane %v953, %v1025
    %v1027 = vlaneseq
    %v1028 = vshrl.u32 %v1027, 7
    %v1029 = vsub.s32 1, %v1028
    %v1030 = vrot.slane %v956, %v1029
    %v1031 = vlaneseq
    %v1032 = vshrl.u32 %v1031, 7
    %v1033 = vsub.s32 1, %v1032
    %v1034 = vrot.slane %v961, %v1033
    %v1035 = vlaneseq
    %v1036 = vshrl.u32 %v1035, 7
    %v1037 = vsub.s32 1, %v1036
    %v1038 = vrot.slane %v964, %v1037
    %v1039 = vlaneseq
    %v1040 = vshrl.u32 %v1039, 7
    %v1041 = vsub.s32 1, %v1040
    %v1042 = vrot.slane %v969, %v1041
    %v1043 = vlaneseq
    %v1044 = vshrl.u32 %v1043, 7
    %v1045 = vsub.s32 1, %v1044
    %v1046 = vrot.slane %v972, %v1045
    %v1047 = vmul.f32 %v261, %v1018
    %v1048 = vmul.f32 %v265, %v1022
    %v1049 = vmul.f32 %v269, %v1026
    %v1050 = vmul.f32 %v273, %v1030
    %v1051 = vmul.f32 %v277, %v1034
    %v1052 = vmul.f32 %v281, %v1038
    %v1053 = vmul.f32 %v285, %v1042
    %v1054 = vmul.f32 %v289, %v1046
    %v1055 = vadd.f32 %v1007, %v1047
    %v1056 = vadd.f32 %v1008, %v1048
    %v1057 = vadd.f32 %v1009, %v1049
    %v1058 = vadd.f32 %v1010, %v1050
    %v1059 = vadd.f32 %v1011, %v1051
    %v1060 = vadd.f32 %v1012, %v1052
    %v1061 = vadd.f32 %v1013, %v1053
    %v1062 = vadd.f32 %v1014, %v1054
    %v1063 = vlaneseq
    %v1064 = vshrl.u32 %v1063, 7
    %v1065 = vsub.s32 2, %v1064
    %v1066 = vrot.slane %v945, %v1065
    %v1067 = vlaneseq
    %v1068 = vshrl.u32 %v1067, 7
    %v1069 = vsub.s32 2, %v1068
    %v1070 = vrot.slane %v948, %v1069
    %v1071 = vlaneseq
    %v1072 = vshrl.u32 %v1071, 7
    %v1073 = vsub.s32 2, %v1072
    %v1074 = vrot.slane %v953, %v1073
    %v1075 = vlaneseq
    %v1076 = vshrl.u32 %v1075, 7
    %v1077 = vsub.s32 2, %v1076
    %v1078 = vrot.slane %v956, %v1077
    %v1079 = vlaneseq
    %v1080 = vshrl.u32 %v1079, 7
    %v1081 = vsub.s32 2, %v1080
    %v1082 = vrot.slane %v961, %v1081
    %v1083 = vlaneseq
    %v1084 = vshrl.u32 %v1083, 7
    %v1085 = vsub.s32 2, %v1084
    %v1086 = vrot.slane %v964, %v1085
    %v1087 = vlaneseq
    %v1088 = vshrl.u32 %v1087, 7
    %v1089 = vsub.s32 2, %v1088
    %v1090 = vrot.slane %v969, %v1089
    %v1091 = vlaneseq
    %v1092 = vshrl.u32 %v1091, 7
    %v1093 = vsub.s32 2, %v1092
    %v1094 = vrot.slane %v972, %v1093
    %v1095 = vmul.f32 %v341, %v1066
    %v1096 = vmul.f32 %v345, %v1070
    %v1097 = vmul.f32 %v349, %v1074
    %v1098 = vmul.f32 %v353, %v1078
    %v1099 = vmul.f32 %v357, %v1082
    %v1100 = vmul.f32 %v361, %v1086
    %v1101 = vmul.f32 %v365, %v1090
    %v1102 = vmul.f32 %v369, %v1094
    %v1103 = vadd.f32 %v1055, %v1095
    %v1104 = vadd.f32 %v1056, %v1096
    %v1105 = vadd.f32 %v1057, %v1097
    %v1106 = vadd.f32 %v1058, %v1098
    %v1107 = vadd.f32 %v1059, %v1099
    %v1108 = vadd.f32 %v1060, %v1100
    %v1109 = vadd.f32 %v1061, %v1101
    %v1110 = vadd.f32 %v1062, %v1102
    %v1111 = vlaneseq
    %v1112 = vshrl.u32 %v1111, 7
    %v1113 = vsub.s32 3, %v1112
    %v1114 = vrot.slane %v945, %v1113
    %v1115 = vlaneseq
    %v1116 = vshrl.u32 %v1115, 7
    %v1117 = vsub.s32 3, %v1116
    %v1118 = vrot.slane %v948, %v1117
    %v1119 = vlaneseq
    %v1120 = vshrl.u32 %v1119, 7
    %v1121 = vsub.s32 3, %v1120
    %v1122 = vrot.slane %v953, %v1121
    %v1123 = vlaneseq
    %v1124 = vshrl.u32 %v1123, 7
    %v1125 = vsub.s32 3, %v1124
    %v1126 = vrot.slane %v956, %v1125
    %v1127 = vlaneseq
    %v1128 = vshrl.u32 %v1127, 7
    %v1129 = vsub.s32 3, %v1128
    %v1130 = vrot.slane %v961, %v1129
    %v1131 = vlaneseq
    %v1132 = vshrl.u32 %v1131, 7
    %v1133 = vsub.s32 3, %v1132
    %v1134 = vrot.slane %v964, %v1133
    %v1135 = vlaneseq
    %v1136 = vshrl.u32 %v1135, 7
    %v1137 = vsub.s32 3, %v1136
    %v1138 = vrot.slane %v969, %v1137
    %v1139 = vlaneseq
    %v1140 = vshrl.u32 %v1139, 7
    %v1141 = vsub.s32 3, %v1140
    %v1142 = vrot.slane %v972, %v1141
    %v1143 = vmul.f32 %v421, %v1114
    %v1144 = vmul.f32 %v425, %v1118
    %v1145 = vmul.f32 %v429, %v1122
    %v1146 = vmul.f32 %v433, %v1126
    %v1147 = vmul.f32 %v437, %v1130
    %v1148 = vmul.f32 %v441, %v1134
    %v1149 = vmul.f32 %v445, %v1138
    %v1150 = vmul.f32 %v449, %v1142
    %v1151 = vadd.f32 %v1103, %v1143
    %v1152 = vadd.f32 %v1104, %v1144
    %v1153 = vadd.f32 %v1105, %v1145
    %v1154 = vadd.f32 %v1106, %v1146
    %v1155 = vadd.f32 %v1107, %v1147
    %v1156 = vadd.f32 %v1108, %v1148
    %v1157 = vadd.f32 %v1109, %v1149
    %v1158 = vadd.f32 %v1110, %v1150
    %v1159 = vlaneseq
    %v1160 = vshrl.u32 %v1159, 7
    %v1161 = vsub.s32 4, %v1160
    %v1162 = vrot.slane %v945, %v1161
    %v1163 = vlaneseq
    %v1164 = vshrl.u32 %v1163, 7
    %v1165 = vsub.s32 4, %v1164
    %v1166 = vrot.slane %v948, %v1165
    %v1167 = vlaneseq
    %v1168 = vshrl.u32 %v1167, 7
    %v1169 = vsub.s32 4, %v1168
    %v1170 = vrot.slane %v953, %v1169
    %v1171 = vlaneseq
    %v1172 = vshrl.u32 %v1171, 7
    %v1173 = vsub.s32 4, %v1172
    %v1174 = vrot.slane %v956, %v1173
    %v1175 = vlaneseq
    %v1176 = vshrl.u32 %v1175, 7
    %v1177 = vsub.s32 4, %v1176
    %v1178 = vrot.slane %v961, %v1177
    %v1179 = vlaneseq
    %v1180 = vshrl.u32 %v1179, 7
    %v1181 = vsub.s32 4, %v1180
    %v1182 = vrot.slane %v964, %v1181
    %v1183 = vlaneseq
    %v1184 = vshrl.u32 %v1183, 7
    %v1185 = vsub.s32 4, %v1184
    %v1186 = vrot.slane %v969, %v1185
    %v1187 = vlaneseq
    %v1188 = vshrl.u32 %v1187, 7
    %v1189 = vsub.s32 4, %v1188
    %v1190 = vrot.slane %v972, %v1189
    %v1191 = vmul.f32 %v501, %v1162
    %v1192 = vmul.f32 %v505, %v1166
    %v1193 = vmul.f32 %v509, %v1170
    %v1194 = vmul.f32 %v513, %v1174
    %v1195 = vmul.f32 %v517, %v1178
    %v1196 = vmul.f32 %v521, %v1182
    %v1197 = vmul.f32 %v525, %v1186
    %v1198 = vmul.f32 %v529, %v1190
    %v1199 = vadd.f32 %v1151, %v1191
    %v1200 = vadd.f32 %v1152, %v1192
    %v1201 = vadd.f32 %v1153, %v1193
    %v1202 = vadd.f32 %v1154, %v1194
    %v1203 = vadd.f32 %v1155, %v1195
    %v1204 = vadd.f32 %v1156, %v1196
    %v1205 = vadd.f32 %v1157, %v1197
    %v1206 = vadd.f32 %v1158, %v1198
    %v1207 = vlaneseq
    %v1208 = vshrl.u32 %v1207, 7
    %v1209 = vsub.s32 5, %v1208
    %v1210 = vrot.slane %v945, %v1209
    %v1211 = vlaneseq
    %v1212 = vshrl.u32 %v1211, 7
    %v1213 = vsub.s32 5, %v1212
    %v1214 = vrot.slane %v948, %v1213
    %v1215 = vlaneseq
    %v1216 = vshrl.u32 %v1215, 7
    %v1217 = vsub.s32 5, %v1216
    %v1218 = vrot.slane %v953, %v1217
    %v1219 = vlaneseq
    %v1220 = vshrl.u32 %v1219, 7
    %v1221 = vsub.s32 5, %v1220
    %v1222 = vrot.slane %v956, %v1221
    %v1223 = vlaneseq
    %v1224 = vshrl.u32 %v1223, 7
    %v1225 = vsub.s32 5, %v1224
    %v1226 = vrot.slane %v961, %v1225
    %v1227 = vlaneseq
    %v1228 = vshrl.u32 %v1227, 7
    %v1229 = vsub.s32 5, %v1228
    %v1230 = vrot.slane %v964, %v1229
    %v1231 = vlaneseq
    %v1232 = vshrl.u32 %v1231, 7
    %v1233 = vsub.s32 5, %v1232
    %v1234 = vrot.slane %v969, %v1233
    %v1235 = vlaneseq
    %v1236 = vshrl.u32 %v1235, 7
    %v1237 = vsub.s32 5, %v1236
    %v1238 = vrot.slane %v972, %v1237
    %v1239 = vmul.f32 %v581, %v1210
    %v1240 = vmul.f32 %v585, %v1214
    %v1241 = vmul.f32 %v589, %v1218
    %v1242 = vmul.f32 %v593, %v1222
    %v1243 = vmul.f32 %v597, %v1226
    %v1244 = vmul.f32 %v601, %v1230
    %v1245 = vmul.f32 %v605, %v1234
    %v1246 = vmul.f32 %v609, %v1238
    %v1247 = vadd.f32 %v1199, %v1239
    %v1248 = vadd.f32 %v1200, %v1240
    %v1249 = vadd.f32 %v1201, %v1241
    %v1250 = vadd.f32 %v1202, %v1242
    %v1251 = vadd.f32 %v1203, %v1243
    %v1252 = vadd.f32 %v1204, %v1244
    %v1253 = vadd.f32 %v1205, %v1245
    %v1254 = vadd.f32 %v1206, %v1246
    %v1255 = vlaneseq
    %v1256 = vshrl.u32 %v1255, 7
    %v1257 = vsub.s32 6, %v1256
    %v1258 = vrot.slane %v945, %v1257
    %v1259 = vlaneseq
    %v1260 = vshrl.u32 %v1259, 7
    %v1261 = vsub.s32 6, %v1260
    %v1262 = vrot.slane %v948, %v1261
    %v1263 = vlaneseq
    %v1264 = vshrl.u32 %v1263, 7
    %v1265 = vsub.s32 6, %v1264
    %v1266 = vrot.slane %v953, %v1265
    %v1267 = vlaneseq
    %v1268 = vshrl.u32 %v1267, 7
    %v1269 = vsub.s32 6, %v1268
    %v1270 = vrot.slane %v956, %v1269
    %v1271 = vlaneseq
    %v1272 = vshrl.u32 %v1271, 7
    %v1273 = vsub.s32 6, %v1272
    %v1274 = vrot.slane %v961, %v1273
    %v1275 = vlaneseq
    %v1276 = vshrl.u32 %v1275, 7
    %v1277 = vsub.s32 6, %v1276
    %v1278 = vrot.slane %v964, %v1277
    %v1279 = vlaneseq
    %v1280 = vshrl.u32 %v1279, 7
    %v1281 = vsub.s32 6, %v1280
    %v1282 = vrot.slane %v969, %v1281
    %v1283 = vlaneseq
    %v1284 = vshrl.u32 %v1283, 7
    %v1285 = vsub.s32 6, %v1284
    %v1286 = vrot.slane %v972, %v1285
    %v1287 = vmul.f32 %v661, %v1258
    %v1288 = vmul.f32 %v665, %v1262
    %v1289 = vmul.f32 %v669, %v1266
    %v1290 = vmul.f32 %v673, %v1270
    %v1291 = vmul.f32 %v677, %v1274
    %v1292 = vmul.f32 %v681, %v1278
    %v1293 = vmul.f32 %v685, %v1282
    %v1294 = vmul.f32 %v689, %v1286
    %v1295 = vadd.f32 %v1247, %v1287
    %v1296 = vadd.f32 %v1248, %v1288
    %v1297 = vadd.f32 %v1249, %v1289
    %v1298 = vadd.f32 %v1250, %v1290
    %v1299 = vadd.f32 %v1251, %v1291
    %v1300 = vadd.f32 %v1252, %v1292
    %v1301 = vadd.f32 %v1253, %v1293
    %v1302 = vadd.f32 %v1254, %v1294
    %v1303 = vlaneseq
    %v1304 = vshrl.u32 %v1303, 7
    %v1305 = vsub.s32 7, %v1304
    %v1306 = vrot.slane %v945, %v1305
    %v1307 = vlaneseq
    %v1308 = vshrl.u32 %v1307, 7
    %v1309 = vsub.s32 7, %v1308
    %v1310 = vrot.slane %v948, %v1309
    %v1311 = vlaneseq
    %v1312 = vshrl.u32 %v1311, 7
    %v1313 = vsub.s32 7, %v1312
    %v1314 = vrot.slane %v953, %v1313
    %v1315 = vlaneseq
    %v1316 = vshrl.u32 %v1315, 7
    %v1317 = vsub.s32 7, %v1316
    %v1318 = vrot.slane %v956, %v1317
    %v1319 = vlaneseq
    %v1320 = vshrl.u32 %v1319, 7
    %v1321 = vsub.s32 7, %v1320
    %v1322 = vrot.slane %v961, %v1321
    %v1323 = vlaneseq
    %v1324 = vshrl.u32 %v1323, 7
    %v1325 = vsub.s32 7, %v1324
    %v1326 = vrot.slane %v964, %v1325
    %v1327 = vlaneseq
    %v1328 = vshrl.u32 %v1327, 7
    %v1329 = vsub.s32 7, %v1328
    %v1330 = vrot.slane %v969, %v1329
    %v1331 = vlaneseq
    %v1332 = vshrl.u32 %v1331, 7
    %v1333 = vsub.s32 7, %v1332
    %v1334 = vrot.slane %v972, %v1333
    %v1335 = vmul.f32 %v741, %v1306
    %v1336 = vmul.f32 %v745, %v1310
    %v1337 = vmul.f32 %v749, %v1314
    %v1338 = vmul.f32 %v753, %v1318
    %v1339 = vmul.f32 %v757, %v1322
    %v1340 = vmul.f32 %v761, %v1326
    %v1341 = vmul.f32 %v765, %v1330
    %v1342 = vmul.f32 %v769, %v1334
    %v1343 = vadd.f32 %v1295, %v1335
    %v1344 = vadd.f32 %v1296, %v1336
    %v1345 = vadd.f32 %v1297, %v1337
    %v1346 = vadd.f32 %v1298, %v1338
    %v1347 = vadd.f32 %v1299, %v1339
    %v1348 = vadd.f32 %v1300, %v1340
    %v1349 = vadd.f32 %v1301, %v1341
    %v1350 = vadd.f32 %v1302, %v1342
    %v1351 = vld [vmem:[%s5] sm:$0x1]
    %v1353 = vlaneseq
    %v1354 = vshrl.u32 %v1353, 7
    %v1355 = vsub.s32 0, %v1354
    %v1356 = vrot.slane %v1351, %v1355
    %v1358 = vadd.f32 %v1343, %v1356
    %v1359 = vadd.f32 %v1344, %v1356
    %v1360 = vadd.f32 %v1345, %v1356
    %v1361 = vadd.f32 %v1346, %v1356
    %v1362 = vadd.f32 %v1347, %v1356
    %v1363 = vadd.f32 %v1348, %v1356
    %v1364 = vadd.f32 %v1349, %v1356
    %v1365 = vadd.f32 %v1350, %v1356
    %v1366 = vmax.f32 %v1358, 0.0
    %v1367 = vmax.f32 %v1359, 0.0
    %v1368 = vmax.f32 %v1360, 0.0
    %v1369 = vmax.f32 %v1361, 0.0
    %v1370 = vmax.f32 %v1362, 0.0
    %v1371 = vmax.f32 %v1363, 0.0
    %v1372 = vmax.f32 %v1364, 0.0
    %v1373 = vmax.f32 %v1365, 0.0
    %v1374 = vrot.slane %v1366, 4
    %v1375 = vadd.f32 %v1366, %v1374
    %v1376 = vrot.slane %v1375, 2
    %v1377 = vadd.f32 %v1375, %v1376
    %v1378 = vrot.slane %v1377, 1
    %v1379 = vadd.f32 %v1377, %v1378
    %v1380 = vrot.slane %v1367, 4
    %v1381 = vadd.f32 %v1367, %v1380
    %v1382 = vrot.slane %v1381, 2
    %v1383 = vadd.f32 %v1381, %v1382
    %v1384 = vrot.slane %v1383, 1
    %v1385 = vadd.f32 %v1383, %v1384
    %v1386 = vrot.slane %v1368, 4
    %v1387 = vadd.f32 %v1368, %v1386
    %v1388 = vrot.slane %v1387, 2
    %v1389 = vadd.f32 %v1387, %v1388
    %v1390 = vrot.slane %v1389, 1
    %v1391 = vadd.f32 %v1389, %v1390
    %v1392 = vrot.slane %v1369, 4
    %v1393 = vadd.f32 %v1369, %v1392
    %v1394 = vrot.slane %v1393, 2
    %v1395 = vadd.f32 %v1393, %v1394
    %v1396 = vrot.slane %v1395, 1
    %v1397 = vadd.f32 %v1395, %v1396
    %v1398 = vrot.slane %v1370, 4
    %v1399 = vadd.f32 %v1370, %v1398
    %v1400 = vrot.slane %v1399, 2
    %v1401 = vadd.f32 %v1399, %v1400
    %v1402 = vrot.slane %v1401, 1
    %v1403 = vadd.f32 %v1401, %v1402
    %v1404 = vrot.slane %v1371, 4
    %v1405 = vadd.f32 %v1371, %v1404
    %v1406 = vrot.slane %v1405, 2
    %v1407 = vadd.f32 %v1405, %v1406
    %v1408 = vrot.slane %v1407, 1
    %v1409 = vadd.f32 %v1407, %v1408
    %v1410 = vrot.slane %v1372, 4
    %v1411 = vadd.f32 %v1372, %v1410
    %v1412 = vrot.slane %v1411, 2
    %v1413 = vadd.f32 %v1411, %v1412
    %v1414 = vrot.slane %v1413, 1
    %v1415 = vadd.f32 %v1413, %v1414
    %v1416 = vrot.slane %v1373, 4
    %v1417 = vadd.f32 %v1373, %v1416
    %v1418 = vrot.slane %v1417, 2
    %v1419 = vadd.f32 %v1417, %v1418
    %v1420 = vrot.slane %v1419, 1
    %v1421 = vadd.f32 %v1419, %v1420
    %v1422 = vld [vmem:[%s6] sm:$0x1]
    %v1424 = vlaneseq
    %v1425 = vshrl.u32 %v1424, 7
    %v1426 = vsub.s32 0, %v1425
    %v1427 = vrot.slane %v1422, %v1426
    %v1429 = vmul.f32 %v1379, %v1427
    %v1430 = vmul.f32 %v1385, %v1427
    %v1431 = vmul.f32 %v1391, %v1427
    %v1432 = vmul.f32 %v1397, %v1427
    %v1433 = vmul.f32 %v1403, %v1427
    %v1434 = vmul.f32 %v1409, %v1427
    %v1435 = vmul.f32 %v1415, %v1427
    %v1436 = vmul.f32 %v1421, %v1427
    %v1445 = vrot.slane %v1430, 7
    %vm1446 = vcmask 1041409
    %v1447 = vsel %vm1446, %v1445, %v1429
    %v1448 = vrot.slane %v1431, 6
    %vm1449 = vcmask 1042434
    %v1450 = vsel %vm1449, %v1448, %v1447
    %v1451 = vrot.slane %v1432, 5
    %vm1452 = vcmask 1043459
    %v1453 = vsel %vm1452, %v1451, %v1450
    %v1454 = vrot.slane %v1433, 4
    %vm1455 = vcmask 1044484
    %v1456 = vsel %vm1455, %v1454, %v1453
    %v1457 = vrot.slane %v1434, 3
    %vm1458 = vcmask 1045509
    %v1459 = vsel %vm1458, %v1457, %v1456
    %v1460 = vrot.slane %v1435, 2
    %vm1461 = vcmask 1046534
    %v1462 = vsel %vm1461, %v1460, %v1459
    %v1463 = vrot.slane %v1436, 1
    %vm1464 = vcmask 1047559
    %v1465 = vsel %vm1464, %v1463, %v1462
    %1467 = vadd.xlane.f32.xlu0 %v1465
    %v1468 = vpop.xlane.xlu0 %1467
    %s1469 = sld [smem:[#allocation2]]
    %v1470 = vstv %s1469
    %v1471 = vadd.f32 %v1468, %v1470
    %1472 = vst [vmem:[#allocation8] sm:$0xff] %v1471
    // Predicated region
    $region42: #{tpu_custom_call.1} parent=1 // pred_check
      _
    $region43: #{tpu_custom_call.1} parent=1 // pred_check_branch
      %1474 = sbr.rel (0) target = $region45
    $region44: #{tpu_custom_call.1} parent=1 // pred_region
      %s1476 = ssub.s32 128, 128
      %1477 = vsyncadd [#allocation5], %s1476
      %s1479 = sshll.u32 [#allocation8], 4
      %s1480 = int_to_ptr.vmem [resolvable:$true] %s1479
      %1482 = dma.vmem_to_hbm [thread:$0]  %s1480, 128, %s8, [#allocation5]
    $region45: #{tpu_custom_call.1} parent=1 // pred_fallthru
      _
    // Predicated region
    $region46: #{tpu_custom_call.1} parent=1 // pred_check
      _
    $region47: #{tpu_custom_call.1} parent=1 // pred_check_branch
      %1484 = sbr.rel (0) target = $region49
    $region48: #{tpu_custom_call.1} parent=1 // pred_region
      %1485 = dma.done [#allocation5], 128
    $region49: #{tpu_custom_call.1} parent=1 // pred_fallthru
      _
    %1486 = vsyncpa [#allocation4], 1
    %1487 = vsyncpa [#allocation7], 1
    %1488 = vsyncpa [#allocation5], 1

// kernel: tpu_custom_call.1
$region0: #{tpu_custom_call.1}
  #allocation0 [shape = 'u32[]', space=smem, size = 0x4, offset = 0x4, fixed_abs, tag = 'smem constant byte address 0x4 - core index']
  #allocation1 [shape = 'u32[144,128]{1,0:T(1,128)}', space=vmem, size = 0x12000, scoped, tag = 'internal scratch']
  #allocation2 [shape = 'f32[1]{0:T(128)S(6)}', space=smem, size = 0x200, scoped, tag = 'scoped memory for tpu_custom_call.1']
  %s0 = inlined_call_operand.vmem [shape: bf16[64,8], index: 0, kind: input, shape index: {}]
  %s1 = inlined_call_operand.hbm [shape: f32[8,8,8], index: 1, kind: input, shape index: {}]
  %s2 = inlined_call_operand.vmem [shape: bf16[8,128], index: 2, kind: input, shape index: {}]
  %s3 = inlined_call_operand.vmem [shape: f32[1,128], index: 3, kind: input, shape index: {}]
  %s4 = inlined_call_operand.hbm [shape: bf16[128,128], index: 4, kind: input, shape index: {}]
  %s5 = inlined_call_operand.vmem [shape: f32[1,128], index: 5, kind: input, shape index: {}]
  %s6 = inlined_call_operand.vmem [shape: f32[1,128], index: 6, kind: input, shape index: {}]
  %s7 = inlined_call_operand.<no memory space> [shape: f32[1], index: 7, kind: input, shape index: {}]
  %s8 = inlined_call_operand.hbm [shape: f32[8,128], index: 8, kind: output, shape index: {}]
  %s9 = sld [smem:[#allocation0]]
  $region50: #{tpu_custom_call.1} parent=0
    _
  %s11 = ssub.s32 1, %s9
  %s12 = scalar_select 0, %s11, %s9
  %13 = sst [smem:[#allocation2]] %s7
  $region1: #{tpu_custom_call.1} parent=0
    #allocation3 [shape = 'u8[32768]{0}', space=vmem, size = 0x8000, scoped, tag = 'input window, operand 1, single buffered']
    #allocation4 [shape = 's32[1]{0}', space=sflag, size = 0x4, scoped, tag = 'scoped memory for tpu_custom_call.1']
    #allocation5 [shape = 's32[1]{0}', space=sflag, size = 0x4, scoped, tag = 'scoped memory for tpu_custom_call.1']
    #allocation6 [shape = 'u8[32768]{0}', space=vmem, size = 0x8000, scoped, tag = 'input window, operand 4, single buffered']
    #allocation7 [shape = 's32[1]{0}', space=sflag, size = 0x4, scoped, tag = 'scoped memory for tpu_custom_call.1']
    #allocation8 [shape = 'u8[4096]{0}', space=vmem, size = 0x1000, scoped, tag = 'output window, operand 0, single buffered']
    %14 = vsyncpa [#allocation4], 0
    %15 = vsyncpa [#allocation7], 0
    %16 = vsyncpa [#allocation5], 0
    // Predicated region
    $region2: #{tpu_custom_call.1} parent=1 // pred_check
      _
    $region3: #{tpu_custom_call.1} parent=1 // pred_check_branch
      %18 = sbr.rel (0) target = $region5
    $region4: #{tpu_custom_call.1} parent=1 // pred_region
      _
    $region5: #{tpu_custom_call.1} parent=1 // pred_fallthru
      _
    // Predicated region
    $region6: #{tpu_custom_call.1} parent=1 // pred_check
      _
    $region7: #{tpu_custom_call.1} parent=1 // pred_check_branch
      %20 = sbr.rel (0) target = $region9
    $region8: #{tpu_custom_call.1} parent=1 // pred_region
      %s22 = ssub.s32 1024, 1024
      %23 = vsyncadd [#allocation4], %s22
      %s24 = sshll.u32 [#allocation3], 4
      %s25 = int_to_ptr.vmem [resolvable:$true] %s24
      %30 = dma.hbm_to_vmem [thread:$0]  %s1, 1024, %s25, [#allocation4], 128, 128, 8
    $region9: #{tpu_custom_call.1} parent=1 // pred_fallthru
      _
    // Predicated region
    $region10: #{tpu_custom_call.1} parent=1 // pred_check
      _
    $region11: #{tpu_custom_call.1} parent=1 // pred_check_branch
      %32 = sbr.rel (0) target = $region13
    $region12: #{tpu_custom_call.1} parent=1 // pred_region
      _
    $region13: #{tpu_custom_call.1} parent=1 // pred_fallthru
      _
    // Predicated region
    $region14: #{tpu_custom_call.1} parent=1 // pred_check
      _
    $region15: #{tpu_custom_call.1} parent=1 // pred_check_branch
      %34 = sbr.rel (0) target = $region17
    $region16: #{tpu_custom_call.1} parent=1 // pred_region
      _
    $region17: #{tpu_custom_call.1} parent=1 // pred_fallthru
      _
    // Predicated region
    $region18: #{tpu_custom_call.1} parent=1 // pred_check
      _
    $region19: #{tpu_custom_call.1} parent=1 // pred_check_branch
      %36 = sbr.rel (0) target = $region21
    $region20: #{tpu_custom_call.1} parent=1 // pred_region
      %s38 = ssub.s32 1024, 1024
      %39 = vsyncadd [#allocation7], %s38
      %s40 = sshll.u32 [#allocation6], 4
      %s41 = int_to_ptr.vmem [resolvable:$true] %s40
      %46 = dma.hbm_to_vmem [thread:$0]  %s4, 1024, %s41, [#allocation7], 64, 64, 4
    $region21: #{tpu_custom_call.1} parent=1 // pred_fallthru
      _
    // Predicated region
    $region22: #{tpu_custom_call.1} parent=1 // pred_check
      _
    $region23: #{tpu_custom_call.1} parent=1 // pred_check_branch
      %48 = sbr.rel (0) target = $region25
    $region24: #{tpu_custom_call.1} parent=1 // pred_region
      _
    $region25: #{tpu_custom_call.1} parent=1 // pred_fallthru
      _
    // Predicated region
    $region26: #{tpu_custom_call.1} parent=1 // pred_check
      _
    $region27: #{tpu_custom_call.1} parent=1 // pred_check_branch
      %50 = sbr.rel (0) target = $region29
    $region28: #{tpu_custom_call.1} parent=1 // pred_region
      _
    $region29: #{tpu_custom_call.1} parent=1 // pred_fallthru
      _
    // Predicated region
    $region30: #{tpu_custom_call.1} parent=1 // pred_check
      _
    $region31: #{tpu_custom_call.1} parent=1 // pred_check_branch
      %52 = sbr.rel (0) target = $region33
    $region32: #{tpu_custom_call.1} parent=1 // pred_region
      _
    $region33: #{tpu_custom_call.1} parent=1 // pred_fallthru
      _
    // Predicated region
    $region34: #{tpu_custom_call.1} parent=1 // pred_check
      _
    $region35: #{tpu_custom_call.1} parent=1 // pred_check_branch
      %54 = sbr.rel (0) target = $region37
    $region36: #{tpu_custom_call.1} parent=1 // pred_region
      %55 = dma.done [#allocation4], 1024
    $region37: #{tpu_custom_call.1} parent=1 // pred_fallthru
      _
    // Predicated region
    $region38: #{tpu_custom_call.1} parent=1 // pred_check
      _
    $region39: #{tpu_custom_call.1} parent=1 // pred_check_branch
      %57 = sbr.rel (0) target = $region41
    $region40: #{tpu_custom_call.1} parent=1 // pred_region
      %58 = dma.done [#allocation7], 1024
    $region41: #{tpu_custom_call.1} parent=1 // pred_fallthru
      _
    %v60 = vld [vmem:[#allocation3] sm:$0xff]
    %v61 = vld [vmem:[#allocation3 + $0x8] sm:$0xff]
    %v62 = vld [vmem:[#allocation3 + $0x10] sm:$0xff]
    %v63 = vld [vmem:[#allocation3 + $0x18] sm:$0xff]
    %v64 = vld [vmem:[#allocation3 + $0x20] sm:$0xff]
    %v65 = vld [vmem:[#allocation3 + $0x28] sm:$0xff]
    %v66 = vld [vmem:[#allocation3 + $0x30] sm:$0xff]
    %v67 = vld [vmem:[#allocation3 + $0x38] sm:$0xff]
    %v68 = vld [vmem:[%s0] sm:$0xf]
    %v69 = vld [vmem:[%s0 + $0x4] sm:$0xf]
    %v70 = vld [vmem:[%s0 + $0x8] sm:$0xf]
    %v71 = vld [vmem:[%s0 + $0xc] sm:$0xf]
    %v72 = vld [vmem:[%s0 + $0x10] sm:$0xf]
    %v73 = vld [vmem:[%s0 + $0x14] sm:$0xf]
    %v74 = vld [vmem:[%s0 + $0x18] sm:$0xf]
    %v75 = vld [vmem:[%s0 + $0x1c] sm:$0xf]
    %v76 = vld [vmem:[%s2] sm:$0xf]
    %v85 = vunpack.c.l.b16 %v68
    %v86 = vunpack.c.l.b16 %v69
    %v87 = vunpack.c.l.b16 %v70
    %v88 = vunpack.c.l.b16 %v71
    %v89 = vunpack.c.l.b16 %v72
    %v90 = vunpack.c.l.b16 %v73
    %v91 = vunpack.c.l.b16 %v74
    %v92 = vunpack.c.l.b16 %v75
    %v93 = vpack.c.b16 %v86, %v85
    %v94 = vpack.c.b16 %v88, %v87
    %v95 = vpack.c.b16 %v90, %v89
    %v96 = vpack.c.b16 %v92, %v91
    %vm97 = vcmask 64512
    %v99 = vsel %vm97, %v93, 0
    %v102 = vsel %vm97, %v94, 0
    %v105 = vsel %vm97, %v95, 0
    %v108 = vsel %vm97, %v96, 0
    %vm110 = vcmask 1043456
    %v112 = vsel %vm110, %v76, 0
    %114 = vmatprep.subr.bf16.mxu0 0
    %115 = vmatpush1.bf16.msra.mxu0 %v112
    %116 = vmatprep.subr.bf16.mxu0 0
    %117 = vmatpush1.bf16.msra.mxu0 0
    %118 = vmatprep.subr.bf16.mxu0 0
    %119 = vmatpush1.bf16.msra.mxu0 0
    %120 = vmatprep.subr.bf16.mxu0 0
    %121 = vmatpush1.bf16.msra.mxu0 0
    %122 = vmatprep.subr.bf16.mxu0 0
    %123 = vmatpush1.bf16.msra.mxu0 0
    %124 = vmatprep.subr.bf16.mxu0 0
    %125 = vmatpush1.bf16.msra.mxu0 0
    %126 = vmatprep.subr.bf16.mxu0 0
    %127 = vmatpush1.bf16.msra.mxu0 0
    %128 = vmatprep.subr.bf16.mxu0 0
    %129 = vmatpush1.bf16.msra.mxu0 0
    %130 = vmatprep.subr.bf16.mxu0 0
    %131 = vmatpush1.bf16.msra.mxu0 0
    %132 = vmatprep.subr.bf16.mxu0 0
    %133 = vmatpush1.bf16.msra.mxu0 0
    %134 = vmatprep.subr.bf16.mxu0 0
    %135 = vmatpush1.bf16.msra.mxu0 0
    %136 = vmatprep.subr.bf16.mxu0 0
    %137 = vmatpush1.bf16.msra.mxu0 0
    %138 = vmatprep.subr.bf16.mxu0 0
    %139 = vmatpush1.bf16.msra.mxu0 0
    %140 = vmatprep.subr.bf16.mxu0 0
    %141 = vmatpush1.bf16.msra.mxu0 0
    %142 = vmatprep.subr.bf16.mxu0 0
    %143 = vmatpush1.bf16.msra.mxu0 0
    %144 = vmatprep.subr.bf16.mxu0 0
    %145 = vmatpush1.bf16.msra.mxu0 0
    %146 = vmatprep.mubr.bf16.mxu0 0
    %147 = vmatmul.mubr.bf16.gmra.mrb[0].mxu0 %v99
    %v148 = vpop.f32.mrb[0].mxu0
    %v149 = vadd.f32 0.0, %v148
    %v150 = vpop.f32.mrb[0].mxu0
    %v151 = vpop.f32.mrb[0].mxu0
    %v152 = vadd.f32 0.0, %v151
    %v153 = vpop.f32.mrb[0].mxu0
    %154 = vmatprep.mubr.bf16.mxu0 0
    %155 = vmatmul.mubr.bf16.gmra.mrb[0].mxu0 %v102
    %v156 = vpop.f32.mrb[0].mxu0
    %v157 = vadd.f32 0.0, %v156
    %v158 = vpop.f32.mrb[0].mxu0
    %v159 = vpop.f32.mrb[0].mxu0
    %v160 = vadd.f32 0.0, %v159
    %v161 = vpop.f32.mrb[0].mxu0
    %162 = vmatprep.mubr.bf16.mxu0 0
    %163 = vmatmul.mubr.bf16.gmra.mrb[0].mxu0 %v105
    %v164 = vpop.f32.mrb[0].mxu0
    %v165 = vadd.f32 0.0, %v164
    %v166 = vpop.f32.mrb[0].mxu0
    %v167 = vpop.f32.mrb[0].mxu0
    %v168 = vadd.f32 0.0, %v167
    %v169 = vpop.f32.mrb[0].mxu0
    %170 = vmatprep.mubr.bf16.mxu0 0
    %171 = vmatmul.mubr.bf16.gmra.mrb[0].mxu0 %v108
    %v172 = vpop.f32.mrb[0].mxu0
    %v173 = vadd.f32 0.0, %v172
    %v174 = vpop.f32.mrb[0].mxu0
    %v175 = vpop.f32.mrb[0].mxu0
    %v176 = vadd.f32 0.0, %v175
    %v177 = vpop.f32.mrb[0].mxu0
    %178 = vdwg.mxu0
    %180 = vset.pattern.permute.xlu0 0
    %181 = vperm.xlu0 %180, %v60
    %v182 = vpop.permute.xlu0 %181
    %185 = vset.pattern.permute.xlu0 0
    %186 = vperm.xlu0 %185, %v61
    %v187 = vpop.permute.xlu0 %186
    %190 = vset.pattern.permute.xlu0 0
    %191 = vperm.xlu0 %190, %v62
    %v192 = vpop.permute.xlu0 %191
    %195 = vset.pattern.permute.xlu0 0
    %196 = vperm.xlu0 %195, %v63
    %v197 = vpop.permute.xlu0 %196
    %200 = vset.pattern.permute.xlu0 0
    %201 = vperm.xlu0 %200, %v64
    %v202 = vpop.permute.xlu0 %201
    %205 = vset.pattern.permute.xlu0 0
    %206 = vperm.xlu0 %205, %v65
    %v207 = vpop.permute.xlu0 %206
    %210 = vset.pattern.permute.xlu0 0
    %211 = vperm.xlu0 %210, %v66
    %v212 = vpop.permute.xlu0 %211
    %215 = vset.pattern.permute.xlu0 0
    %216 = vperm.xlu0 %215, %v67
    %v217 = vpop.permute.xlu0 %216
    %v219 = vlaneseq
    %v220 = vshrl.u32 %v219, 7
    %v221 = vsub.s32 0, %v220
    %v222 = vrot.slane %v149, %v221
    %v223 = vlaneseq
    %v224 = vshrl.u32 %v223, 7
    %v225 = vsub.s32 0, %v224
    %v226 = vrot.slane %v152, %v225
    %v227 = vlaneseq
    %v228 = vshrl.u32 %v227, 7
    %v229 = vsub.s32 0, %v228
    %v230 = vrot.slane %v157, %v229
    %v231 = vlaneseq
    %v232 = vshrl.u32 %v231, 7
    %v233 = vsub.s32 0, %v232
    %v234 = vrot.slane %v160, %v233
    %v235 = vlaneseq
    %v236 = vshrl.u32 %v235, 7
    %v237 = vsub.s32 0, %v236
    %v238 = vrot.slane %v165, %v237
    %v239 = vlaneseq
    %v240 = vshrl.u32 %v239, 7
    %v241 = vsub.s32 0, %v240
    %v242 = vrot.slane %v168, %v241
    %v243 = vlaneseq
    %v244 = vshrl.u32 %v243, 7
    %v245 = vsub.s32 0, %v244
    %v246 = vrot.slane %v173, %v245
    %v247 = vlaneseq
    %v248 = vshrl.u32 %v247, 7
    %v249 = vsub.s32 0, %v248
    %v250 = vrot.slane %v176, %v249
    %v251 = vmul.f32 %v182, %v222
    %v252 = vmul.f32 %v187, %v226
    %v253 = vmul.f32 %v192, %v230
    %v254 = vmul.f32 %v197, %v234
    %v255 = vmul.f32 %v202, %v238
    %v256 = vmul.f32 %v207, %v242
    %v257 = vmul.f32 %v212, %v246
    %v258 = vmul.f32 %v217, %v250
    %259 = vset.pattern.permute.xlu0 1
    %260 = vperm.xlu0 %259, %v60
    %v261 = vpop.permute.xlu0 %260
    %263 = vset.pattern.permute.xlu0 1
    %264 = vperm.xlu0 %263, %v61
    %v265 = vpop.permute.xlu0 %264
    %267 = vset.pattern.permute.xlu0 1
    %268 = vperm.xlu0 %267, %v62
    %v269 = vpop.permute.xlu0 %268
    %271 = vset.pattern.permute.xlu0 1
    %272 = vperm.xlu0 %271, %v63
    %v273 = vpop.permute.xlu0 %272
    %275 = vset.pattern.permute.xlu0 1
    %276 = vperm.xlu0 %275, %v64
    %v277 = vpop.permute.xlu0 %276
    %279 = vset.pattern.permute.xlu0 1
    %280 = vperm.xlu0 %279, %v65
    %v281 = vpop.permute.xlu0 %280
    %283 = vset.pattern.permute.xlu0 1
    %284 = vperm.xlu0 %283, %v66
    %v285 = vpop.permute.xlu0 %284
    %287 = vset.pattern.permute.xlu0 1
    %288 = vperm.xlu0 %287, %v67
    %v289 = vpop.permute.xlu0 %288
    %v291 = vlaneseq
    %v292 = vshrl.u32 %v291, 7
    %v293 = vsub.s32 1, %v292
    %v294 = vrot.slane %v149, %v293
    %v295 = vlaneseq
    %v296 = vshrl.u32 %v295, 7
    %v297 = vsub.s32 1, %v296
    %v298 = vrot.slane %v152, %v297
    %v299 = vlaneseq
    %v300 = vshrl.u32 %v299, 7
    %v301 = vsub.s32 1, %v300
    %v302 = vrot.slane %v157, %v301
    %v303 = vlaneseq
    %v304 = vshrl.u32 %v303, 7
    %v305 = vsub.s32 1, %v304
    %v306 = vrot.slane %v160, %v305
    %v307 = vlaneseq
    %v308 = vshrl.u32 %v307, 7
    %v309 = vsub.s32 1, %v308
    %v310 = vrot.slane %v165, %v309
    %v311 = vlaneseq
    %v312 = vshrl.u32 %v311, 7
    %v313 = vsub.s32 1, %v312
    %v314 = vrot.slane %v168, %v313
    %v315 = vlaneseq
    %v316 = vshrl.u32 %v315, 7
    %v317 = vsub.s32 1, %v316
    %v318 = vrot.slane %v173, %v317
    %v319 = vlaneseq
    %v320 = vshrl.u32 %v319, 7
    %v321 = vsub.s32 1, %v320
    %v322 = vrot.slane %v176, %v321
    %v323 = vmul.f32 %v261, %v294
    %v324 = vmul.f32 %v265, %v298
    %v325 = vmul.f32 %v269, %v302
    %v326 = vmul.f32 %v273, %v306
    %v327 = vmul.f32 %v277, %v310
    %v328 = vmul.f32 %v281, %v314
    %v329 = vmul.f32 %v285, %v318
    %v330 = vmul.f32 %v289, %v322
    %v331 = vadd.f32 %v251, %v323
    %v332 = vadd.f32 %v252, %v324
    %v333 = vadd.f32 %v253, %v325
    %v334 = vadd.f32 %v254, %v326
    %v335 = vadd.f32 %v255, %v327
    %v336 = vadd.f32 %v256, %v328
    %v337 = vadd.f32 %v257, %v329
    %v338 = vadd.f32 %v258, %v330
    %339 = vset.pattern.permute.xlu0 2
    %340 = vperm.xlu0 %339, %v60
    %v341 = vpop.permute.xlu0 %340
    %343 = vset.pattern.permute.xlu0 2
    %344 = vperm.xlu0 %343, %v61
    %v345 = vpop.permute.xlu0 %344
    %347 = vset.pattern.permute.xlu0 2
    %348 = vperm.xlu0 %347, %v62
    %v349 = vpop.permute.xlu0 %348
    %351 = vset.pattern.permute.xlu0 2
    %352 = vperm.xlu0 %351, %v63
    %v353 = vpop.permute.xlu0 %352
    %355 = vset.pattern.permute.xlu0 2
    %356 = vperm.xlu0 %355, %v64
    %v357 = vpop.permute.xlu0 %356
    %359 = vset.pattern.permute.xlu0 2
    %360 = vperm.xlu0 %359, %v65
    %v361 = vpop.permute.xlu0 %360
    %363 = vset.pattern.permute.xlu0 2
    %364 = vperm.xlu0 %363, %v66
    %v365 = vpop.permute.xlu0 %364
    %367 = vset.pattern.permute.xlu0 2
    %368 = vperm.xlu0 %367, %v67
    %v369 = vpop.permute.xlu0 %368
    %v371 = vlaneseq
    %v372 = vshrl.u32 %v371, 7
    %v373 = vsub.s32 2, %v372
    %v374 = vrot.slane %v149, %v373
    %v375 = vlaneseq
    %v376 = vshrl.u32 %v375, 7
    %v377 = vsub.s32 2, %v376
    %v378 = vrot.slane %v152, %v377
    %v379 = vlaneseq
    %v380 = vshrl.u32 %v379, 7
    %v381 = vsub.s32 2, %v380
    %v382 = vrot.slane %v157, %v381
    %v383 = vlaneseq
    %v384 = vshrl.u32 %v383, 7
    %v385 = vsub.s32 2, %v384
    %v386 = vrot.slane %v160, %v385
    %v387 = vlaneseq
    %v388 = vshrl.u32 %v387, 7
    %v389 = vsub.s32 2, %v388
    %v390 = vrot.slane %v165, %v389
    %v391 = vlaneseq
    %v392 = vshrl.u32 %v391, 7
    %v393 = vsub.s32 2, %v392
    %v394 = vrot.slane %v168, %v393
    %v395 = vlaneseq
    %v396 = vshrl.u32 %v395, 7
    %v397 = vsub.s32 2, %v396
    %v398 = vrot.slane %v173, %v397
    %v399 = vlaneseq
    %v400 = vshrl.u32 %v399, 7
    %v401 = vsub.s32 2, %v400
    %v402 = vrot.slane %v176, %v401
    %v403 = vmul.f32 %v341, %v374
    %v404 = vmul.f32 %v345, %v378
    %v405 = vmul.f32 %v349, %v382
    %v406 = vmul.f32 %v353, %v386
    %v407 = vmul.f32 %v357, %v390
    %v408 = vmul.f32 %v361, %v394
    %v409 = vmul.f32 %v365, %v398
    %v410 = vmul.f32 %v369, %v402
    %v411 = vadd.f32 %v331, %v403
    %v412 = vadd.f32 %v332, %v404
    %v413 = vadd.f32 %v333, %v405
    %v414 = vadd.f32 %v334, %v406
    %v415 = vadd.f32 %v335, %v407
    %v416 = vadd.f32 %v336, %v408
    %v417 = vadd.f32 %v337, %v409
    %v418 = vadd.f32 %v338, %v410
    %419 = vset.pattern.permute.xlu0 3
    %420 = vperm.xlu0 %419, %v60
    %v421 = vpop.permute.xlu0 %420
    %423 = vset.pattern.permute.xlu0 3
    %424 = vperm.xlu0 %423, %v61
    %v425 = vpop.permute.xlu0 %424
    %427 = vset.pattern.permute.xlu0 3
    %428 = vperm.xlu0 %427, %v62
    %v429 = vpop.permute.xlu0 %428
    %431 = vset.pattern.permute.xlu0 3
    %432 = vperm.xlu0 %431, %v63
    %v433 = vpop.permute.xlu0 %432
    %435 = vset.pattern.permute.xlu0 3
    %436 = vperm.xlu0 %435, %v64
    %v437 = vpop.permute.xlu0 %436
    %439 = vset.pattern.permute.xlu0 3
    %440 = vperm.xlu0 %439, %v65
    %v441 = vpop.permute.xlu0 %440
    %443 = vset.pattern.permute.xlu0 3
    %444 = vperm.xlu0 %443, %v66
    %v445 = vpop.permute.xlu0 %444
    %447 = vset.pattern.permute.xlu0 3
    %448 = vperm.xlu0 %447, %v67
    %v449 = vpop.permute.xlu0 %448
    %v451 = vlaneseq
    %v452 = vshrl.u32 %v451, 7
    %v453 = vsub.s32 3, %v452
    %v454 = vrot.slane %v149, %v453
    %v455 = vlaneseq
    %v456 = vshrl.u32 %v455, 7
    %v457 = vsub.s32 3, %v456
    %v458 = vrot.slane %v152, %v457
    %v459 = vlaneseq
    %v460 = vshrl.u32 %v459, 7
    %v461 = vsub.s32 3, %v460
    %v462 = vrot.slane %v157, %v461
    %v463 = vlaneseq
    %v464 = vshrl.u32 %v463, 7
    %v465 = vsub.s32 3, %v464
    %v466 = vrot.slane %v160, %v465
    %v467 = vlaneseq
    %v468 = vshrl.u32 %v467, 7
    %v469 = vsub.s32 3, %v468
    %v470 = vrot.slane %v165, %v469
    %v471 = vlaneseq
    %v472 = vshrl.u32 %v471, 7
    %v473 = vsub.s32 3, %v472
    %v474 = vrot.slane %v168, %v473
    %v475 = vlaneseq
    %v476 = vshrl.u32 %v475, 7
    %v477 = vsub.s32 3, %v476
    %v478 = vrot.slane %v173, %v477
    %v479 = vlaneseq
    %v480 = vshrl.u32 %v479, 7
    %v481 = vsub.s32 3, %v480
    %v482 = vrot.slane %v176, %v481
    %v483 = vmul.f32 %v421, %v454
    %v484 = vmul.f32 %v425, %v458
    %v485 = vmul.f32 %v429, %v462
    %v486 = vmul.f32 %v433, %v466
    %v487 = vmul.f32 %v437, %v470
    %v488 = vmul.f32 %v441, %v474
    %v489 = vmul.f32 %v445, %v478
    %v490 = vmul.f32 %v449, %v482
    %v491 = vadd.f32 %v411, %v483
    %v492 = vadd.f32 %v412, %v484
    %v493 = vadd.f32 %v413, %v485
    %v494 = vadd.f32 %v414, %v486
    %v495 = vadd.f32 %v415, %v487
    %v496 = vadd.f32 %v416, %v488
    %v497 = vadd.f32 %v417, %v489
    %v498 = vadd.f32 %v418, %v490
    %499 = vset.pattern.permute.xlu0 4
    %500 = vperm.xlu0 %499, %v60
    %v501 = vpop.permute.xlu0 %500
    %503 = vset.pattern.permute.xlu0 4
    %504 = vperm.xlu0 %503, %v61
    %v505 = vpop.permute.xlu0 %504
    %507 = vset.pattern.permute.xlu0 4
    %508 = vperm.xlu0 %507, %v62
    %v509 = vpop.permute.xlu0 %508
    %511 = vset.pattern.permute.xlu0 4
    %512 = vperm.xlu0 %511, %v63
    %v513 = vpop.permute.xlu0 %512
    %515 = vset.pattern.permute.xlu0 4
    %516 = vperm.xlu0 %515, %v64
    %v517 = vpop.permute.xlu0 %516
    %519 = vset.pattern.permute.xlu0 4
    %520 = vperm.xlu0 %519, %v65
    %v521 = vpop.permute.xlu0 %520
    %523 = vset.pattern.permute.xlu0 4
    %524 = vperm.xlu0 %523, %v66
    %v525 = vpop.permute.xlu0 %524
    %527 = vset.pattern.permute.xlu0 4
    %528 = vperm.xlu0 %527, %v67
    %v529 = vpop.permute.xlu0 %528
    %v531 = vlaneseq
    %v532 = vshrl.u32 %v531, 7
    %v533 = vsub.s32 4, %v532
    %v534 = vrot.slane %v149, %v533
    %v535 = vlaneseq
    %v536 = vshrl.u32 %v535, 7
    %v537 = vsub.s32 4, %v536
    %v538 = vrot.slane %v152, %v537
    %v539 = vlaneseq
    %v540 = vshrl.u32 %v539, 7
    %v541 = vsub.s32 4, %v540
    %v542 = vrot.slane %v157, %v541
    %v543 = vlaneseq
    %v544 = vshrl.u32 %v543, 7
    %v545 = vsub.s32 4, %v544
    %v546 = vrot.slane %v160, %v545
    %v547 = vlaneseq
    %v548 = vshrl.u32 %v547, 7
    %v549 = vsub.s32 4, %v548
    %v550 = vrot.slane %v165, %v549
    %v551 = vlaneseq
    %v552 = vshrl.u32 %v551, 7
    %v553 = vsub.s32 4, %v552
    %v554 = vrot.slane %v168, %v553
    %v555 = vlaneseq
    %v556 = vshrl.u32 %v555, 7
    %v557 = vsub.s32 4, %v556
    %v558 = vrot.slane %v173, %v557
    %v559 = vlaneseq
    %v560 = vshrl.u32 %v559, 7
    %v561 = vsub.s32 4, %v560
    %v562 = vrot.slane %v176, %v561
    %v563 = vmul.f32 %v501, %v534
    %v564 = vmul.f32 %v505, %v538
    %v565 = vmul.f32 %v509, %v542
    %v566 = vmul.f32 %v513, %v546
    %v567 = vmul.f32 %v517, %v550
    %v568 = vmul.f32 %v521, %v554
    %v569 = vmul.f32 %v525, %v558
    %v570 = vmul.f32 %v529, %v562
    %v571 = vadd.f32 %v491, %v563
    %v572 = vadd.f32 %v492, %v564
    %v573 = vadd.f32 %v493, %v565
    %v574 = vadd.f32 %v494, %v566
    %v575 = vadd.f32 %v495, %v567
    %v576 = vadd.f32 %v496, %v568
    %v577 = vadd.f32 %v497, %v569
    %v578 = vadd.f32 %v498, %v570
    %579 = vset.pattern.permute.xlu0 5
    %580 = vperm.xlu0 %579, %v60
    %v581 = vpop.permute.xlu0 %580
    %583 = vset.pattern.permute.xlu0 5
    %584 = vperm.xlu0 %583, %v61
    %v585 = vpop.permute.xlu0 %584
    %587 = vset.pattern.permute.xlu0 5
    %588 = vperm.xlu0 %587, %v62
    %v589 = vpop.permute.xlu0 %588
    %591 = vset.pattern.permute.xlu0 5
    %592 = vperm.xlu0 %591, %v63
    %v593 = vpop.permute.xlu0 %592
    %595 = vset.pattern.permute.xlu0 5
    %596 = vperm.xlu0 %595, %v64
    %v597 = vpop.permute.xlu0 %596
    %599 = vset.pattern.permute.xlu0 5
    %600 = vperm.xlu0 %599, %v65
    %v601 = vpop.permute.xlu0 %600
    %603 = vset.pattern.permute.xlu0 5
    %604 = vperm.xlu0 %603, %v66
    %v605 = vpop.permute.xlu0 %604
    %607 = vset.pattern.permute.xlu0 5
    %608 = vperm.xlu0 %607, %v67
    %v609 = vpop.permute.xlu0 %608
    %v611 = vlaneseq
    %v612 = vshrl.u32 %v611, 7
    %v613 = vsub.s32 5, %v612
    %v614 = vrot.slane %v149, %v613
    %v615 = vlaneseq
    %v616 = vshrl.u32 %v615, 7
    %v617 = vsub.s32 5, %v616
    %v618 = vrot.slane %v152, %v617
    %v619 = vlaneseq
    %v620 = vshrl.u32 %v619, 7
    %v621 = vsub.s32 5, %v620
    %v622 = vrot.slane %v157, %v621
    %v623 = vlaneseq
    %v624 = vshrl.u32 %v623, 7
    %v625 = vsub.s32 5, %v624
    %v626 = vrot.slane %v160, %v625
    %v627 = vlaneseq
    %v628 = vshrl.u32 %v627, 7
    %v629 = vsub.s32 5, %v628
    %v630 = vrot.slane %v165, %v629
    %v631 = vlaneseq
    %v632 = vshrl.u32 %v631, 7
    %v633 = vsub.s32 5, %v632
    %v634 = vrot.slane %v168, %v633
    %v635 = vlaneseq
    %v636 = vshrl.u32 %v635, 7
    %v637 = vsub.s32 5, %v636
    %v638 = vrot.slane %v173, %v637
    %v639 = vlaneseq
    %v640 = vshrl.u32 %v639, 7
    %v641 = vsub.s32 5, %v640
    %v642 = vrot.slane %v176, %v641
    %v643 = vmul.f32 %v581, %v614
    %v644 = vmul.f32 %v585, %v618
    %v645 = vmul.f32 %v589, %v622
    %v646 = vmul.f32 %v593, %v626
    %v647 = vmul.f32 %v597, %v630
    %v648 = vmul.f32 %v601, %v634
    %v649 = vmul.f32 %v605, %v638
    %v650 = vmul.f32 %v609, %v642
    %v651 = vadd.f32 %v571, %v643
    %v652 = vadd.f32 %v572, %v644
    %v653 = vadd.f32 %v573, %v645
    %v654 = vadd.f32 %v574, %v646
    %v655 = vadd.f32 %v575, %v647
    %v656 = vadd.f32 %v576, %v648
    %v657 = vadd.f32 %v577, %v649
    %v658 = vadd.f32 %v578, %v650
    %659 = vset.pattern.permute.xlu0 6
    %660 = vperm.xlu0 %659, %v60
    %v661 = vpop.permute.xlu0 %660
    %663 = vset.pattern.permute.xlu0 6
    %664 = vperm.xlu0 %663, %v61
    %v665 = vpop.permute.xlu0 %664
    %667 = vset.pattern.permute.xlu0 6
    %668 = vperm.xlu0 %667, %v62
    %v669 = vpop.permute.xlu0 %668
    %671 = vset.pattern.permute.xlu0 6
    %672 = vperm.xlu0 %671, %v63
    %v673 = vpop.permute.xlu0 %672
    %675 = vset.pattern.permute.xlu0 6
    %676 = vperm.xlu0 %675, %v64
    %v677 = vpop.permute.xlu0 %676
    %679 = vset.pattern.permute.xlu0 6
    %680 = vperm.xlu0 %679, %v65
    %v681 = vpop.permute.xlu0 %680
    %683 = vset.pattern.permute.xlu0 6
    %684 = vperm.xlu0 %683, %v66
    %v685 = vpop.permute.xlu0 %684
    %687 = vset.pattern.permute.xlu0 6
    %688 = vperm.xlu0 %687, %v67
    %v689 = vpop.permute.xlu0 %688
    %v691 = vlaneseq
    %v692 = vshrl.u32 %v691, 7
    %v693 = vsub.s32 6, %v692
    %v694 = vrot.slane %v149, %v693
    %v695 = vlaneseq
    %v696 = vshrl.u32 %v695, 7
    %v697 = vsub.s32 6, %v696
    %v698 = vrot.slane %v152, %v697
    %v699 = vlaneseq
    %v700 = vshrl.u32 %v699, 7
    %v701 = vsub.s32 6, %v700
    %v702 = vrot.slane %v157, %v701
    %v703 = vlaneseq
    %v704 = vshrl.u32 %v703, 7
    %v705 = vsub.s32 6, %v704
    %v706 = vrot.slane %v160, %v705
    %v707 = vlaneseq
    %v708 = vshrl.u32 %v707, 7
    %v709 = vsub.s32 6, %v708
    %v710 = vrot.slane %v165, %v709
    %v711 = vlaneseq
    %v712 = vshrl.u32 %v711, 7
    %v713 = vsub.s32 6, %v712
    %v714 = vrot.slane %v168, %v713
    %v715 = vlaneseq
    %v716 = vshrl.u32 %v715, 7
    %v717 = vsub.s32 6, %v716
    %v718 = vrot.slane %v173, %v717
    %v719 = vlaneseq
    %v720 = vshrl.u32 %v719, 7
    %v721 = vsub.s32 6, %v720
    %v722 = vrot.slane %v176, %v721
    %v723 = vmul.f32 %v661, %v694
    %v724 = vmul.f32 %v665, %v698
    %v725 = vmul.f32 %v669, %v702
    %v726 = vmul.f32 %v673, %v706
    %v727 = vmul.f32 %v677, %v710
    %v728 = vmul.f32 %v681, %v714
    %v729 = vmul.f32 %v685, %v718
    %v730 = vmul.f32 %v689, %v722
    %v731 = vadd.f32 %v651, %v723
    %v732 = vadd.f32 %v652, %v724
    %v733 = vadd.f32 %v653, %v725
    %v734 = vadd.f32 %v654, %v726
    %v735 = vadd.f32 %v655, %v727
    %v736 = vadd.f32 %v656, %v728
    %v737 = vadd.f32 %v657, %v729
    %v738 = vadd.f32 %v658, %v730
    %739 = vset.pattern.permute.xlu0 7
    %740 = vperm.xlu0 %739, %v60
    %v741 = vpop.permute.xlu0 %740
    %743 = vset.pattern.permute.xlu0 7
    %744 = vperm.xlu0 %743, %v61
    %v745 = vpop.permute.xlu0 %744
    %747 = vset.pattern.permute.xlu0 7
    %748 = vperm.xlu0 %747, %v62
    %v749 = vpop.permute.xlu0 %748
    %751 = vset.pattern.permute.xlu0 7
    %752 = vperm.xlu0 %751, %v63
    %v753 = vpop.permute.xlu0 %752
    %755 = vset.pattern.permute.xlu0 7
    %756 = vperm.xlu0 %755, %v64
    %v757 = vpop.permute.xlu0 %756
    %759 = vset.pattern.permute.xlu0 7
    %760 = vperm.xlu0 %759, %v65
    %v761 = vpop.permute.xlu0 %760
    %763 = vset.pattern.permute.xlu0 7
    %764 = vperm.xlu0 %763, %v66
    %v765 = vpop.permute.xlu0 %764
    %767 = vset.pattern.permute.xlu0 7
    %768 = vperm.xlu0 %767, %v67
    %v769 = vpop.permute.xlu0 %768
    %v771 = vlaneseq
    %v772 = vshrl.u32 %v771, 7
    %v773 = vsub.s32 7, %v772
    %v774 = vrot.slane %v149, %v773
    %v775 = vlaneseq
    %v776 = vshrl.u32 %v775, 7
    %v777 = vsub.s32 7, %v776
    %v778 = vrot.slane %v152, %v777
    %v779 = vlaneseq
    %v780 = vshrl.u32 %v779, 7
    %v781 = vsub.s32 7, %v780
    %v782 = vrot.slane %v157, %v781
    %v783 = vlaneseq
    %v784 = vshrl.u32 %v783, 7
    %v785 = vsub.s32 7, %v784
    %v786 = vrot.slane %v160, %v785
    %v787 = vlaneseq
    %v788 = vshrl.u32 %v787, 7
    %v789 = vsub.s32 7, %v788
    %v790 = vrot.slane %v165, %v789
    %v791 = vlaneseq
    %v792 = vshrl.u32 %v791, 7
    %v793 = vsub.s32 7, %v792
    %v794 = vrot.slane %v168, %v793
    %v795 = vlaneseq
    %v796 = vshrl.u32 %v795, 7
    %v797 = vsub.s32 7, %v796
    %v798 = vrot.slane %v173, %v797
    %v799 = vlaneseq
    %v800 = vshrl.u32 %v799, 7
    %v801 = vsub.s32 7, %v800
    %v802 = vrot.slane %v176, %v801
    %v803 = vmul.f32 %v741, %v774
    %v804 = vmul.f32 %v745, %v778
    %v805 = vmul.f32 %v749, %v782
    %v806 = vmul.f32 %v753, %v786
    %v807 = vmul.f32 %v757, %v790
    %v808 = vmul.f32 %v761, %v794
    %v809 = vmul.f32 %v765, %v798
    %v810 = vmul.f32 %v769, %v802
    %v811 = vadd.f32 %v731, %v803
    %v812 = vadd.f32 %v732, %v804
    %v813 = vadd.f32 %v733, %v805
    %v814 = vadd.f32 %v734, %v806
    %v815 = vadd.f32 %v735, %v807
    %v816 = vadd.f32 %v736, %v808
    %v817 = vadd.f32 %v737, %v809
    %v818 = vadd.f32 %v738, %v810
    %v819 = vld [vmem:[%s3] sm:$0x1]
    %v821 = vlaneseq
    %v822 = vshrl.u32 %v821, 7
    %v823 = vsub.s32 0, %v822
    %v824 = vrot.slane %v819, %v823
    %v826 = vadd.f32 %v811, %v824
    %v827 = vadd.f32 %v812, %v824
    %v828 = vadd.f32 %v813, %v824
    %v829 = vadd.f32 %v814, %v824
    %v830 = vadd.f32 %v815, %v824
    %v831 = vadd.f32 %v816, %v824
    %v832 = vadd.f32 %v817, %v824
    %v833 = vadd.f32 %v818, %v824
    %v834 = vmax.f32 %v826, 0.0
    %v835 = vmax.f32 %v827, 0.0
    %v836 = vmax.f32 %v828, 0.0
    %v837 = vmax.f32 %v829, 0.0
    %v838 = vmax.f32 %v830, 0.0
    %v839 = vmax.f32 %v831, 0.0
    %v840 = vmax.f32 %v832, 0.0
    %v841 = vmax.f32 %v833, 0.0
    %v842 = vpack.c.bf16 %v835, %v834
    %v843 = vpack.c.bf16 %v837, %v836
    %v844 = vpack.c.bf16 %v839, %v838
    %v845 = vpack.c.bf16 %v841, %v840
    %v846 = vld [vmem:[#allocation6] sm:$0xf]
    %v847 = vld [vmem:[#allocation6 + $0x4] sm:$0xf]
    %v848 = vld [vmem:[#allocation6 + $0x8] sm:$0xf]
    %v849 = vld [vmem:[#allocation6 + $0xc] sm:$0xf]
    %v850 = vld [vmem:[#allocation6 + $0x10] sm:$0xf]
    %v851 = vld [vmem:[#allocation6 + $0x14] sm:$0xf]
    %v852 = vld [vmem:[#allocation6 + $0x18] sm:$0xf]
    %v853 = vld [vmem:[#allocation6 + $0x1c] sm:$0xf]
    %v854 = vld [vmem:[#allocation6 + $0x20] sm:$0xf]
    %v855 = vld [vmem:[#allocation6 + $0x24] sm:$0xf]
    %v856 = vld [vmem:[#allocation6 + $0x28] sm:$0xf]
    %v857 = vld [vmem:[#allocation6 + $0x2c] sm:$0xf]
    %v858 = vld [vmem:[#allocation6 + $0x30] sm:$0xf]
    %v859 = vld [vmem:[#allocation6 + $0x34] sm:$0xf]
    %v860 = vld [vmem:[#allocation6 + $0x38] sm:$0xf]
    %v861 = vld [vmem:[#allocation6 + $0x3c] sm:$0xf]
    %v878 = vunpack.c.l.b16 %v846
    %v879 = vunpack.c.l.b16 %v847
    %v880 = vunpack.c.l.b16 %v848
    %v881 = vunpack.c.l.b16 %v849
    %v882 = vunpack.c.l.b16 %v850
    %v883 = vunpack.c.l.b16 %v851
    %v884 = vunpack.c.l.b16 %v852
    %v885 = vunpack.c.l.b16 %v853
    %v886 = vunpack.c.l.b16 %v854
    %v887 = vunpack.c.l.b16 %v855
    %v888 = vunpack.c.l.b16 %v856
    %v889 = vunpack.c.l.b16 %v857
    %v890 = vunpack.c.l.b16 %v858
    %v891 = vunpack.c.l.b16 %v859
    %v892 = vunpack.c.l.b16 %v860
    %v893 = vunpack.c.l.b16 %v861
    %v894 = vpack.c.b16 %v879, %v878
    %v895 = vpack.c.b16 %v881, %v880
    %v896 = vpack.c.b16 %v883, %v882
    %v897 = vpack.c.b16 %v885, %v884
    %v898 = vpack.c.b16 %v887, %v886
    %v899 = vpack.c.b16 %v889, %v888
    %v900 = vpack.c.b16 %v891, %v890
    %v901 = vpack.c.b16 %v893, %v892
    %910 = vmatprep.subr.bf16.mxu0 0
    %911 = vmatpush1.bf16.msra.mxu0 %v894
    %912 = vmatprep.subr.bf16.mxu0 0
    %913 = vmatpush1.bf16.msra.mxu0 %v895
    %914 = vmatprep.subr.bf16.mxu0 0
    %915 = vmatpush1.bf16.msra.mxu0 %v896
    %916 = vmatprep.subr.bf16.mxu0 0
    %917 = vmatpush1.bf16.msra.mxu0 %v897
    %918 = vmatprep.subr.bf16.mxu0 0
    %919 = vmatpush1.bf16.msra.mxu0 %v898
    %920 = vmatprep.subr.bf16.mxu0 0
    %921 = vmatpush1.bf16.msra.mxu0 %v899
    %922 = vmatprep.subr.bf16.mxu0 0
    %923 = vmatpush1.bf16.msra.mxu0 %v900
    %924 = vmatprep.subr.bf16.mxu0 0
    %925 = vmatpush1.bf16.msra.mxu0 %v901
    %926 = vmatprep.subr.bf16.mxu0 0
    %927 = vmatpush1.bf16.msra.mxu0 0
    %928 = vmatprep.subr.bf16.mxu0 0
    %929 = vmatpush1.bf16.msra.mxu0 0
    %930 = vmatprep.subr.bf16.mxu0 0
    %931 = vmatpush1.bf16.msra.mxu0 0
    %932 = vmatprep.subr.bf16.mxu0 0
    %933 = vmatpush1.bf16.msra.mxu0 0
    %934 = vmatprep.subr.bf16.mxu0 0
    %935 = vmatpush1.bf16.msra.mxu0 0
    %936 = vmatprep.subr.bf16.mxu0 0
    %937 = vmatpush1.bf16.msra.mxu0 0
    %938 = vmatprep.subr.bf16.mxu0 0
    %939 = vmatpush1.bf16.msra.mxu0 0
    %940 = vmatprep.subr.bf16.mxu0 0
    %941 = vmatpush1.bf16.msra.mxu0 0
    %942 = vmatprep.mubr.bf16.mxu0 0
    %943 = vmatmul.mubr.bf16.gmra.mrb[0].mxu0 %v842
    %v944 = vpop.f32.mrb[0].mxu0
    %v945 = vadd.f32 0.0, %v944
    %v946 = vpop.f32.mrb[0].mxu0
    %v947 = vpop.f32.mrb[0].mxu0
    %v948 = vadd.f32 0.0, %v947
    %v949 = vpop.f32.mrb[0].mxu0
    %950 = vmatprep.mubr.bf16.mxu0 0
    %951 = vmatmul.mubr.bf16.gmra.mrb[0].mxu0 %v843
    %v952 = vpop.f32.mrb[0].mxu0
    %v953 = vadd.f32 0.0, %v952
    %v954 = vpop.f32.mrb[0].mxu0
    %v955 = vpop.f32.mrb[0].mxu0
    %v956 = vadd.f32 0.0, %v955
    %v957 = vpop.f32.mrb[0].mxu0
    %958 = vmatprep.mubr.bf16.mxu0 0
    %959 = vmatmul.mubr.bf16.gmra.mrb[0].mxu0 %v844
    %v960 = vpop.f32.mrb[0].mxu0
    %v961 = vadd.f32 0.0, %v960
    %v962 = vpop.f32.mrb[0].mxu0
    %v963 = vpop.f32.mrb[0].mxu0
    %v964 = vadd.f32 0.0, %v963
    %v965 = vpop.f32.mrb[0].mxu0
    %966 = vmatprep.mubr.bf16.mxu0 0
    %967 = vmatmul.mubr.bf16.gmra.mrb[0].mxu0 %v845
    %v968 = vpop.f32.mrb[0].mxu0
    %v969 = vadd.f32 0.0, %v968
    %v970 = vpop.f32.mrb[0].mxu0
    %v971 = vpop.f32.mrb[0].mxu0
    %v972 = vadd.f32 0.0, %v971
    %v973 = vpop.f32.mrb[0].mxu0
    %974 = vdwg.mxu0
    %v975 = vlaneseq
    %v976 = vshrl.u32 %v975, 7
    %v977 = vsub.s32 0, %v976
    %v978 = vrot.slane %v945, %v977
    %v979 = vlaneseq
    %v980 = vshrl.u32 %v979, 7
    %v981 = vsub.s32 0, %v980
    %v982 = vrot.slane %v948, %v981
    %v983 = vlaneseq
    %v984 = vshrl.u32 %v983, 7
    %v985 = vsub.s32 0, %v984
    %v986 = vrot.slane %v953, %v985
    %v987 = vlaneseq
    %v988 = vshrl.u32 %v987, 7
    %v989 = vsub.s32 0, %v988
    %v990 = vrot.slane %v956, %v989
    %v991 = vlaneseq
    %v992 = vshrl.u32 %v991, 7
    %v993 = vsub.s32 0, %v992
    %v994 = vrot.slane %v961, %v993
    %v995 = vlaneseq
    %v996 = vshrl.u32 %v995, 7
    %v997 = vsub.s32 0, %v996
    %v998 = vrot.slane %v964, %v997
    %v999 = vlaneseq
    %v1000 = vshrl.u32 %v999, 7
    %v1001 = vsub.s32 0, %v1000
    %v1002 = vrot.slane %v969, %v1001
    %v1003 = vlaneseq
    %v1004 = vshrl.u32 %v1003, 7
    %v1005 = vsub.s32 0, %v1004
    %v1006 = vrot.slane %v972, %v1005
    %v1007 = vmul.f32 %v182, %v978
    %v1008 = vmul.f32 %v187, %v982
    %v1009 = vmul.f32 %v192, %v986
    %v1010 = vmul.f32 %v197, %v990
    %v1011 = vmul.f32 %v202, %v994
    %v1012 = vmul.f32 %v207, %v998
    %v1013 = vmul.f32 %v212, %v1002
    %v1014 = vmul.f32 %v217, %v1006
    %v1015 = vlaneseq
    %v1016 = vshrl.u32 %v1015, 7
    %v1017 = vsub.s32 1, %v1016
    %v1018 = vrot.slane %v945, %v1017
    %v1019 = vlaneseq
    %v1020 = vshrl.u32 %v1019, 7
    %v1021 = vsub.s32 1, %v1020
    %v1022 = vrot.slane %v948, %v1021
    %v1023 = vlaneseq
    %v1024 = vshrl.u32 %v1023, 7
    %v1025 = vsub.s32 1, %v1024
    %v1026 = vrot.slane %v953, %v1025
    %v1027 = vlaneseq
    %v1028 = vshrl.u32 %v1027, 7
    %v1029 = vsub.s32 1, %v1028
    %v1030 = vrot.slane %v956, %v1029
    %v1031 = vlaneseq
    %v1032 = vshrl.u32 %v1031, 7
    %v1033 = vsub.s32 1, %v1032
    %v1034 = vrot.slane %v961, %v1033
    %v1035 = vlaneseq
    %v1036 = vshrl.u32 %v1035, 7
    %v1037 = vsub.s32 1, %v1036
    %v1038 = vrot.slane %v964, %v1037
    %v1039 = vlaneseq
    %v1040 = vshrl.u32 %v1039, 7
    %v1041 = vsub.s32 1, %v1040
    %v1042 = vrot.slane %v969, %v1041
    %v1043 = vlaneseq
    %v1044 = vshrl.u32 %v1043, 7
    %v1045 = vsub.s32 1, %v1044
    %v1046 = vrot.slane %v972, %v1045
    %v1047 = vmul.f32 %v261, %v1018
    %v1048 = vmul.f32 %v265, %v1022
    %v1049 = vmul.f32 %v269, %v1026
    %v1050 = vmul.f32 %v273, %v1030
    %v1051 = vmul.f32 %v277, %v1034
    %v1052 = vmul.f32 %v281, %v1038
    %v1053 = vmul.f32 %v285, %v1042
    %v1054 = vmul.f32 %v289, %v1046
    %v1055 = vadd.f32 %v1007, %v1047
    %v1056 = vadd.f32 %v1008, %v1048
    %v1057 = vadd.f32 %v1009, %v1049
    %v1058 = vadd.f32 %v1010, %v1050
    %v1059 = vadd.f32 %v1011, %v1051
    %v1060 = vadd.f32 %v1012, %v1052
    %v1061 = vadd.f32 %v1013, %v1053
    %v1062 = vadd.f32 %v1014, %v1054
    %v1063 = vlaneseq
    %v1064 = vshrl.u32 %v1063, 7
    %v1065 = vsub.s32 2, %v1064
    %v1066 = vrot.slane %v945, %v1065
    %v1067 = vlaneseq
    %v1068 = vshrl.u32 %v1067, 7
    %v1069 = vsub.s32 2, %v1068
    %v1070 = vrot.slane %v948, %v1069
    %v1071 = vlaneseq
    %v1072 = vshrl.u32 %v1071, 7
    %v1073 = vsub.s32 2, %v1072
    %v1074 = vrot.slane %v953, %v1073
    %v1075 = vlaneseq
    %v1076 = vshrl.u32 %v1075, 7
    %v1077 = vsub.s32 2, %v1076
    %v1078 = vrot.slane %v956, %v1077
    %v1079 = vlaneseq
    %v1080 = vshrl.u32 %v1079, 7
    %v1081 = vsub.s32 2, %v1080
    %v1082 = vrot.slane %v961, %v1081
    %v1083 = vlaneseq
    %v1084 = vshrl.u32 %v1083, 7
    %v1085 = vsub.s32 2, %v1084
    %v1086 = vrot.slane %v964, %v1085
    %v1087 = vlaneseq
    %v1088 = vshrl.u32 %v1087, 7
    %v1089 = vsub.s32 2, %v1088
    %v1090 = vrot.slane %v969, %v1089
    %v1091 = vlaneseq
    %v1092 = vshrl.u32 %v1091, 7
    %v1093 = vsub.s32 2, %v1092
    %v1094 = vrot.slane %v972, %v1093
    %v1095 = vmul.f32 %v341, %v1066
    %v1096 = vmul.f32 %v345, %v1070
    %v1097 = vmul.f32 %v349, %v1074
    %v1098 = vmul.f32 %v353, %v1078
    %v1099 = vmul.f32 %v357, %v1082
    %v1100 = vmul.f32 %v361, %v1086
    %v1101 = vmul.f32 %v365, %v1090
    %v1102 = vmul.f32 %v369, %v1094
    %v1103 = vadd.f32 %v1055, %v1095
    %v1104 = vadd.f32 %v1056, %v1096
    %v1105 = vadd.f32 %v1057, %v1097
    %v1106 = vadd.f32 %v1058, %v1098
    %v1107 = vadd.f32 %v1059, %v1099
    %v1108 = vadd.f32 %v1060, %v1100
    %v1109 = vadd.f32 %v1061, %v1101
    %v1110 = vadd.f32 %v1062, %v1102
    %v1111 = vlaneseq
    %v1112 = vshrl.u32 %v1111, 7
    %v1113 = vsub.s32 3, %v1112
    %v1114 = vrot.slane %v945, %v1113
    %v1115 = vlaneseq
    %v1116 = vshrl.u32 %v1115, 7
    %v1117 = vsub.s32 3, %v1116
    %v1118 = vrot.slane %v948, %v1117
    %v1119 = vlaneseq
    %v1120 = vshrl.u32 %v1119, 7
    %v1121 = vsub.s32 3, %v1120
    %v1122 = vrot.slane %v953, %v1121
    %v1123 = vlaneseq
    %v1124 = vshrl.u32 %v1123, 7
    %v1125 = vsub.s32 3, %v1124
    %v1126 = vrot.slane %v956, %v1125
    %v1127 = vlaneseq
    %v1128 = vshrl.u32 %v1127, 7
    %v1129 = vsub.s32 3, %v1128
    %v1130 = vrot.slane %v961, %v1129
    %v1131 = vlaneseq
    %v1132 = vshrl.u32 %v1131, 7
    %v1133 = vsub.s32 3, %v1132
    %v1134 = vrot.slane %v964, %v1133
    %v1135 = vlaneseq
    %v1136 = vshrl.u32 %v1135, 7
    %v1137 = vsub.s32 3, %v1136
    %v1138 = vrot.slane %v969, %v1137
    %v1139 = vlaneseq
    %v1140 = vshrl.u32 %v1139, 7
    %v1141 = vsub.s32 3, %v1140
    %v1142 = vrot.slane %v972, %v1141
    %v1143 = vmul.f32 %v421, %v1114
    %v1144 = vmul.f32 %v425, %v1118
    %v1145 = vmul.f32 %v429, %v1122
    %v1146 = vmul.f32 %v433, %v1126
    %v1147 = vmul.f32 %v437, %v1130
    %v1148 = vmul.f32 %v441, %v1134
    %v1149 = vmul.f32 %v445, %v1138
    %v1150 = vmul.f32 %v449, %v1142
    %v1151 = vadd.f32 %v1103, %v1143
    %v1152 = vadd.f32 %v1104, %v1144
    %v1153 = vadd.f32 %v1105, %v1145
    %v1154 = vadd.f32 %v1106, %v1146
    %v1155 = vadd.f32 %v1107, %v1147
    %v1156 = vadd.f32 %v1108, %v1148
    %v1157 = vadd.f32 %v1109, %v1149
    %v1158 = vadd.f32 %v1110, %v1150
    %v1159 = vlaneseq
    %v1160 = vshrl.u32 %v1159, 7
    %v1161 = vsub.s32 4, %v1160
    %v1162 = vrot.slane %v945, %v1161
    %v1163 = vlaneseq
    %v1164 = vshrl.u32 %v1163, 7
    %v1165 = vsub.s32 4, %v1164
    %v1166 = vrot.slane %v948, %v1165
    %v1167 = vlaneseq
    %v1168 = vshrl.u32 %v1167, 7
    %v1169 = vsub.s32 4, %v1168
    %v1170 = vrot.slane %v953, %v1169
    %v1171 = vlaneseq
    %v1172 = vshrl.u32 %v1171, 7
    %v1173 = vsub.s32 4, %v1172
    %v1174 = vrot.slane %v956, %v1173
    %v1175 = vlaneseq
    %v1176 = vshrl.u32 %v1175, 7
    %v1177 = vsub.s32 4, %v1176
    %v1178 = vrot.slane %v961, %v1177
    %v1179 = vlaneseq
    %v1180 = vshrl.u32 %v1179, 7
    %v1181 = vsub.s32 4, %v1180
    %v1182 = vrot.slane %v964, %v1181
    %v1183 = vlaneseq
    %v1184 = vshrl.u32 %v1183, 7
    %v1185 = vsub.s32 4, %v1184
    %v1186 = vrot.slane %v969, %v1185
    %v1187 = vlaneseq
    %v1188 = vshrl.u32 %v1187, 7
    %v1189 = vsub.s32 4, %v1188
    %v1190 = vrot.slane %v972, %v1189
    %v1191 = vmul.f32 %v501, %v1162
    %v1192 = vmul.f32 %v505, %v1166
    %v1193 = vmul.f32 %v509, %v1170
    %v1194 = vmul.f32 %v513, %v1174
    %v1195 = vmul.f32 %v517, %v1178
    %v1196 = vmul.f32 %v521, %v1182
    %v1197 = vmul.f32 %v525, %v1186
    %v1198 = vmul.f32 %v529, %v1190
    %v1199 = vadd.f32 %v1151, %v1191
    %v1200 = vadd.f32 %v1152, %v1192
    %v1201 = vadd.f32 %v1153, %v1193
    %v1202 = vadd.f32 %v1154, %v1194
    %v1203 = vadd.f32 %v1155, %v1195
    %v1204 = vadd.f32 %v1156, %v1196
    %v1205 = vadd.f32 %v1157, %v1197
    %v1206 = vadd.f32 %v1158, %v1198
    %v1207 = vlaneseq
    %v1208 = vshrl.u32 %v1207, 7
    %v1209 = vsub.s32 5, %v1208
    %v1210 = vrot.slane %v945, %v1209
    %v1211 = vlaneseq
    %v1212 = vshrl.u32 %v1211, 7
    %v1213 = vsub.s32 5, %v1212
    %v1214 = vrot.slane %v948, %v1213
    %v1215 = vlaneseq
    %v1216 = vshrl.u32 %v1215, 7
    %v1217 = vsub.s32 5, %v1216
    %v1218 = vrot.slane %v953, %v1217
    %v1219 = vlaneseq
    %v1220 = vshrl.u32 %v1219, 7
    %v1221 = vsub.s32 5, %v1220
    %v1222 = vrot.slane %v956, %v1221
    %v1223 = vlaneseq
    %v1224 = vshrl.u32 %v1223, 7
    %v1225 = vsub.s32 5, %v1224
    %v1226 = vrot.slane %v961, %v1225
    %v1227 = vlaneseq
    %v1228 = vshrl.u32 %v1227, 7
    %v1229 = vsub.s32 5, %v1228
    %v1230 = vrot.slane %v964, %v1229
    %v1231 = vlaneseq
    %v1232 = vshrl.u32 %v1231, 7
    %v1233 = vsub.s32 5, %v1232
    %v1234 = vrot.slane %v969, %v1233
    %v1235 = vlaneseq
    %v1236 = vshrl.u32 %v1235, 7
    %v1237 = vsub.s32 5, %v1236
    %v1238 = vrot.slane %v972, %v1237
    %v1239 = vmul.f32 %v581, %v1210
    %v1240 = vmul.f32 %v585, %v1214
    %v1241 = vmul.f32 %v589, %v1218
    %v1242 = vmul.f32 %v593, %v1222
    %v1243 = vmul.f32 %v597, %v1226
    %v1244 = vmul.f32 %v601, %v1230
    %v1245 = vmul.f32 %v605, %v1234
    %v1246 = vmul.f32 %v609, %v1238
    %v1247 = vadd.f32 %v1199, %v1239
    %v1248 = vadd.f32 %v1200, %v1240
    %v1249 = vadd.f32 %v1201, %v1241
    %v1250 = vadd.f32 %v1202, %v1242
    %v1251 = vadd.f32 %v1203, %v1243
    %v1252 = vadd.f32 %v1204, %v1244
    %v1253 = vadd.f32 %v1205, %v1245
    %v1254 = vadd.f32 %v1206, %v1246
    %v1255 = vlaneseq
    %v1256 = vshrl.u32 %v1255, 7
    %v1257 = vsub.s32 6, %v1256
    %v1258 = vrot.slane %v945, %v1257
    %v1259 = vlaneseq
    %v1260 = vshrl.u32 %v1259, 7
    %v1261 = vsub.s32 6, %v1260
    %v1262 = vrot.slane %v948, %v1261
    %v1263 = vlaneseq
    %v1264 = vshrl.u32 %v1263, 7
    %v1265 = vsub.s32 6, %v1264
    %v1266 = vrot.slane %v953, %v1265
    %v1267 = vlaneseq
    %v1268 = vshrl.u32 %v1267, 7
    %v1269 = vsub.s32 6, %v1268
    %v1270 = vrot.slane %v956, %v1269
    %v1271 = vlaneseq
    %v1272 = vshrl.u32 %v1271, 7
    %v1273 = vsub.s32 6, %v1272
    %v1274 = vrot.slane %v961, %v1273
    %v1275 = vlaneseq
    %v1276 = vshrl.u32 %v1275, 7
    %v1277 = vsub.s32 6, %v1276
    %v1278 = vrot.slane %v964, %v1277
    %v1279 = vlaneseq
    %v1280 = vshrl.u32 %v1279, 7
    %v1281 = vsub.s32 6, %v1280
    %v1282 = vrot.slane %v969, %v1281
    %v1283 = vlaneseq
    %v1284 = vshrl.u32 %v1283, 7
    %v1285 = vsub.s32 6, %v1284
    %v1286 = vrot.slane %v972, %v1285
    %v1287 = vmul.f32 %v661, %v1258
    %v1288 = vmul.f32 %v665, %v1262
    %v1289 = vmul.f32 %v669, %v1266
    %v1290 = vmul.f32 %v673, %v1270
    %v1291 = vmul.f32 %v677, %v1274
    %v1292 = vmul.f32 %v681, %v1278
    %v1293 = vmul.f32 %v685, %v1282
    %v1294 = vmul.f32 %v689, %v1286
    %v1295 = vadd.f32 %v1247, %v1287
    %v1296 = vadd.f32 %v1248, %v1288
    %v1297 = vadd.f32 %v1249, %v1289
    %v1298 = vadd.f32 %v1250, %v1290
    %v1299 = vadd.f32 %v1251, %v1291
    %v1300 = vadd.f32 %v1252, %v1292
    %v1301 = vadd.f32 %v1253, %v1293
    %v1302 = vadd.f32 %v1254, %v1294
    %v1303 = vlaneseq
    %v1304 = vshrl.u32 %v1303, 7
    %v1305 = vsub.s32 7, %v1304
    %v1306 = vrot.slane %v945, %v1305
    %v1307 = vlaneseq
    %v1308 = vshrl.u32 %v1307, 7
    %v1309 = vsub.s32 7, %v1308
    %v1310 = vrot.slane %v948, %v1309
    %v1311 = vlaneseq
    %v1312 = vshrl.u32 %v1311, 7
    %v1313 = vsub.s32 7, %v1312
    %v1314 = vrot.slane %v953, %v1313
    %v1315 = vlaneseq
    %v1316 = vshrl.u32 %v1315, 7
    %v1317 = vsub.s32 7, %v1316
    %v1318 = vrot.slane %v956, %v1317
    %v1319 = vlaneseq
    %v1320 = vshrl.u32 %v1319, 7
    %v1321 = vsub.s32 7, %v1320
    %v1322 = vrot.slane %v961, %v1321
    %v1323 = vlaneseq
    %v1324 = vshrl.u32 %v1323, 7
    %v1325 = vsub.s32 7, %v1324
    %v1326 = vrot.slane %v964, %v1325
    %v1327 = vlaneseq
    %v1328 = vshrl.u32 %v1327, 7
    %v1329 = vsub.s32 7, %v1328
    %v1330 = vrot.slane %v969, %v1329
    %v1331 = vlaneseq
    %v1332 = vshrl.u32 %v1331, 7
    %v1333 = vsub.s32 7, %v1332
    %v1334 = vrot.slane %v972, %v1333
    %v1335 = vmul.f32 %v741, %v1306
    %v1336 = vmul.f32 %v745, %v1310
    %v1337 = vmul.f32 %v749, %v1314
    %v1338 = vmul.f32 %v753, %v1318
    %v1339 = vmul.f32 %v757, %v1322
    %v1340 = vmul.f32 %v761, %v1326
    %v1341 = vmul.f32 %v765, %v1330
    %v1342 = vmul.f32 %v769, %v1334
    %v1343 = vadd.f32 %v1295, %v1335
    %v1344 = vadd.f32 %v1296, %v1336
    %v1345 = vadd.f32 %v1297, %v1337
    %v1346 = vadd.f32 %v1298, %v1338
    %v1347 = vadd.f32 %v1299, %v1339
    %v1348 = vadd.f32 %v1300, %v1340
    %v1349 = vadd.f32 %v1301, %v1341
    %v1350 = vadd.f32 %v1302, %v1342
    %v1351 = vld [vmem:[%s5] sm:$0x1]
    %v1353 = vlaneseq
    %v1354 = vshrl.u32 %v1353, 7
    %v1355 = vsub.s32 0, %v1354
    %v1356 = vrot.slane %v1351, %v1355
    %v1358 = vadd.f32 %v1343, %v1356
    %v1359 = vadd.f32 %v1344, %v1356
    %v1360 = vadd.f32 %v1345, %v1356
    %v1361 = vadd.f32 %v1346, %v1356
    %v1362 = vadd.f32 %v1347, %v1356
    %v1363 = vadd.f32 %v1348, %v1356
    %v1364 = vadd.f32 %v1349, %v1356
    %v1365 = vadd.f32 %v1350, %v1356
    %v1366 = vmax.f32 %v1358, 0.0
    %v1367 = vmax.f32 %v1359, 0.0
    %v1368 = vmax.f32 %v1360, 0.0
    %v1369 = vmax.f32 %v1361, 0.0
    %v1370 = vmax.f32 %v1362, 0.0
    %v1371 = vmax.f32 %v1363, 0.0
    %v1372 = vmax.f32 %v1364, 0.0
    %v1373 = vmax.f32 %v1365, 0.0
    %v1374 = vrot.slane %v1366, 4
    %v1375 = vadd.f32 %v1366, %v1374
    %v1376 = vrot.slane %v1375, 2
    %v1377 = vadd.f32 %v1375, %v1376
    %v1378 = vrot.slane %v1377, 1
    %v1379 = vadd.f32 %v1377, %v1378
    %v1380 = vrot.slane %v1367, 4
    %v1381 = vadd.f32 %v1367, %v1380
    %v1382 = vrot.slane %v1381, 2
    %v1383 = vadd.f32 %v1381, %v1382
    %v1384 = vrot.slane %v1383, 1
    %v1385 = vadd.f32 %v1383, %v1384
    %v1386 = vrot.slane %v1368, 4
    %v1387 = vadd.f32 %v1368, %v1386
    %v1388 = vrot.slane %v1387, 2
    %v1389 = vadd.f32 %v1387, %v1388
    %v1390 = vrot.slane %v1389, 1
    %v1391 = vadd.f32 %v1389, %v1390
    %v1392 = vrot.slane %v1369, 4
    %v1393 = vadd.f32 %v1369, %v1392
    %v1394 = vrot.slane %v1393, 2
    %v1395 = vadd.f32 %v1393, %v1394
    %v1396 = vrot.slane %v1395, 1
    %v1397 = vadd.f32 %v1395, %v1396
    %v1398 = vrot.slane %v1370, 4
    %v1399 = vadd.f32 %v1370, %v1398
    %v1400 = vrot.slane %v1399, 2
    %v1401 = vadd.f32 %v1399, %v1400
    %v1402 = vrot.slane %v1401, 1
    %v1403 = vadd.f32 %v1401, %v1402
    %v1404 = vrot.slane %v1371, 4
    %v1405 = vadd.f32 %v1371, %v1404
    %v1406 = vrot.slane %v1405, 2
    %v1407 = vadd.f32 %v1405, %v1406
    %v1408 = vrot.slane %v1407, 1
    %v1409 = vadd.f32 %v1407, %v1408
    %v1410 = vrot.slane %v1372, 4
    %v1411 = vadd.f32 %v1372, %v1410
    %v1412 = vrot.slane %v1411, 2
    %v1413 = vadd.f32 %v1411, %v1412
    %v1414 = vrot.slane %v1413, 1
    %v1415 = vadd.f32 %v1413, %v1414
    %v1416 = vrot.slane %v1373, 4
    %v1417 = vadd.f32 %v1373, %v1416
    %v1418 = vrot.slane %v1417, 2
    %v1419 = vadd.f32 %v1417, %v1418
    %v1420 = vrot.slane %v1419, 1
    %v1421 = vadd.f32 %v1419, %v1420
    %v1422 = vld [vmem:[%s6] sm:$0x1]
    %v1424 = vlaneseq
    %v1425 = vshrl.u32 %v1424, 7
    %v1426 = vsub.s32 0, %v1425
    %v1427 = vrot.slane %v1422, %v1426
    %v1429 = vmul.f32 %v1379, %v1427
    %v1430 = vmul.f32 %v1385, %v1427
    %v1431 = vmul.f32 %v1391, %v1427
    %v1432 = vmul.f32 %v1397, %v1427
    %v1433 = vmul.f32 %v1403, %v1427
    %v1434 = vmul.f32 %v1409, %v1427
    %v1435 = vmul.f32 %v1415, %v1427
    %v1436 = vmul.f32 %v1421, %v1427
    %v1445 = vrot.slane %v1430, 7
    %vm1446 = vcmask 1041409
    %v1447 = vsel %vm1446, %v1445, %v1429
    %v1448 = vrot.slane %v1431, 6
    %vm1449 = vcmask 1042434
    %v1450 = vsel %vm1449, %v1448, %v1447
    %v1451 = vrot.slane %v1432, 5
    %vm1452 = vcmask 1043459
    %v1453 = vsel %vm1452, %v1451, %v1450
    %v1454 = vrot.slane %v1433, 4
    %vm1455 = vcmask 1044484
    %v1456 = vsel %vm1455, %v1454, %v1453
    %v1457 = vrot.slane %v1434, 3
    %vm1458 = vcmask 1045509
    %v1459 = vsel %vm1458, %v1457, %v1456
    %v1460 = vrot.slane %v1435, 2
    %vm1461 = vcmask 1046534
    %v1462 = vsel %vm1461, %v1460, %v1459
    %v1463 = vrot.slane %v1436, 1
    %vm1464 = vcmask 1047559
    %v1465 = vsel %vm1464, %v1463, %v1462
    %1467 = vadd.xlane.f32.xlu0 %v1465
    %v1468 = vpop.xlane.xlu0 %1467
    %s1469 = sld [smem:[#allocation2]]
    %v1470 = vstv %s1469
    %v1471 = vadd.f32 %v1468, %v1470
    %1472 = vst [vmem:[#allocation8] sm:$0xff] %v1471
    // Predicated region
    $region42: #{tpu_custom_call.1} parent=1 // pred_check
      _
    $region43: #{tpu_custom_call.1} parent=1 // pred_check_branch
      %1474 = sbr.rel (0) target = $region45
    $region44: #{tpu_custom_call.1} parent=1 // pred_region
      %s1476 = ssub.s32 128, 128
      %1477 = vsyncadd [#allocation5], %s1476
      %s1479 = sshll.u32 [#allocation8], 4
      %s1480 = int_to_ptr.vmem [resolvable:$true] %s1479
      %1482 = dma.vmem_to_hbm [thread:$0]  %s1480, 128, %s8, [#allocation5]
    $region45: #{tpu_custom_call.1} parent=1 // pred_fallthru
      _
    // Predicated region
    $region46: #{tpu_custom_call.1} parent=1 // pred_check
      _
    $region47: #{tpu_custom_call.1} parent=1 // pred_check_branch
      %1484 = sbr.rel (0) target = $region49
    $region48: #{tpu_custom_call.1} parent=1 // pred_region
      %1485 = dma.done [#allocation5], 128
    $region49: #{tpu_custom_call.1} parent=1 // pred_fallthru
      _
    %1486 = vsyncpa [#allocation4], 1
    %1487 = vsyncpa [#allocation7], 1
    %1488 = vsyncpa [#allocation5], 1

</llo_original>
